<compile_context>
chip_gen: v6e
topology: v6e:2x2x1
jax: 0.10.0
libtpu: 0.0.40
codegen_flags: <defaults>
</compile_context>

<pallas_src>
import jax
import jax.numpy as jnp
from jax.experimental import pallas as pl
from jax.experimental.pallas import tpu as pltpu


# ---------------------------------------------------------------------------
# Fused kernel (one block of BB samples per grid step)
# ---------------------------------------------------------------------------
def _make_kernel(BB):
    f32 = jnp.float32

    def kernel(xc1e_ref, xc1o_ref, w1c_ref, t1_ref, w2c_ref, t2_ref,
               wpc3_ref, bpc_ref, maskq_ref, wdig_ref, s2m_ref, s2t_ref,
               gones_ref, gsel_ref, o_ref, h1pe_ref, h1po_ref):
        # ---------------- conv1 (im2col K=18) + shift + ReLU + maxpool(2) ----
        w1c = w1c_ref[...]
        t1 = t1_ref[...]
        y1e = jnp.maximum(
            jnp.dot(xc1e_ref[...], w1c, preferred_element_type=f32) + t1, 0.0)
        y1o = jnp.maximum(
            jnp.dot(xc1o_ref[...], w1c, preferred_element_type=f32) + t1, 0.0)
        # (BB*30, 32); per sample rows 0..14 -> pooled pos 0,2,..,28 ; 15..29 -> 1,3,..,29
        h1 = jnp.maximum(y1e, y1o)

        # Stage h1 into zero-padded even/odd scratches (conv2 padding = 2):
        #   h1pe[b, j] = h1(sample b, pos 2j-2),  h1po[b, j] = h1(sample b, pos 2j-1)
        h1pe_ref[...] = jnp.zeros((BB, 17, 32), f32)
        h1po_ref[...] = jnp.zeros((BB, 17, 32), f32)
        for b in range(BB):
            h1pe_ref[b, pl.ds(1, 15), :] = h1[b * 30:b * 30 + 15, :]
            h1po_ref[b, pl.ds(1, 15), :] = h1[b * 30 + 15:b * 30 + 30, :]

        # ---------------- conv2 (im2col K=160) + shift + ReLU + maxpool(2) ----
        w2c = w2c_ref[...]
        t2 = t2_ref[...]
        h2s = []
        for b in range(BB):
            pe0 = h1pe_ref[b, pl.ds(0, 15), :]
            pe1 = h1pe_ref[b, pl.ds(1, 15), :]
            pe2 = h1pe_ref[b, pl.ds(2, 15), :]
            po0 = h1po_ref[b, pl.ds(0, 15), :]
            po1 = h1po_ref[b, pl.ds(1, 15), :]
            po2 = h1po_ref[b, pl.ds(2, 15), :]
            xce = jnp.concatenate([pe0, po0, pe1, po1, pe2], axis=1)   # (15,160), taps k=0..4
            xco = jnp.concatenate([po0, pe1, po1, pe2, po2], axis=1)   # (15,160)
            y2e = jnp.maximum(jnp.dot(xce, w2c, preferred_element_type=f32) + t2, 0.0)
            y2o = jnp.maximum(jnp.dot(xco, w2c, preferred_element_type=f32) + t2, 0.0)
            h2s.append(jnp.maximum(y2e, y2o))                           # (15, 64)

        # ---------------- primary caps: pc[b,o] = sum_{l,c} h2[b,l,c] Wpc[l,c,o] + b ----
        rowid = jax.lax.broadcasted_iota(jnp.int32, (BB, 1), 0)
        onehot = [(rowid == b).astype(f32) for b in range(BB)]          # (BB,1) selectors
        acc = jnp.zeros((BB, 256), f32)
        for l in range(15):
            lhs = onehot[0] * h2s[0][l:l + 1, :]                        # (BB, 64)
            for b in range(1, BB):
                lhs = lhs + onehot[b] * h2s[b][l:l + 1, :]
            acc = acc + jnp.dot(lhs, wpc3_ref[l], preferred_element_type=f32)
        pc = acc + bpc_ref[...]                                         # (BB, 256)

        # ---------------- digit caps: u_hat + routing, vectorized over (b, i, j) --------
        # rows = (sample b, primary cap i); lanes = capsule j * 16 + dim d
        s2m = s2m_ref[...]      # (BB, BB*32)   sample <- its 32 rows
        s2t = s2t_ref[...]      # (BB*32, BB)   row    <- its sample
        gones = gones_ref[...]  # (96, 96)      16x16 block-diagonal of ones

        pc_rows = jnp.dot(s2t, pc, preferred_element_type=f32)          # (BB*32, 256)
        u = jnp.dot(maskq_ref[...] * pc_rows, wdig_ref[...],
                    preferred_element_type=f32)                          # (BB*32, 96) = u_hat

        def squash(s):
            sn = jnp.dot(s * s, gones, preferred_element_type=f32)      # ||s_j||^2 (expanded)
            return s * (sn / (1.0 + sn) / jnp.sqrt(sn + 1e-8))

        # routing iteration 0: b_ij == 0 -> softmax is exactly uniform (1/6)
        s = jnp.dot(s2m, u * (1.0 / 6.0), preferred_element_type=f32)   # (BB, 96) sum over i
        v = squash(s)
        v_rows = jnp.dot(s2t, v, preferred_element_type=f32)            # (BB*32, 96)
        b_exp = jnp.dot(u * v_rows, gones, preferred_element_type=f32)  # b_ij (expanded per dim)

        for r in (1, 2):
            m = jnp.max(b_exp, axis=1, keepdims=True)
            e = jnp.exp(b_exp - m)
            c = e * (16.0 / jnp.sum(e, axis=1, keepdims=True))          # softmax over capsules
            s = jnp.dot(s2m, c * u, preferred_element_type=f32)
            v = squash(s)
            if r < 2:
                v_rows = jnp.dot(s2t, v, preferred_element_type=f32)
                b_exp = b_exp + jnp.dot(u * v_rows, gones,
                                        preferred_element_type=f32)

        lens = jnp.sqrt(jnp.dot(v * v, gsel_ref[...],
                                preferred_element_type=f32))             # (BB, 6)
        o_ref[...] = 1.0 / (1.0 + jnp.exp(-lens))                        # sigmoid, one store

    return kernel


# ---------------------------------------------------------------------------
# Wrapper: BN folding, im2col, routing constants, single pallas_call
# ---------------------------------------------------------------------------
def pallas_forward(x, P):
    # x: (B, 6, 60) float32 (PyTorch NCW layout)
    B = x.shape[0]
    f32 = jnp.float32
    eps = 1e-5

    # whole (small) batch per grid step; larger batches should use batch blocks
    # that are multiples of 8 on the "parallel" grid axis (megacore / v7x).
    BB = B
    NB = B // BB

    # ---- fold BatchNorm (inference mode) into conv weights / shifts ----
    s1 = P["g1"] / jnp.sqrt(P["v1"] + eps)
    t1 = (P["be1"] + (P["b1"] - P["m1"]) * s1)[None, :]                 # (1, 32)
    s2 = P["g2"] / jnp.sqrt(P["v2"] + eps)
    t2 = (P["be2"] + (P["b2"] - P["m2"]) * s2)[None, :]                 # (1, 64)

    w1c = (jnp.transpose(P["w1"], (2, 1, 0)) * s1[None, None, :]).reshape(18, 32)
    w2c = (jnp.transpose(P["w2"], (2, 1, 0)) * s2[None, None, :]).reshape(160, 64)
    wpc3 = jnp.transpose(P["wpc"], (2, 1, 0))                           # (15, 64, 256)
    bpc = P["bpc"][None, :]                                             # (1, 256)
    # wdig[q, j*16+d] = Wdig[j, q%8, d]  (tiled so the masked-broadcast trick works)
    wdig = jnp.tile(jnp.transpose(P["Wdig"], (1, 0, 2)).reshape(8, 96), (32, 1))

    # ---- conv1 im2col (even / odd pooling partners), batch folded into rows ----
    # per-sample row order: pooled positions [0,2,...,28, 1,3,...,29]
    xt = jnp.transpose(x, (0, 2, 1))                                    # (B, 60, 6)
    xp = jnp.pad(xt, ((0, 0), (1, 1), (0, 0)))                          # (B, 62, 6)
    m_order = jnp.concatenate([jnp.arange(0, 30, 2), jnp.arange(1, 30, 2)])
    taps = jnp.arange(3)
    idx_e = 2 * m_order[:, None] + taps[None, :]                        # (30, 3)
    xc1e = xp[:, idx_e, :].reshape(B * 30, 18)
    xc1o = xp[:, idx_e + 1, :].reshape(B * 30, 18)

    # ---- constant 0/1 matrices for the vectorized capsule routing ----
    maskq = (jnp.arange(256)[None, :] // 8
             == (jnp.arange(BB * 32) % 32)[:, None]).astype(f32)        # (BB*32, 256)
    s2m = (jnp.arange(BB * 32)[None, :] // 32
           == jnp.arange(BB)[:, None]).astype(f32)                      # (BB, BB*32)
    s2t = s2m.T                                                         # (BB*32, BB)
    gones = (jnp.arange(96)[:, None] // 16
             == jnp.arange(96)[None, :] // 16).astype(f32)              # (96, 96)
    gsel = (jnp.arange(96)[:, None] // 16
            == jnp.arange(6)[None, :]).astype(f32)                      # (96, 6)

    out = pl.pallas_call(
        _make_kernel(BB),
        out_shape=jax.ShapeDtypeStruct((B, 6), f32),
        grid=(NB,),
        in_specs=[
            pl.BlockSpec((BB * 30, 18), lambda n: (n, 0)),       # xc1e
            pl.BlockSpec((BB * 30, 18), lambda n: (n, 0)),       # xc1o
            pl.BlockSpec((18, 32), lambda n: (0, 0)),            # w1c (BN-scaled)
            pl.BlockSpec((1, 32), lambda n: (0, 0)),             # t1
            pl.BlockSpec((160, 64), lambda n: (0, 0)),           # w2c (BN-scaled)
            pl.BlockSpec((1, 64), lambda n: (0, 0)),             # t2
            pl.BlockSpec((15, 64, 256), lambda n: (0, 0, 0)),    # wpc3
            pl.BlockSpec((1, 256), lambda n: (0, 0)),            # bpc
            pl.BlockSpec((BB * 32, 256), lambda n: (0, 0)),      # maskq
            pl.BlockSpec((256, 96), lambda n: (0, 0)),           # wdig (tiled)
            pl.BlockSpec((BB, BB * 32), lambda n: (0, 0)),       # s2m
            pl.BlockSpec((BB * 32, BB), lambda n: (0, 0)),       # s2t
            pl.BlockSpec((96, 96), lambda n: (0, 0)),            # gones
            pl.BlockSpec((96, 6), lambda n: (0, 0)),             # gsel
        ],
        out_specs=pl.BlockSpec((BB, 6), lambda n: (n, 0)),
        scratch_shapes=[
            pltpu.VMEM((BB, 17, 32), f32),                       # padded h1 (even positions)
            pltpu.VMEM((BB, 17, 32), f32),                       # padded h1 (odd positions)
        ],
        compiler_params=pltpu.CompilerParams(dimension_semantics=("parallel",)),
    )(xc1e, xc1o, w1c, t1, w2c, t2, wpc3, bpc, maskq, wdig, s2m, s2t, gones, gsel)
    return out


# ---------------------------------------------------------------------------
# Pure-JAX reference (same inference-mode BN semantics) for validation
# ---------------------------------------------------------------------------
def reference_forward(x, P):
    eps = 1e-5

    def conv1d(h, w, b, pad):
        y = jax.lax.conv_general_dilated(
            h, w, window_strides=(1,), padding=[(pad, pad)],
            dimension_numbers=("NCH", "OIH", "NCH"))
        return y + b[None, :, None]

    def bn(h, g, be, m, v):
        return g[None, :, None] * (h - m[None, :, None]) / jnp.sqrt(v[None, :, None] + eps) \
            + be[None, :, None]

    def pool(h):
        Bb, C, L = h.shape
        return h.reshape(Bb, C, L // 2, 2).max(-1)

    h = pool(jax.nn.relu(bn(conv1d(x, P["w1"], P["b1"], 1),
                            P["g1"], P["be1"], P["m1"], P["v1"])))
    h = pool(jax.nn.relu(bn(conv1d(h, P["w2"], P["b2"], 2),
                            P["g2"], P["be2"], P["m2"], P["v2"])))
    pc = jnp.einsum("bcl,ocl->bo", h, P["wpc"]) + P["bpc"]
    p = pc.reshape(x.shape[0], 32, 8)
    u = jnp.einsum("bia,jad->bijd", p, P["Wdig"])          # (B, 32, 6, 16)
    b_ij = jnp.zeros((x.shape[0], 32, 6), jnp.float32)
    v = None
    for r in range(3):
        c = jax.nn.softmax(b_ij, axis=2)
        s = jnp.sum(c[..., None] * u, axis=1)              # (B, 6, 16)
        sn = jnp.sum(s * s, axis=-1, keepdims=True)
        v = sn / (1.0 + sn) / jnp.sqrt(sn + 1e-8) * s
        if r < 2:
            b_ij = b_ij + jnp.sum(u * v[:, None], axis=-1)
    lengths = jnp.sqrt(jnp.sum(v * v, axis=-1))
    return jax.nn.sigmoid(lengths)


if __name__ == "__main__":
    key = jax.random.PRNGKey(0)
    ks = jax.random.split(key, 16)
    f32 = jnp.float32
    P = dict(
        w1=0.3 * jax.random.normal(ks[0], (32, 6, 3), f32),
        b1=0.1 * jax.random.normal(ks[1], (32,), f32),
        g1=1.0 + 0.1 * jax.random.normal(ks[2], (32,), f32),
        be1=0.1 * jax.random.normal(ks[3], (32,), f32),
        m1=0.1 * jax.random.normal(ks[4], (32,), f32),
        v1=1.0 + 0.1 * jnp.abs(jax.random.normal(ks[5], (32,), f32)),
        w2=0.15 * jax.random.normal(ks[6], (64, 32, 5), f32),
        b2=0.1 * jax.random.normal(ks[7], (64,), f32),
        g2=1.0 + 0.1 * jax.random.normal(ks[8], (64,), f32),
        be2=0.1 * jax.random.normal(ks[9], (64,), f32),
        m2=0.1 * jax.random.normal(ks[10], (64,), f32),
        v2=1.0 + 0.1 * jnp.abs(jax.random.normal(ks[11], (64,), f32)),
        wpc=0.05 * jax.random.normal(ks[12], (256, 64, 15), f32),
        bpc=0.1 * jax.random.normal(ks[13], (256,), f32),
        Wdig=0.5 * jax.random.normal(ks[14], (6, 8, 16), f32),
    )
    # input_channels=6, sequence_length=60 (required by primary_caps k=15 after two pools)
    x = jax.random.normal(ks[15], (2, 6, 60), f32)

    fwd = jax.jit(pallas_forward)
    out = jax.block_until_ready(fwd(x, P))
    ref = jax.block_until_ready(reference_forward(x, P))

    assert out.shape == (2, 6)
    assert bool(jnp.all(jnp.isfinite(out)))
    assert bool(jnp.allclose(out, ref, atol=2e-3, rtol=2e-3)), (out, ref)
    print("KERNEL_OK")
</pallas_src>

<mosaic_0001>
module attributes {stable_mosaic.version = 11 : i64} {
  func.func @kernel(%arg0: i32, %arg1: memref<60x18xf32, #tpu.memory_space<vmem>>, %arg2: memref<60x18xf32, #tpu.memory_space<vmem>>, %arg3: memref<18x32xf32, #tpu.memory_space<vmem>>, %arg4: memref<1x32xf32, #tpu.memory_space<vmem>>, %arg5: memref<160x64xf32, #tpu.memory_space<vmem>>, %arg6: memref<1x64xf32, #tpu.memory_space<vmem>>, %arg7: memref<15x64x256xf32, #tpu.memory_space<vmem>>, %arg8: memref<1x256xf32, #tpu.memory_space<vmem>>, %arg9: memref<64x256xf32, #tpu.memory_space<vmem>>, %arg10: memref<256x96xf32, #tpu.memory_space<vmem>>, %arg11: memref<2x64xf32, #tpu.memory_space<vmem>>, %arg12: memref<64x2xf32, #tpu.memory_space<vmem>>, %arg13: memref<96x96xf32, #tpu.memory_space<vmem>>, %arg14: memref<96x6xf32, #tpu.memory_space<vmem>>, %arg15: memref<2x6xf32, #tpu.memory_space<vmem>>, %arg16: memref<2x17x32xf32, #tpu.memory_space<vmem>>, %arg17: memref<2x17x32xf32, #tpu.memory_space<vmem>>) attributes {dimension_semantics = [#tpu.dimension_semantics<parallel>], iteration_bounds = array<i64: 1>, scalar_prefetch = 0 : i64, scratch_operands = 2 : i64, tpu.core_type = #tpu.core_type<tc>, window_params = [{transform_indices = @transform_0, window_bounds = array<i64: 60, 18>}, {transform_indices = @transform_1, window_bounds = array<i64: 60, 18>}, {pipeline_mode = #tpu.pipeline_mode<synchronous>, transform_indices = @transform_2, window_bounds = array<i64: 18, 32>}, {pipeline_mode = #tpu.pipeline_mode<synchronous>, transform_indices = @transform_3, window_bounds = array<i64: 1, 32>}, {pipeline_mode = #tpu.pipeline_mode<synchronous>, transform_indices = @transform_4, window_bounds = array<i64: 160, 64>}, {pipeline_mode = #tpu.pipeline_mode<synchronous>, transform_indices = @transform_5, window_bounds = array<i64: 1, 64>}, {pipeline_mode = #tpu.pipeline_mode<synchronous>, transform_indices = @transform_6, window_bounds = array<i64: 15, 64, 256>}, {pipeline_mode = #tpu.pipeline_mode<synchronous>, transform_indices = @transform_7, window_bounds = array<i64: 1, 256>}, {pipeline_mode = #tpu.pipeline_mode<synchronous>, transform_indices = @transform_8, window_bounds = array<i64: 64, 256>}, {pipeline_mode = #tpu.pipeline_mode<synchronous>, transform_indices = @transform_9, window_bounds = array<i64: 256, 96>}, {pipeline_mode = #tpu.pipeline_mode<synchronous>, transform_indices = @transform_10, window_bounds = array<i64: 2, 64>}, {pipeline_mode = #tpu.pipeline_mode<synchronous>, transform_indices = @transform_11, window_bounds = array<i64: 64, 2>}, {pipeline_mode = #tpu.pipeline_mode<synchronous>, transform_indices = @transform_12, window_bounds = array<i64: 96, 96>}, {pipeline_mode = #tpu.pipeline_mode<synchronous>, transform_indices = @transform_13, window_bounds = array<i64: 96, 6>}, {transform_indices = @transform_14, window_bounds = array<i64: 2, 6>}]} {
    %c0 = arith.constant 0 : index
    %c0_0 = arith.constant 0 : index
    %0 = vector.load %arg3[%c0, %c0_0] : memref<18x32xf32, #tpu.memory_space<vmem>>, vector<18x32xf32>
    %c0_1 = arith.constant 0 : index
    %c0_2 = arith.constant 0 : index
    %1 = vector.load %arg4[%c0_1, %c0_2] : memref<1x32xf32, #tpu.memory_space<vmem>>, vector<1x32xf32>
    %c0_3 = arith.constant 0 : index
    %c0_4 = arith.constant 0 : index
    %2 = vector.load %arg1[%c0_3, %c0_4] : memref<60x18xf32, #tpu.memory_space<vmem>>, vector<60x18xf32>
    %cst = arith.constant dense<0.000000e+00> : vector<60x32xf32>
    %3 = tpu.matmul %2, %0, %cst {dimension_numbers = #tpu.dot_dimension_numbers<[1], [0], [0], [1], [0, 0, 1, 1], [], []>} : vector<60x18xf32>, vector<18x32xf32>, vector<60x32xf32> -> vector<60x32xf32>
    %4 = vector.broadcast %1 : vector<1x32xf32> to vector<60x32xf32>
    %5 = arith.addf %3, %4 : vector<60x32xf32>
    %cst_5 = arith.constant 0.000000e+00 : f32
    %6 = vector.broadcast %cst_5 : f32 to vector<60x32xf32>
    %7 = arith.maximumf %5, %6 : vector<60x32xf32>
    %c0_6 = arith.constant 0 : index
    %c0_7 = arith.constant 0 : index
    %8 = vector.load %arg2[%c0_6, %c0_7] : memref<60x18xf32, #tpu.memory_space<vmem>>, vector<60x18xf32>
    %cst_8 = arith.constant dense<0.000000e+00> : vector<60x32xf32>
    %9 = tpu.matmul %8, %0, %cst_8 {dimension_numbers = #tpu.dot_dimension_numbers<[1], [0], [0], [1], [0, 0, 1, 1], [], []>} : vector<60x18xf32>, vector<18x32xf32>, vector<60x32xf32> -> vector<60x32xf32>
    %10 = vector.broadcast %1 : vector<1x32xf32> to vector<60x32xf32>
    %11 = arith.addf %9, %10 : vector<60x32xf32>
    %cst_9 = arith.constant 0.000000e+00 : f32
    %12 = vector.broadcast %cst_9 : f32 to vector<60x32xf32>
    %13 = arith.maximumf %11, %12 : vector<60x32xf32>
    %14 = arith.maximumf %7, %13 : vector<60x32xf32>
    %cst_10 = arith.constant 0.000000e+00 : f32
    %15 = vector.broadcast %cst_10 : f32 to vector<2x17x32xf32>
    %c0_11 = arith.constant 0 : index
    %c0_12 = arith.constant 0 : index
    %c0_13 = arith.constant 0 : index
    %16 = vector.load %arg16[%c0_11, %c0_12, %c0_13] : memref<2x17x32xf32, #tpu.memory_space<vmem>>, vector<2x17x32xf32>
    tpu.vector_store %arg16[%c0_11, %c0_12, %c0_13], %15 {strides = array<i32>} : memref<2x17x32xf32, #tpu.memory_space<vmem>>, vector<2x17x32xf32>,
    %cst_14 = arith.constant 0.000000e+00 : f32
    %17 = vector.broadcast %cst_14 : f32 to vector<2x17x32xf32>
    %c0_15 = arith.constant 0 : index
    %c0_16 = arith.constant 0 : index
    %c0_17 = arith.constant 0 : index
    %18 = vector.load %arg17[%c0_15, %c0_16, %c0_17] : memref<2x17x32xf32, #tpu.memory_space<vmem>>, vector<2x17x32xf32>
    tpu.vector_store %arg17[%c0_15, %c0_16, %c0_17], %17 {strides = array<i32>} : memref<2x17x32xf32, #tpu.memory_space<vmem>>, vector<2x17x32xf32>,
    %19 = vector.extract_strided_slice %14 {offsets = [0, 0], sizes = [15, 32], strides = [1, 1]} : vector<60x32xf32> to vector<15x32xf32>
    %c0_18 = arith.constant 0 : index
    %c1 = arith.constant 1 : index
    %c0_19 = arith.constant 0 : index
    %20 = vector.load %arg16[%c0_18, %c1, %c0_19] : memref<2x17x32xf32, #tpu.memory_space<vmem>>, vector<1x15x32xf32>
    %21 = vector.shape_cast %20 : vector<1x15x32xf32> to vector<15x32xf32>
    %22 = vector.shape_cast %19 : vector<15x32xf32> to vector<1x15x32xf32>
    tpu.vector_store %arg16[%c0_18, %c1, %c0_19], %22 {strides = array<i32>} : memref<2x17x32xf32, #tpu.memory_space<vmem>>, vector<1x15x32xf32>,
    %23 = vector.extract_strided_slice %14 {offsets = [15, 0], sizes = [15, 32], strides = [1, 1]} : vector<60x32xf32> to vector<15x32xf32>
    %c0_20 = arith.constant 0 : index
    %c1_21 = arith.constant 1 : index
    %c0_22 = arith.constant 0 : index
    %24 = vector.load %arg17[%c0_20, %c1_21, %c0_22] : memref<2x17x32xf32, #tpu.memory_space<vmem>>, vector<1x15x32xf32>
    %25 = vector.shape_cast %24 : vector<1x15x32xf32> to vector<15x32xf32>
    %26 = vector.shape_cast %23 : vector<15x32xf32> to vector<1x15x32xf32>
    tpu.vector_store %arg17[%c0_20, %c1_21, %c0_22], %26 {strides = array<i32>} : memref<2x17x32xf32, #tpu.memory_space<vmem>>, vector<1x15x32xf32>,
    %27 = vector.extract_strided_slice %14 {offsets = [30, 0], sizes = [15, 32], strides = [1, 1]} : vector<60x32xf32> to vector<15x32xf32>
    %c1_23 = arith.constant 1 : index
    %c1_24 = arith.constant 1 : index
    %c0_25 = arith.constant 0 : index
    %28 = vector.load %arg16[%c1_23, %c1_24, %c0_25] : memref<2x17x32xf32, #tpu.memory_space<vmem>>, vector<1x15x32xf32>
    %29 = vector.shape_cast %28 : vector<1x15x32xf32> to vector<15x32xf32>
    %30 = vector.shape_cast %27 : vector<15x32xf32> to vector<1x15x32xf32>
    tpu.vector_store %arg16[%c1_23, %c1_24, %c0_25], %30 {strides = array<i32>} : memref<2x17x32xf32, #tpu.memory_space<vmem>>, vector<1x15x32xf32>,
    %31 = vector.extract_strided_slice %14 {offsets = [45, 0], sizes = [15, 32], strides = [1, 1]} : vector<60x32xf32> to vector<15x32xf32>
    %c1_26 = arith.constant 1 : index
    %c1_27 = arith.constant 1 : index
    %c0_28 = arith.constant 0 : index
    %32 = vector.load %arg17[%c1_26, %c1_27, %c0_28] : memref<2x17x32xf32, #tpu.memory_space<vmem>>, vector<1x15x32xf32>
    %33 = vector.shape_cast %32 : vector<1x15x32xf32> to vector<15x32xf32>
    %34 = vector.shape_cast %31 : vector<15x32xf32> to vector<1x15x32xf32>
    tpu.vector_store %arg17[%c1_26, %c1_27, %c0_28], %34 {strides = array<i32>} : memref<2x17x32xf32, #tpu.memory_space<vmem>>, vector<1x15x32xf32>,
    %c0_29 = arith.constant 0 : index
    %c0_30 = arith.constant 0 : index
    %35 = vector.load %arg5[%c0_29, %c0_30] : memref<160x64xf32, #tpu.memory_space<vmem>>, vector<160x64xf32>
    %c0_31 = arith.constant 0 : index
    %c0_32 = arith.constant 0 : index
    %36 = vector.load %arg6[%c0_31, %c0_32] : memref<1x64xf32, #tpu.memory_space<vmem>>, vector<1x64xf32>
    %c0_33 = arith.constant 0 : index
    %c0_34 = arith.constant 0 : index
    %c0_35 = arith.constant 0 : index
    %37 = vector.load %arg16[%c0_33, %c0_34, %c0_35] : memref<2x17x32xf32, #tpu.memory_space<vmem>>, vector<1x15x32xf32>
    %38 = vector.shape_cast %37 : vector<1x15x32xf32> to vector<15x32xf32>
    %c0_36 = arith.constant 0 : index
    %c1_37 = arith.constant 1 : index
    %c0_38 = arith.constant 0 : index
    %39 = vector.load %arg16[%c0_36, %c1_37, %c0_38] : memref<2x17x32xf32, #tpu.memory_space<vmem>>, vector<1x15x32xf32>
    %40 = vector.shape_cast %39 : vector<1x15x32xf32> to vector<15x32xf32>
    %c0_39 = arith.constant 0 : index
    %c2 = arith.constant 2 : index
    %c0_40 = arith.constant 0 : index
    %41 = vector.load %arg16[%c0_39, %c2, %c0_40] : memref<2x17x32xf32, #tpu.memory_space<vmem>>, vector<1x15x32xf32>
    %42 = vector.shape_cast %41 : vector<1x15x32xf32> to vector<15x32xf32>
    %c0_41 = arith.constant 0 : index
    %c0_42 = arith.constant 0 : index
    %c0_43 = arith.constant 0 : index
    %43 = vector.load %arg17[%c0_41, %c0_42, %c0_43] : memref<2x17x32xf32, #tpu.memory_space<vmem>>, vector<1x15x32xf32>
    %44 = vector.shape_cast %43 : vector<1x15x32xf32> to vector<15x32xf32>
    %c0_44 = arith.constant 0 : index
    %c1_45 = arith.constant 1 : index
    %c0_46 = arith.constant 0 : index
    %45 = vector.load %arg17[%c0_44, %c1_45, %c0_46] : memref<2x17x32xf32, #tpu.memory_space<vmem>>, vector<1x15x32xf32>
    %46 = vector.shape_cast %45 : vector<1x15x32xf32> to vector<15x32xf32>
    %c0_47 = arith.constant 0 : index
    %c2_48 = arith.constant 2 : index
    %c0_49 = arith.constant 0 : index
    %47 = vector.load %arg17[%c0_47, %c2_48, %c0_49] : memref<2x17x32xf32, #tpu.memory_space<vmem>>, vector<1x15x32xf32>
    %48 = vector.shape_cast %47 : vector<1x15x32xf32> to vector<15x32xf32>
    %49 = tpu.concatenate %38, %44, %40, %46, %42 in 1 : vector<15x32xf32>, vector<15x32xf32>, vector<15x32xf32>, vector<15x32xf32>, vector<15x32xf32> -> vector<15x160xf32>
    %50 = tpu.concatenate %44, %40, %46, %42, %48 in 1 : vector<15x32xf32>, vector<15x32xf32>, vector<15x32xf32>, vector<15x32xf32>, vector<15x32xf32> -> vector<15x160xf32>
    %cst_50 = arith.constant dense<0.000000e+00> : vector<15x64xf32>
    %51 = tpu.matmul %49, %35, %cst_50 {dimension_numbers = #tpu.dot_dimension_numbers<[1], [0], [0], [1], [0, 0, 1, 1], [], []>} : vector<15x160xf32>, vector<160x64xf32>, vector<15x64xf32> -> vector<15x64xf32>
    %52 = vector.broadcast %36 : vector<1x64xf32> to vector<15x64xf32>
    %53 = arith.addf %51, %52 : vector<15x64xf32>
    %cst_51 = arith.constant 0.000000e+00 : f32
    %54 = vector.broadcast %cst_51 : f32 to vector<15x64xf32>
    %55 = arith.maximumf %53, %54 : vector<15x64xf32>
    %cst_52 = arith.constant dense<0.000000e+00> : vector<15x64xf32>
    %56 = tpu.matmul %50, %35, %cst_52 {dimension_numbers = #tpu.dot_dimension_numbers<[1], [0], [0], [1], [0, 0, 1, 1], [], []>} : vector<15x160xf32>, vector<160x64xf32>, vector<15x64xf32> -> vector<15x64xf32>
    %57 = vector.broadcast %36 : vector<1x64xf32> to vector<15x64xf32>
    %58 = arith.addf %56, %57 : vector<15x64xf32>
    %cst_53 = arith.constant 0.000000e+00 : f32
    %59 = vector.broadcast %cst_53 : f32 to vector<15x64xf32>
    %60 = arith.maximumf %58, %59 : vector<15x64xf32>
    %61 = arith.maximumf %55, %60 : vector<15x64xf32>
    %c1_54 = arith.constant 1 : index
    %c0_55 = arith.constant 0 : index
    %c0_56 = arith.constant 0 : index
    %62 = vector.load %arg16[%c1_54, %c0_55, %c0_56] : memref<2x17x32xf32, #tpu.memory_space<vmem>>, vector<1x15x32xf32>
    %63 = vector.shape_cast %62 : vector<1x15x32xf32> to vector<15x32xf32>
    %c1_57 = arith.constant 1 : index
    %c1_58 = arith.constant 1 : index
    %c0_59 = arith.constant 0 : index
    %64 = vector.load %arg16[%c1_57, %c1_58, %c0_59] : memref<2x17x32xf32, #tpu.memory_space<vmem>>, vector<1x15x32xf32>
    %65 = vector.shape_cast %64 : vector<1x15x32xf32> to vector<15x32xf32>
    %c1_60 = arith.constant 1 : index
    %c2_61 = arith.constant 2 : index
    %c0_62 = arith.constant 0 : index
    %66 = vector.load %arg16[%c1_60, %c2_61, %c0_62] : memref<2x17x32xf32, #tpu.memory_space<vmem>>, vector<1x15x32xf32>
    %67 = vector.shape_cast %66 : vector<1x15x32xf32> to vector<15x32xf32>
    %c1_63 = arith.constant 1 : index
    %c0_64 = arith.constant 0 : index
    %c0_65 = arith.constant 0 : index
    %68 = vector.load %arg17[%c1_63, %c0_64, %c0_65] : memref<2x17x32xf32, #tpu.memory_space<vmem>>, vector<1x15x32xf32>
    %69 = vector.shape_cast %68 : vector<1x15x32xf32> to vector<15x32xf32>
    %c1_66 = arith.constant 1 : index
    %c1_67 = arith.constant 1 : index
    %c0_68 = arith.constant 0 : index
    %70 = vector.load %arg17[%c1_66, %c1_67, %c0_68] : memref<2x17x32xf32, #tpu.memory_space<vmem>>, vector<1x15x32xf32>
    %71 = vector.shape_cast %70 : vector<1x15x32xf32> to vector<15x32xf32>
    %c1_69 = arith.constant 1 : index
    %c2_70 = arith.constant 2 : index
    %c0_71 = arith.constant 0 : index
    %72 = vector.load %arg17[%c1_69, %c2_70, %c0_71] : memref<2x17x32xf32, #tpu.memory_space<vmem>>, vector<1x15x32xf32>
    %73 = vector.shape_cast %72 : vector<1x15x32xf32> to vector<15x32xf32>
    %74 = tpu.concatenate %63, %69, %65, %71, %67 in 1 : vector<15x32xf32>, vector<15x32xf32>, vector<15x32xf32>, vector<15x32xf32>, vector<15x32xf32> -> vector<15x160xf32>
    %75 = tpu.concatenate %69, %65, %71, %67, %73 in 1 : vector<15x32xf32>, vector<15x32xf32>, vector<15x32xf32>, vector<15x32xf32>, vector<15x32xf32> -> vector<15x160xf32>
    %cst_72 = arith.constant dense<0.000000e+00> : vector<15x64xf32>
    %76 = tpu.matmul %74, %35, %cst_72 {dimension_numbers = #tpu.dot_dimension_numbers<[1], [0], [0], [1], [0, 0, 1, 1], [], []>} : vector<15x160xf32>, vector<160x64xf32>, vector<15x64xf32> -> vector<15x64xf32>
    %77 = vector.broadcast %36 : vector<1x64xf32> to vector<15x64xf32>
    %78 = arith.addf %76, %77 : vector<15x64xf32>
    %cst_73 = arith.constant 0.000000e+00 : f32
    %79 = vector.broadcast %cst_73 : f32 to vector<15x64xf32>
    %80 = arith.maximumf %78, %79 : vector<15x64xf32>
    %cst_74 = arith.constant dense<0.000000e+00> : vector<15x64xf32>
    %81 = tpu.matmul %75, %35, %cst_74 {dimension_numbers = #tpu.dot_dimension_numbers<[1], [0], [0], [1], [0, 0, 1, 1], [], []>} : vector<15x160xf32>, vector<160x64xf32>, vector<15x64xf32> -> vector<15x64xf32>
    %82 = vector.broadcast %36 : vector<1x64xf32> to vector<15x64xf32>
    %83 = arith.addf %81, %82 : vector<15x64xf32>
    %cst_75 = arith.constant 0.000000e+00 : f32
    %84 = vector.broadcast %cst_75 : f32 to vector<15x64xf32>
    %85 = arith.maximumf %83, %84 : vector<15x64xf32>
    %86 = arith.maximumf %80, %85 : vector<15x64xf32>
    %87 = tpu.iota {dimensions = array<i32: 0>} : vector<2x1xi32>
    %c0_i32 = arith.constant 0 : i32
    %88 = vector.broadcast %c0_i32 : i32 to vector<2x1xi32>
    %89 = arith.cmpi eq, %87, %88 : vector<2x1xi32>
    %90 = arith.extui %89 : vector<2x1xi1> to vector<2x1xi32>
    %91 = arith.sitofp %90 : vector<2x1xi32> to vector<2x1xf32>
    %c1_i32 = arith.constant 1 : i32
    %92 = vector.broadcast %c1_i32 : i32 to vector<2x1xi32>
    %93 = arith.cmpi eq, %87, %92 : vector<2x1xi32>
    %94 = arith.extui %93 : vector<2x1xi1> to vector<2x1xi32>
    %95 = arith.sitofp %94 : vector<2x1xi32> to vector<2x1xf32>
    %cst_76 = arith.constant 0.000000e+00 : f32
    %96 = vector.broadcast %cst_76 : f32 to vector<2x256xf32>
    %97 = vector.extract_strided_slice %61 {offsets = [0, 0], sizes = [1, 64], strides = [1, 1]} : vector<15x64xf32> to vector<1x64xf32>
    %98 = vector.broadcast %91 : vector<2x1xf32> to vector<2x64xf32>
    %99 = vector.broadcast %97 : vector<1x64xf32> to vector<2x64xf32>
    %100 = arith.mulf %98, %99 : vector<2x64xf32>
    %101 = vector.extract_strided_slice %86 {offsets = [0, 0], sizes = [1, 64], strides = [1, 1]} : vector<15x64xf32> to vector<1x64xf32>
    %102 = vector.broadcast %95 : vector<2x1xf32> to vector<2x64xf32>
    %103 = vector.broadcast %101 : vector<1x64xf32> to vector<2x64xf32>
    %104 = arith.mulf %102, %103 : vector<2x64xf32>
    %105 = arith.addf %100, %104 : vector<2x64xf32>
    %c0_77 = arith.constant 0 : index
    %c0_78 = arith.constant 0 : index
    %c0_79 = arith.constant 0 : index
    %106 = vector.load %arg7[%c0_77, %c0_78, %c0_79] : memref<15x64x256xf32, #tpu.memory_space<vmem>>, vector<1x64x256xf32>
    %107 = vector.shape_cast %106 : vector<1x64x256xf32> to vector<64x256xf32>
    %cst_80 = arith.constant dense<0.000000e+00> : vector<2x256xf32>
    %108 = tpu.matmul %105, %107, %cst_80 {dimension_numbers = #tpu.dot_dimension_numbers<[1], [0], [0], [1], [0, 0, 1, 1], [], []>} : vector<2x64xf32>, vector<64x256xf32>, vector<2x256xf32> -> vector<2x256xf32>
    %109 = arith.addf %96, %108 : vector<2x256xf32>
    %110 = vector.extract_strided_slice %61 {offsets = [1, 0], sizes = [1, 64], strides = [1, 1]} : vector<15x64xf32> to vector<1x64xf32>
    %111 = vector.broadcast %91 : vector<2x1xf32> to vector<2x64xf32>
    %112 = vector.broadcast %110 : vector<1x64xf32> to vector<2x64xf32>
    %113 = arith.mulf %111, %112 : vector<2x64xf32>
    %114 = vector.extract_strided_slice %86 {offsets = [1, 0], sizes = [1, 64], strides = [1, 1]} : vector<15x64xf32> to vector<1x64xf32>
    %115 = vector.broadcast %95 : vector<2x1xf32> to vector<2x64xf32>
    %116 = vector.broadcast %114 : vector<1x64xf32> to vector<2x64xf32>
    %117 = arith.mulf %115, %116 : vector<2x64xf32>
    %118 = arith.addf %113, %117 : vector<2x64xf32>
    %c1_81 = arith.constant 1 : index
    %c0_82 = arith.constant 0 : index
    %c0_83 = arith.constant 0 : index
    %119 = vector.load %arg7[%c1_81, %c0_82, %c0_83] : memref<15x64x256xf32, #tpu.memory_space<vmem>>, vector<1x64x256xf32>
    %120 = vector.shape_cast %119 : vector<1x64x256xf32> to vector<64x256xf32>
    %cst_84 = arith.constant dense<0.000000e+00> : vector<2x256xf32>
    %121 = tpu.matmul %118, %120, %cst_84 {dimension_numbers = #tpu.dot_dimension_numbers<[1], [0], [0], [1], [0, 0, 1, 1], [], []>} : vector<2x64xf32>, vector<64x256xf32>, vector<2x256xf32> -> vector<2x256xf32>
    %122 = arith.addf %109, %121 : vector<2x256xf32>
    %123 = vector.extract_strided_slice %61 {offsets = [2, 0], sizes = [1, 64], strides = [1, 1]} : vector<15x64xf32> to vector<1x64xf32>
    %124 = vector.broadcast %91 : vector<2x1xf32> to vector<2x64xf32>
    %125 = vector.broadcast %123 : vector<1x64xf32> to vector<2x64xf32>
    %126 = arith.mulf %124, %125 : vector<2x64xf32>
    %127 = vector.extract_strided_slice %86 {offsets = [2, 0], sizes = [1, 64], strides = [1, 1]} : vector<15x64xf32> to vector<1x64xf32>
    %128 = vector.broadcast %95 : vector<2x1xf32> to vector<2x64xf32>
    %129 = vector.broadcast %127 : vector<1x64xf32> to vector<2x64xf32>
    %130 = arith.mulf %128, %129 : vector<2x64xf32>
    %131 = arith.addf %126, %130 : vector<2x64xf32>
    %c2_85 = arith.constant 2 : index
    %c0_86 = arith.constant 0 : index
    %c0_87 = arith.constant 0 : index
    %132 = vector.load %arg7[%c2_85, %c0_86, %c0_87] : memref<15x64x256xf32, #tpu.memory_space<vmem>>, vector<1x64x256xf32>
    %133 = vector.shape_cast %132 : vector<1x64x256xf32> to vector<64x256xf32>
    %cst_88 = arith.constant dense<0.000000e+00> : vector<2x256xf32>
    %134 = tpu.matmul %131, %133, %cst_88 {dimension_numbers = #tpu.dot_dimension_numbers<[1], [0], [0], [1], [0, 0, 1, 1], [], []>} : vector<2x64xf32>, vector<64x256xf32>, vector<2x256xf32> -> vector<2x256xf32>
    %135 = arith.addf %122, %134 : vector<2x256xf32>
    %136 = vector.extract_strided_slice %61 {offsets = [3, 0], sizes = [1, 64], strides = [1, 1]} : vector<15x64xf32> to vector<1x64xf32>
    %137 = vector.broadcast %91 : vector<2x1xf32> to vector<2x64xf32>
    %138 = vector.broadcast %136 : vector<1x64xf32> to vector<2x64xf32>
    %139 = arith.mulf %137, %138 : vector<2x64xf32>
    %140 = vector.extract_strided_slice %86 {offsets = [3, 0], sizes = [1, 64], strides = [1, 1]} : vector<15x64xf32> to vector<1x64xf32>
    %141 = vector.broadcast %95 : vector<2x1xf32> to vector<2x64xf32>
    %142 = vector.broadcast %140 : vector<1x64xf32> to vector<2x64xf32>
    %143 = arith.mulf %141, %142 : vector<2x64xf32>
    %144 = arith.addf %139, %143 : vector<2x64xf32>
    %c3 = arith.constant 3 : index
    %c0_89 = arith.constant 0 : index
    %c0_90 = arith.constant 0 : index
    %145 = vector.load %arg7[%c3, %c0_89, %c0_90] : memref<15x64x256xf32, #tpu.memory_space<vmem>>, vector<1x64x256xf32>
    %146 = vector.shape_cast %145 : vector<1x64x256xf32> to vector<64x256xf32>
    %cst_91 = arith.constant dense<0.000000e+00> : vector<2x256xf32>
    %147 = tpu.matmul %144, %146, %cst_91 {dimension_numbers = #tpu.dot_dimension_numbers<[1], [0], [0], [1], [0, 0, 1, 1], [], []>} : vector<2x64xf32>, vector<64x256xf32>, vector<2x256xf32> -> vector<2x256xf32>
    %148 = arith.addf %135, %147 : vector<2x256xf32>
    %149 = vector.extract_strided_slice %61 {offsets = [4, 0], sizes = [1, 64], strides = [1, 1]} : vector<15x64xf32> to vector<1x64xf32>
    %150 = vector.broadcast %91 : vector<2x1xf32> to vector<2x64xf32>
    %151 = vector.broadcast %149 : vector<1x64xf32> to vector<2x64xf32>
    %152 = arith.mulf %150, %151 : vector<2x64xf32>
    %153 = vector.extract_strided_slice %86 {offsets = [4, 0], sizes = [1, 64], strides = [1, 1]} : vector<15x64xf32> to vector<1x64xf32>
    %154 = vector.broadcast %95 : vector<2x1xf32> to vector<2x64xf32>
    %155 = vector.broadcast %153 : vector<1x64xf32> to vector<2x64xf32>
    %156 = arith.mulf %154, %155 : vector<2x64xf32>
    %157 = arith.addf %152, %156 : vector<2x64xf32>
    %c4 = arith.constant 4 : index
    %c0_92 = arith.constant 0 : index
    %c0_93 = arith.constant 0 : index
    %158 = vector.load %arg7[%c4, %c0_92, %c0_93] : memref<15x64x256xf32, #tpu.memory_space<vmem>>, vector<1x64x256xf32>
    %159 = vector.shape_cast %158 : vector<1x64x256xf32> to vector<64x256xf32>
    %cst_94 = arith.constant dense<0.000000e+00> : vector<2x256xf32>
    %160 = tpu.matmul %157, %159, %cst_94 {dimension_numbers = #tpu.dot_dimension_numbers<[1], [0], [0], [1], [0, 0, 1, 1], [], []>} : vector<2x64xf32>, vector<64x256xf32>, vector<2x256xf32> -> vector<2x256xf32>
    %161 = arith.addf %148, %160 : vector<2x256xf32>
    %162 = vector.extract_strided_slice %61 {offsets = [5, 0], sizes = [1, 64], strides = [1, 1]} : vector<15x64xf32> to vector<1x64xf32>
    %163 = vector.broadcast %91 : vector<2x1xf32> to vector<2x64xf32>
    %164 = vector.broadcast %162 : vector<1x64xf32> to vector<2x64xf32>
    %165 = arith.mulf %163, %164 : vector<2x64xf32>
    %166 = vector.extract_strided_slice %86 {offsets = [5, 0], sizes = [1, 64], strides = [1, 1]} : vector<15x64xf32> to vector<1x64xf32>
    %167 = vector.broadcast %95 : vector<2x1xf32> to vector<2x64xf32>
    %168 = vector.broadcast %166 : vector<1x64xf32> to vector<2x64xf32>
    %169 = arith.mulf %167, %168 : vector<2x64xf32>
    %170 = arith.addf %165, %169 : vector<2x64xf32>
    %c5 = arith.constant 5 : index
    %c0_95 = arith.constant 0 : index
    %c0_96 = arith.constant 0 : index
    %171 = vector.load %arg7[%c5, %c0_95, %c0_96] : memref<15x64x256xf32, #tpu.memory_space<vmem>>, vector<1x64x256xf32>
    %172 = vector.shape_cast %171 : vector<1x64x256xf32> to vector<64x256xf32>
    %cst_97 = arith.constant dense<0.000000e+00> : vector<2x256xf32>
    %173 = tpu.matmul %170, %172, %cst_97 {dimension_numbers = #tpu.dot_dimension_numbers<[1], [0], [0], [1], [0, 0, 1, 1], [], []>} : vector<2x64xf32>, vector<64x256xf32>, vector<2x256xf32> -> vector<2x256xf32>
    %174 = arith.addf %161, %173 : vector<2x256xf32>
    %175 = vector.extract_strided_slice %61 {offsets = [6, 0], sizes = [1, 64], strides = [1, 1]} : vector<15x64xf32> to vector<1x64xf32>
    %176 = vector.broadcast %91 : vector<2x1xf32> to vector<2x64xf32>
    %177 = vector.broadcast %175 : vector<1x64xf32> to vector<2x64xf32>
    %178 = arith.mulf %176, %177 : vector<2x64xf32>
    %179 = vector.extract_strided_slice %86 {offsets = [6, 0], sizes = [1, 64], strides = [1, 1]} : vector<15x64xf32> to vector<1x64xf32>
    %180 = vector.broadcast %95 : vector<2x1xf32> to vector<2x64xf32>
    %181 = vector.broadcast %179 : vector<1x64xf32> to vector<2x64xf32>
    %182 = arith.mulf %180, %181 : vector<2x64xf32>
    %183 = arith.addf %178, %182 : vector<2x64xf32>
    %c6 = arith.constant 6 : index
    %c0_98 = arith.constant 0 : index
    %c0_99 = arith.constant 0 : index
    %184 = vector.load %arg7[%c6, %c0_98, %c0_99] : memref<15x64x256xf32, #tpu.memory_space<vmem>>, vector<1x64x256xf32>
    %185 = vector.shape_cast %184 : vector<1x64x256xf32> to vector<64x256xf32>
    %cst_100 = arith.constant dense<0.000000e+00> : vector<2x256xf32>
    %186 = tpu.matmul %183, %185, %cst_100 {dimension_numbers = #tpu.dot_dimension_numbers<[1], [0], [0], [1], [0, 0, 1, 1], [], []>} : vector<2x64xf32>, vector<64x256xf32>, vector<2x256xf32> -> vector<2x256xf32>
    %187 = arith.addf %174, %186 : vector<2x256xf32>
    %188 = vector.extract_strided_slice %61 {offsets = [7, 0], sizes = [1, 64], strides = [1, 1]} : vector<15x64xf32> to vector<1x64xf32>
    %189 = vector.broadcast %91 : vector<2x1xf32> to vector<2x64xf32>
    %190 = vector.broadcast %188 : vector<1x64xf32> to vector<2x64xf32>
    %191 = arith.mulf %189, %190 : vector<2x64xf32>
    %192 = vector.extract_strided_slice %86 {offsets = [7, 0], sizes = [1, 64], strides = [1, 1]} : vector<15x64xf32> to vector<1x64xf32>
    %193 = vector.broadcast %95 : vector<2x1xf32> to vector<2x64xf32>
    %194 = vector.broadcast %192 : vector<1x64xf32> to vector<2x64xf32>
    %195 = arith.mulf %193, %194 : vector<2x64xf32>
    %196 = arith.addf %191, %195 : vector<2x64xf32>
    %c7 = arith.constant 7 : index
    %c0_101 = arith.constant 0 : index
    %c0_102 = arith.constant 0 : index
    %197 = vector.load %arg7[%c7, %c0_101, %c0_102] : memref<15x64x256xf32, #tpu.memory_space<vmem>>, vector<1x64x256xf32>
    %198 = vector.shape_cast %197 : vector<1x64x256xf32> to vector<64x256xf32>
    %cst_103 = arith.constant dense<0.000000e+00> : vector<2x256xf32>
    %199 = tpu.matmul %196, %198, %cst_103 {dimension_numbers = #tpu.dot_dimension_numbers<[1], [0], [0], [1], [0, 0, 1, 1], [], []>} : vector<2x64xf32>, vector<64x256xf32>, vector<2x256xf32> -> vector<2x256xf32>
    %200 = arith.addf %187, %199 : vector<2x256xf32>
    %201 = vector.extract_strided_slice %61 {offsets = [8, 0], sizes = [1, 64], strides = [1, 1]} : vector<15x64xf32> to vector<1x64xf32>
    %202 = vector.broadcast %91 : vector<2x1xf32> to vector<2x64xf32>
    %203 = vector.broadcast %201 : vector<1x64xf32> to vector<2x64xf32>
    %204 = arith.mulf %202, %203 : vector<2x64xf32>
    %205 = vector.extract_strided_slice %86 {offsets = [8, 0], sizes = [1, 64], strides = [1, 1]} : vector<15x64xf32> to vector<1x64xf32>
    %206 = vector.broadcast %95 : vector<2x1xf32> to vector<2x64xf32>
    %207 = vector.broadcast %205 : vector<1x64xf32> to vector<2x64xf32>
    %208 = arith.mulf %206, %207 : vector<2x64xf32>
    %209 = arith.addf %204, %208 : vector<2x64xf32>
    %c8 = arith.constant 8 : index
    %c0_104 = arith.constant 0 : index
    %c0_105 = arith.constant 0 : index
    %210 = vector.load %arg7[%c8, %c0_104, %c0_105] : memref<15x64x256xf32, #tpu.memory_space<vmem>>, vector<1x64x256xf32>
    %211 = vector.shape_cast %210 : vector<1x64x256xf32> to vector<64x256xf32>
    %cst_106 = arith.constant dense<0.000000e+00> : vector<2x256xf32>
    %212 = tpu.matmul %209, %211, %cst_106 {dimension_numbers = #tpu.dot_dimension_numbers<[1], [0], [0], [1], [0, 0, 1, 1], [], []>} : vector<2x64xf32>, vector<64x256xf32>, vector<2x256xf32> -> vector<2x256xf32>
    %213 = arith.addf %200, %212 : vector<2x256xf32>
    %214 = vector.extract_strided_slice %61 {offsets = [9, 0], sizes = [1, 64], strides = [1, 1]} : vector<15x64xf32> to vector<1x64xf32>
    %215 = vector.broadcast %91 : vector<2x1xf32> to vector<2x64xf32>
    %216 = vector.broadcast %214 : vector<1x64xf32> to vector<2x64xf32>
    %217 = arith.mulf %215, %216 : vector<2x64xf32>
    %218 = vector.extract_strided_slice %86 {offsets = [9, 0], sizes = [1, 64], strides = [1, 1]} : vector<15x64xf32> to vector<1x64xf32>
    %219 = vector.broadcast %95 : vector<2x1xf32> to vector<2x64xf32>
    %220 = vector.broadcast %218 : vector<1x64xf32> to vector<2x64xf32>
    %221 = arith.mulf %219, %220 : vector<2x64xf32>
    %222 = arith.addf %217, %221 : vector<2x64xf32>
    %c9 = arith.constant 9 : index
    %c0_107 = arith.constant 0 : index
    %c0_108 = arith.constant 0 : index
    %223 = vector.load %arg7[%c9, %c0_107, %c0_108] : memref<15x64x256xf32, #tpu.memory_space<vmem>>, vector<1x64x256xf32>
    %224 = vector.shape_cast %223 : vector<1x64x256xf32> to vector<64x256xf32>
    %cst_109 = arith.constant dense<0.000000e+00> : vector<2x256xf32>
    %225 = tpu.matmul %222, %224, %cst_109 {dimension_numbers = #tpu.dot_dimension_numbers<[1], [0], [0], [1], [0, 0, 1, 1], [], []>} : vector<2x64xf32>, vector<64x256xf32>, vector<2x256xf32> -> vector<2x256xf32>
    %226 = arith.addf %213, %225 : vector<2x256xf32>
    %227 = vector.extract_strided_slice %61 {offsets = [10, 0], sizes = [1, 64], strides = [1, 1]} : vector<15x64xf32> to vector<1x64xf32>
    %228 = vector.broadcast %91 : vector<2x1xf32> to vector<2x64xf32>
    %229 = vector.broadcast %227 : vector<1x64xf32> to vector<2x64xf32>
    %230 = arith.mulf %228, %229 : vector<2x64xf32>
    %231 = vector.extract_strided_slice %86 {offsets = [10, 0], sizes = [1, 64], strides = [1, 1]} : vector<15x64xf32> to vector<1x64xf32>
    %232 = vector.broadcast %95 : vector<2x1xf32> to vector<2x64xf32>
    %233 = vector.broadcast %231 : vector<1x64xf32> to vector<2x64xf32>
    %234 = arith.mulf %232, %233 : vector<2x64xf32>
    %235 = arith.addf %230, %234 : vector<2x64xf32>
    %c10 = arith.constant 10 : index
    %c0_110 = arith.constant 0 : index
    %c0_111 = arith.constant 0 : index
    %236 = vector.load %arg7[%c10, %c0_110, %c0_111] : memref<15x64x256xf32, #tpu.memory_space<vmem>>, vector<1x64x256xf32>
    %237 = vector.shape_cast %236 : vector<1x64x256xf32> to vector<64x256xf32>
    %cst_112 = arith.constant dense<0.000000e+00> : vector<2x256xf32>
    %238 = tpu.matmul %235, %237, %cst_112 {dimension_numbers = #tpu.dot_dimension_numbers<[1], [0], [0], [1], [0, 0, 1, 1], [], []>} : vector<2x64xf32>, vector<64x256xf32>, vector<2x256xf32> -> vector<2x256xf32>
    %239 = arith.addf %226, %238 : vector<2x256xf32>
    %240 = vector.extract_strided_slice %61 {offsets = [11, 0], sizes = [1, 64], strides = [1, 1]} : vector<15x64xf32> to vector<1x64xf32>
    %241 = vector.broadcast %91 : vector<2x1xf32> to vector<2x64xf32>
    %242 = vector.broadcast %240 : vector<1x64xf32> to vector<2x64xf32>
    %243 = arith.mulf %241, %242 : vector<2x64xf32>
    %244 = vector.extract_strided_slice %86 {offsets = [11, 0], sizes = [1, 64], strides = [1, 1]} : vector<15x64xf32> to vector<1x64xf32>
    %245 = vector.broadcast %95 : vector<2x1xf32> to vector<2x64xf32>
    %246 = vector.broadcast %244 : vector<1x64xf32> to vector<2x64xf32>
    %247 = arith.mulf %245, %246 : vector<2x64xf32>
    %248 = arith.addf %243, %247 : vector<2x64xf32>
    %c11 = arith.constant 11 : index
    %c0_113 = arith.constant 0 : index
    %c0_114 = arith.constant 0 : index
    %249 = vector.load %arg7[%c11, %c0_113, %c0_114] : memref<15x64x256xf32, #tpu.memory_space<vmem>>, vector<1x64x256xf32>
    %250 = vector.shape_cast %249 : vector<1x64x256xf32> to vector<64x256xf32>
    %cst_115 = arith.constant dense<0.000000e+00> : vector<2x256xf32>
    %251 = tpu.matmul %248, %250, %cst_115 {dimension_numbers = #tpu.dot_dimension_numbers<[1], [0], [0], [1], [0, 0, 1, 1], [], []>} : vector<2x64xf32>, vector<64x256xf32>, vector<2x256xf32> -> vector<2x256xf32>
    %252 = arith.addf %239, %251 : vector<2x256xf32>
    %253 = vector.extract_strided_slice %61 {offsets = [12, 0], sizes = [1, 64], strides = [1, 1]} : vector<15x64xf32> to vector<1x64xf32>
    %254 = vector.broadcast %91 : vector<2x1xf32> to vector<2x64xf32>
    %255 = vector.broadcast %253 : vector<1x64xf32> to vector<2x64xf32>
    %256 = arith.mulf %254, %255 : vector<2x64xf32>
    %257 = vector.extract_strided_slice %86 {offsets = [12, 0], sizes = [1, 64], strides = [1, 1]} : vector<15x64xf32> to vector<1x64xf32>
    %258 = vector.broadcast %95 : vector<2x1xf32> to vector<2x64xf32>
    %259 = vector.broadcast %257 : vector<1x64xf32> to vector<2x64xf32>
    %260 = arith.mulf %258, %259 : vector<2x64xf32>
    %261 = arith.addf %256, %260 : vector<2x64xf32>
    %c12 = arith.constant 12 : index
    %c0_116 = arith.constant 0 : index
    %c0_117 = arith.constant 0 : index
    %262 = vector.load %arg7[%c12, %c0_116, %c0_117] : memref<15x64x256xf32, #tpu.memory_space<vmem>>, vector<1x64x256xf32>
    %263 = vector.shape_cast %262 : vector<1x64x256xf32> to vector<64x256xf32>
    %cst_118 = arith.constant dense<0.000000e+00> : vector<2x256xf32>
    %264 = tpu.matmul %261, %263, %cst_118 {dimension_numbers = #tpu.dot_dimension_numbers<[1], [0], [0], [1], [0, 0, 1, 1], [], []>} : vector<2x64xf32>, vector<64x256xf32>, vector<2x256xf32> -> vector<2x256xf32>
    %265 = arith.addf %252, %264 : vector<2x256xf32>
    %266 = vector.extract_strided_slice %61 {offsets = [13, 0], sizes = [1, 64], strides = [1, 1]} : vector<15x64xf32> to vector<1x64xf32>
    %267 = vector.broadcast %91 : vector<2x1xf32> to vector<2x64xf32>
    %268 = vector.broadcast %266 : vector<1x64xf32> to vector<2x64xf32>
    %269 = arith.mulf %267, %268 : vector<2x64xf32>
    %270 = vector.extract_strided_slice %86 {offsets = [13, 0], sizes = [1, 64], strides = [1, 1]} : vector<15x64xf32> to vector<1x64xf32>
    %271 = vector.broadcast %95 : vector<2x1xf32> to vector<2x64xf32>
    %272 = vector.broadcast %270 : vector<1x64xf32> to vector<2x64xf32>
    %273 = arith.mulf %271, %272 : vector<2x64xf32>
    %274 = arith.addf %269, %273 : vector<2x64xf32>
    %c13 = arith.constant 13 : index
    %c0_119 = arith.constant 0 : index
    %c0_120 = arith.constant 0 : index
    %275 = vector.load %arg7[%c13, %c0_119, %c0_120] : memref<15x64x256xf32, #tpu.memory_space<vmem>>, vector<1x64x256xf32>
    %276 = vector.shape_cast %275 : vector<1x64x256xf32> to vector<64x256xf32>
    %cst_121 = arith.constant dense<0.000000e+00> : vector<2x256xf32>
    %277 = tpu.matmul %274, %276, %cst_121 {dimension_numbers = #tpu.dot_dimension_numbers<[1], [0], [0], [1], [0, 0, 1, 1], [], []>} : vector<2x64xf32>, vector<64x256xf32>, vector<2x256xf32> -> vector<2x256xf32>
    %278 = arith.addf %265, %277 : vector<2x256xf32>
    %279 = vector.extract_strided_slice %61 {offsets = [14, 0], sizes = [1, 64], strides = [1, 1]} : vector<15x64xf32> to vector<1x64xf32>
    %280 = vector.broadcast %91 : vector<2x1xf32> to vector<2x64xf32>
    %281 = vector.broadcast %279 : vector<1x64xf32> to vector<2x64xf32>
    %282 = arith.mulf %280, %281 : vector<2x64xf32>
    %283 = vector.extract_strided_slice %86 {offsets = [14, 0], sizes = [1, 64], strides = [1, 1]} : vector<15x64xf32> to vector<1x64xf32>
    %284 = vector.broadcast %95 : vector<2x1xf32> to vector<2x64xf32>
    %285 = vector.broadcast %283 : vector<1x64xf32> to vector<2x64xf32>
    %286 = arith.mulf %284, %285 : vector<2x64xf32>
    %287 = arith.addf %282, %286 : vector<2x64xf32>
    %c14 = arith.constant 14 : index
    %c0_122 = arith.constant 0 : index
    %c0_123 = arith.constant 0 : index
    %288 = vector.load %arg7[%c14, %c0_122, %c0_123] : memref<15x64x256xf32, #tpu.memory_space<vmem>>, vector<1x64x256xf32>
    %289 = vector.shape_cast %288 : vector<1x64x256xf32> to vector<64x256xf32>
    %cst_124 = arith.constant dense<0.000000e+00> : vector<2x256xf32>
    %290 = tpu.matmul %287, %289, %cst_124 {dimension_numbers = #tpu.dot_dimension_numbers<[1], [0], [0], [1], [0, 0, 1, 1], [], []>} : vector<2x64xf32>, vector<64x256xf32>, vector<2x256xf32> -> vector<2x256xf32>
    %291 = arith.addf %278, %290 : vector<2x256xf32>
    %c0_125 = arith.constant 0 : index
    %c0_126 = arith.constant 0 : index
    %292 = vector.load %arg8[%c0_125, %c0_126] : memref<1x256xf32, #tpu.memory_space<vmem>>, vector<1x256xf32>
    %293 = vector.broadcast %292 : vector<1x256xf32> to vector<2x256xf32>
    %294 = arith.addf %291, %293 : vector<2x256xf32>
    %c0_127 = arith.constant 0 : index
    %c0_128 = arith.constant 0 : index
    %295 = vector.load %arg11[%c0_127, %c0_128] : memref<2x64xf32, #tpu.memory_space<vmem>>, vector<2x64xf32>
    %c0_129 = arith.constant 0 : index
    %c0_130 = arith.constant 0 : index
    %296 = vector.load %arg12[%c0_129, %c0_130] : memref<64x2xf32, #tpu.memory_space<vmem>>, vector<64x2xf32>
    %c0_131 = arith.constant 0 : index
    %c0_132 = arith.constant 0 : index
    %297 = vector.load %arg13[%c0_131, %c0_132] : memref<96x96xf32, #tpu.memory_space<vmem>>, vector<96x96xf32>
    %cst_133 = arith.constant dense<0.000000e+00> : vector<64x256xf32>
    %298 = tpu.matmul %296, %294, %cst_133 {dimension_numbers = #tpu.dot_dimension_numbers<[1], [0], [0], [1], [0, 0, 1, 1], [], []>} : vector<64x2xf32>, vector<2x256xf32>, vector<64x256xf32> -> vector<64x256xf32>
    %c0_134 = arith.constant 0 : index
    %c0_135 = arith.constant 0 : index
    %299 = vector.load %arg9[%c0_134, %c0_135] : memref<64x256xf32, #tpu.memory_space<vmem>>, vector<64x256xf32>
    %300 = arith.mulf %299, %298 : vector<64x256xf32>
    %c0_136 = arith.constant 0 : index
    %c0_137 = arith.constant 0 : index
    %301 = vector.load %arg10[%c0_136, %c0_137] : memref<256x96xf32, #tpu.memory_space<vmem>>, vector<256x96xf32>
    %cst_138 = arith.constant dense<0.000000e+00> : vector<64x96xf32>
    %302 = tpu.matmul %300, %301, %cst_138 {dimension_numbers = #tpu.dot_dimension_numbers<[1], [0], [0], [1], [0, 0, 1, 1], [], []>} : vector<64x256xf32>, vector<256x96xf32>, vector<64x96xf32> -> vector<64x96xf32>
    %cst_139 = arith.constant 0.166666672 : f32
    %303 = vector.broadcast %cst_139 : f32 to vector<64x96xf32>
    %304 = arith.mulf %302, %303 : vector<64x96xf32>
    %cst_140 = arith.constant dense<0.000000e+00> : vector<2x96xf32>
    %305 = tpu.matmul %295, %304, %cst_140 {dimension_numbers = #tpu.dot_dimension_numbers<[1], [0], [0], [1], [0, 0, 1, 1], [], []>} : vector<2x64xf32>, vector<64x96xf32>, vector<2x96xf32> -> vector<2x96xf32>
    %306 = arith.mulf %305, %305 : vector<2x96xf32>
    %cst_141 = arith.constant dense<0.000000e+00> : vector<2x96xf32>
    %307 = tpu.matmul %306, %297, %cst_141 {dimension_numbers = #tpu.dot_dimension_numbers<[1], [0], [0], [1], [0, 0, 1, 1], [], []>} : vector<2x96xf32>, vector<96x96xf32>, vector<2x96xf32> -> vector<2x96xf32>
    %cst_142 = arith.constant 1.000000e+00 : f32
    %308 = vector.broadcast %cst_142 : f32 to vector<2x96xf32>
    %309 = arith.addf %308, %307 : vector<2x96xf32>
    %310 = arith.divf %307, %309 : vector<2x96xf32>
    %cst_143 = arith.constant 9.99999993E-9 : f32
    %311 = vector.broadcast %cst_143 : f32 to vector<2x96xf32>
    %312 = arith.addf %307, %311 : vector<2x96xf32>
    %313 = math.sqrt %312 : vector<2x96xf32>
    %314 = arith.divf %310, %313 : vector<2x96xf32>
    %315 = arith.mulf %305, %314 : vector<2x96xf32>
    %cst_144 = arith.constant dense<0.000000e+00> : vector<64x96xf32>
    %316 = tpu.matmul %296, %315, %cst_144 {dimension_numbers = #tpu.dot_dimension_numbers<[1], [0], [0], [1], [0, 0, 1, 1], [], []>} : vector<64x2xf32>, vector<2x96xf32>, vector<64x96xf32> -> vector<64x96xf32>
    %317 = arith.mulf %302, %316 : vector<64x96xf32>
    %cst_145 = arith.constant dense<0.000000e+00> : vector<64x96xf32>
    %318 = tpu.matmul %317, %297, %cst_145 {dimension_numbers = #tpu.dot_dimension_numbers<[1], [0], [0], [1], [0, 0, 1, 1], [], []>} : vector<64x96xf32>, vector<96x96xf32>, vector<64x96xf32> -> vector<64x96xf32>
    %cst_146 = arith.constant dense<0xFF800000> : vector<64xf32>
    %319 = vector.multi_reduction <maximumf>, %318, %cst_146 [1] : vector<64x96xf32> to vector<64xf32>
    %320 = vector.shape_cast %319 : vector<64xf32> to vector<64x1xf32>
    %321 = vector.broadcast %320 : vector<64x1xf32> to vector<64x96xf32>
    %322 = arith.subf %318, %321 : vector<64x96xf32>
    %323 = math.exp %322 : vector<64x96xf32>
    %cst_147 = arith.constant dense<0.000000e+00> : vector<64xf32>
    %324 = vector.multi_reduction <add>, %323, %cst_147 [1] : vector<64x96xf32> to vector<64xf32>
    %325 = vector.shape_cast %324 : vector<64xf32> to vector<64x1xf32>
    %cst_148 = arith.constant 1.600000e+01 : f32
    %326 = vector.broadcast %cst_148 : f32 to vector<64x1xf32>
    %327 = arith.divf %326, %325 : vector<64x1xf32>
    %328 = vector.broadcast %327 : vector<64x1xf32> to vector<64x96xf32>
    %329 = arith.mulf %323, %328 : vector<64x96xf32>
    %330 = arith.mulf %329, %302 : vector<64x96xf32>
    %cst_149 = arith.constant dense<0.000000e+00> : vector<2x96xf32>
    %331 = tpu.matmul %295, %330, %cst_149 {dimension_numbers = #tpu.dot_dimension_numbers<[1], [0], [0], [1], [0, 0, 1, 1], [], []>} : vector<2x64xf32>, vector<64x96xf32>, vector<2x96xf32> -> vector<2x96xf32>
    %332 = arith.mulf %331, %331 : vector<2x96xf32>
    %cst_150 = arith.constant dense<0.000000e+00> : vector<2x96xf32>
    %333 = tpu.matmul %332, %297, %cst_150 {dimension_numbers = #tpu.dot_dimension_numbers<[1], [0], [0], [1], [0, 0, 1, 1], [], []>} : vector<2x96xf32>, vector<96x96xf32>, vector<2x96xf32> -> vector<2x96xf32>
    %cst_151 = arith.constant 1.000000e+00 : f32
    %334 = vector.broadcast %cst_151 : f32 to vector<2x96xf32>
    %335 = arith.addf %334, %333 : vector<2x96xf32>
    %336 = arith.divf %333, %335 : vector<2x96xf32>
    %cst_152 = arith.constant 9.99999993E-9 : f32
    %337 = vector.broadcast %cst_152 : f32 to vector<2x96xf32>
    %338 = arith.addf %333, %337 : vector<2x96xf32>
    %339 = math.sqrt %338 : vector<2x96xf32>
    %340 = arith.divf %336, %339 : vector<2x96xf32>
    %341 = arith.mulf %331, %340 : vector<2x96xf32>
    %cst_153 = arith.constant dense<0.000000e+00> : vector<64x96xf32>
    %342 = tpu.matmul %296, %341, %cst_153 {dimension_numbers = #tpu.dot_dimension_numbers<[1], [0], [0], [1], [0, 0, 1, 1], [], []>} : vector<64x2xf32>, vector<2x96xf32>, vector<64x96xf32> -> vector<64x96xf32>
    %343 = arith.mulf %302, %342 : vector<64x96xf32>
    %cst_154 = arith.constant dense<0.000000e+00> : vector<64x96xf32>
    %344 = tpu.matmul %343, %297, %cst_154 {dimension_numbers = #tpu.dot_dimension_numbers<[1], [0], [0], [1], [0, 0, 1, 1], [], []>} : vector<64x96xf32>, vector<96x96xf32>, vector<64x96xf32> -> vector<64x96xf32>
    %345 = arith.addf %318, %344 : vector<64x96xf32>
    %cst_155 = arith.constant dense<0xFF800000> : vector<64xf32>
    %346 = vector.multi_reduction <maximumf>, %345, %cst_155 [1] : vector<64x96xf32> to vector<64xf32>
    %347 = vector.shape_cast %346 : vector<64xf32> to vector<64x1xf32>
    %348 = vector.broadcast %347 : vector<64x1xf32> to vector<64x96xf32>
    %349 = arith.subf %345, %348 : vector<64x96xf32>
    %350 = math.exp %349 : vector<64x96xf32>
    %cst_156 = arith.constant dense<0.000000e+00> : vector<64xf32>
    %351 = vector.multi_reduction <add>, %350, %cst_156 [1] : vector<64x96xf32> to vector<64xf32>
    %352 = vector.shape_cast %351 : vector<64xf32> to vector<64x1xf32>
    %cst_157 = arith.constant 1.600000e+01 : f32
    %353 = vector.broadcast %cst_157 : f32 to vector<64x1xf32>
    %354 = arith.divf %353, %352 : vector<64x1xf32>
    %355 = vector.broadcast %354 : vector<64x1xf32> to vector<64x96xf32>
    %356 = arith.mulf %350, %355 : vector<64x96xf32>
    %357 = arith.mulf %356, %302 : vector<64x96xf32>
    %cst_158 = arith.constant dense<0.000000e+00> : vector<2x96xf32>
    %358 = tpu.matmul %295, %357, %cst_158 {dimension_numbers = #tpu.dot_dimension_numbers<[1], [0], [0], [1], [0, 0, 1, 1], [], []>} : vector<2x64xf32>, vector<64x96xf32>, vector<2x96xf32> -> vector<2x96xf32>
    %359 = arith.mulf %358, %358 : vector<2x96xf32>
    %cst_159 = arith.constant dense<0.000000e+00> : vector<2x96xf32>
    %360 = tpu.matmul %359, %297, %cst_159 {dimension_numbers = #tpu.dot_dimension_numbers<[1], [0], [0], [1], [0, 0, 1, 1], [], []>} : vector<2x96xf32>, vector<96x96xf32>, vector<2x96xf32> -> vector<2x96xf32>
    %cst_160 = arith.constant 1.000000e+00 : f32
    %361 = vector.broadcast %cst_160 : f32 to vector<2x96xf32>
    %362 = arith.addf %361, %360 : vector<2x96xf32>
    %363 = arith.divf %360, %362 : vector<2x96xf32>
    %cst_161 = arith.constant 9.99999993E-9 : f32
    %364 = vector.broadcast %cst_161 : f32 to vector<2x96xf32>
    %365 = arith.addf %360, %364 : vector<2x96xf32>
    %366 = math.sqrt %365 : vector<2x96xf32>
    %367 = arith.divf %363, %366 : vector<2x96xf32>
    %368 = arith.mulf %358, %367 : vector<2x96xf32>
    %369 = arith.mulf %368, %368 : vector<2x96xf32>
    %c0_162 = arith.constant 0 : index
    %c0_163 = arith.constant 0 : index
    %370 = vector.load %arg14[%c0_162, %c0_163] : memref<96x6xf32, #tpu.memory_space<vmem>>, vector<96x6xf32>
    %cst_164 = arith.constant dense<0.000000e+00> : vector<2x6xf32>
    %371 = tpu.matmul %369, %370, %cst_164 {dimension_numbers = #tpu.dot_dimension_numbers<[1], [0], [0], [1], [0, 0, 1, 1], [], []>} : vector<2x96xf32>, vector<96x6xf32>, vector<2x6xf32> -> vector<2x6xf32>
    %372 = math.sqrt %371 : vector<2x6xf32>
    %cst_165 = arith.constant 0.000000e+00 : f32
    %373 = vector.broadcast %cst_165 : f32 to vector<2x6xf32>
    %374 = arith.subf %373, %372 : vector<2x6xf32>
    %375 = math.exp %374 : vector<2x6xf32>
    %cst_166 = arith.constant 1.000000e+00 : f32
    %376 = vector.broadcast %cst_166 : f32 to vector<2x6xf32>
    %377 = arith.addf %376, %375 : vector<2x6xf32>
    %cst_167 = arith.constant 1.000000e+00 : f32
    %378 = vector.broadcast %cst_167 : f32 to vector<2x6xf32>
    %379 = arith.divf %378, %377 : vector<2x6xf32>
    %c0_168 = arith.constant 0 : index
    %c0_169 = arith.constant 0 : index
    %380 = vector.load %arg15[%c0_168, %c0_169] : memref<2x6xf32, #tpu.memory_space<vmem>>, vector<2x6xf32>
    tpu.vector_store %arg15[%c0_168, %c0_169], %379 {strides = array<i32>} : memref<2x6xf32, #tpu.memory_space<vmem>>, vector<2x6xf32>,
    return
  }
  func.func @transform_0(%arg0: i32) -> (i32, i32) {
    %c0_i32 = arith.constant 0 : i32
    %c0_i32_0 = arith.constant 0 : i32
    return %arg0, %c0_i32 : i32, i32
  }
  func.func @transform_1(%arg0: i32) -> (i32, i32) {
    %c0_i32 = arith.constant 0 : i32
    %c0_i32_0 = arith.constant 0 : i32
    return %arg0, %c0_i32 : i32, i32
  }
  func.func @transform_2(%arg0: i32) -> (i32, i32) {
    %c0_i32 = arith.constant 0 : i32
    %c0_i32_0 = arith.constant 0 : i32
    %c0_i32_1 = arith.constant 0 : i32
    return %c0_i32, %c0_i32_0 : i32, i32
  }
  func.func @transform_3(%arg0: i32) -> (i32, i32) {
    %c0_i32 = arith.constant 0 : i32
    %c0_i32_0 = arith.constant 0 : i32
    %c0_i32_1 = arith.constant 0 : i32
    return %c0_i32, %c0_i32_0 : i32, i32
  }
  func.func @transform_4(%arg0: i32) -> (i32, i32) {
    %c0_i32 = arith.constant 0 : i32
    %c0_i32_0 = arith.constant 0 : i32
    %c0_i32_1 = arith.constant 0 : i32
    return %c0_i32, %c0_i32_0 : i32, i32
  }
  func.func @transform_5(%arg0: i32) -> (i32, i32) {
    %c0_i32 = arith.constant 0 : i32
    %c0_i32_0 = arith.constant 0 : i32
    %c0_i32_1 = arith.constant 0 : i32
    return %c0_i32, %c0_i32_0 : i32, i32
  }
  func.func @transform_6(%arg0: i32) -> (i32, i32, i32) {
    %c0_i32 = arith.constant 0 : i32
    %c0_i32_0 = arith.constant 0 : i32
    %c0_i32_1 = arith.constant 0 : i32
    %c0_i32_2 = arith.constant 0 : i32
    return %c0_i32, %c0_i32_0, %c0_i32_1 : i32, i32, i32
  }
  func.func @transform_7(%arg0: i32) -> (i32, i32) {
    %c0_i32 = arith.constant 0 : i32
    %c0_i32_0 = arith.constant 0 : i32
    %c0_i32_1 = arith.constant 0 : i32
    return %c0_i32, %c0_i32_0 : i32, i32
  }
  func.func @transform_8(%arg0: i32) -> (i32, i32) {
    %c0_i32 = arith.constant 0 : i32
    %c0_i32_0 = arith.constant 0 : i32
    %c0_i32_1 = arith.constant 0 : i32
    return %c0_i32, %c0_i32_0 : i32, i32
  }
  func.func @transform_9(%arg0: i32) -> (i32, i32) {
    %c0_i32 = arith.constant 0 : i32
    %c0_i32_0 = arith.constant 0 : i32
    %c0_i32_1 = arith.constant 0 : i32
    return %c0_i32, %c0_i32_0 : i32, i32
  }
  func.func @transform_10(%arg0: i32) -> (i32, i32) {
    %c0_i32 = arith.constant 0 : i32
    %c0_i32_0 = arith.constant 0 : i32
    %c0_i32_1 = arith.constant 0 : i32
    return %c0_i32, %c0_i32_0 : i32, i32
  }
  func.func @transform_11(%arg0: i32) -> (i32, i32) {
    %c0_i32 = arith.constant 0 : i32
    %c0_i32_0 = arith.constant 0 : i32
    %c0_i32_1 = arith.constant 0 : i32
    return %c0_i32, %c0_i32_0 : i32, i32
  }
  func.func @transform_12(%arg0: i32) -> (i32, i32) {
    %c0_i32 = arith.constant 0 : i32
    %c0_i32_0 = arith.constant 0 : i32
    %c0_i32_1 = arith.constant 0 : i32
    return %c0_i32, %c0_i32_0 : i32, i32
  }
  func.func @transform_13(%arg0: i32) -> (i32, i32) {
    %c0_i32 = arith.constant 0 : i32
    %c0_i32_0 = arith.constant 0 : i32
    %c0_i32_1 = arith.constant 0 : i32
    return %c0_i32, %c0_i32_0 : i32, i32
  }
  func.func @transform_14(%arg0: i32) -> (i32, i32) {
    %c0_i32 = arith.constant 0 : i32
    %c0_i32_0 = arith.constant 0 : i32
    return %arg0, %c0_i32 : i32, i32
  }
}

</mosaic_0001>

<llo_original>
// kernel: pallas_forward.1
$region0: #{pallas_forward.1}
  #allocation0 [shape = 'u32[]', space=smem, size = 0x4, offset = 0x4, fixed_abs, tag = 'smem constant byte address 0x4 - core index']
  #allocation1 [shape = 'u32[144,128]{1,0:T(1,128)}', space=vmem, size = 0x12000, scoped, tag = 'internal scratch']
  #allocation2 [shape = 'f32[2,17,32]{2,1,0:T(8,128)}', space=vmem, size = 0x6000, scoped, tag = 'scratch operand']
  #allocation3 [shape = 'f32[2,17,32]{2,1,0:T(8,128)}', space=vmem, size = 0x6000, scoped, tag = 'scratch operand']
  %s0 = inlined_call_operand.vmem [shape: f32[60,18], index: 0, kind: input, shape index: {}]
  %s1 = inlined_call_operand.vmem [shape: f32[60,18], index: 1, kind: input, shape index: {}]
  %s2 = inlined_call_operand.vmem [shape: f32[18,32], index: 2, kind: input, shape index: {}]
  %s3 = inlined_call_operand.vmem [shape: f32[1,32], index: 3, kind: input, shape index: {}]
  %s4 = inlined_call_operand.vmem [shape: f32[160,64], index: 4, kind: input, shape index: {}]
  %s5 = inlined_call_operand.vmem [shape: f32[1,64], index: 5, kind: input, shape index: {}]
  %s6 = inlined_call_operand.vmem [shape: f32[15,64,256], index: 6, kind: input, shape index: {}]
  %s7 = inlined_call_operand.vmem [shape: f32[1,256], index: 7, kind: input, shape index: {}]
  %s8 = inlined_call_operand.vmem [shape: f32[64,256], index: 8, kind: input, shape index: {}]
  %s9 = inlined_call_operand.vmem [shape: f32[256,96], index: 9, kind: input, shape index: {}]
  %s10 = inlined_call_operand.vmem [shape: f32[2,64], index: 10, kind: input, shape index: {}]
  %s11 = inlined_call_operand.vmem [shape: f32[64,2], index: 11, kind: input, shape index: {}]
  %s12 = inlined_call_operand.vmem [shape: f32[96,96], index: 12, kind: input, shape index: {}]
  %s13 = inlined_call_operand.vmem [shape: f32[96,6], index: 13, kind: input, shape index: {}]
  %s14 = inlined_call_operand.hbm [shape: f32[2,6], index: 14, kind: output, shape index: {}]
  %s15 = sld [smem:[#allocation0]]
  $region66: #{pallas_forward.1} parent=0
    _
  %s17 = ssub.s32 1, %s15
  %s18 = scalar_select 0, %s17, %s15
  $region1: #{pallas_forward.1} parent=0
    #allocation4 [shape = 'u8[1024]{0}', space=vmem, size = 0x400, scoped, tag = 'output window, operand 0, single buffered']
    #allocation5 [shape = 's32[1]{0}', space=sflag, size = 0x4, scoped, tag = 'scoped memory for pallas_forward.1']
    %19 = vsyncpa [#allocation5], 0
    // Predicated region
    $region2: #{pallas_forward.1} parent=1 // pred_check
      _
    $region3: #{pallas_forward.1} parent=1 // pred_check_branch
      %21 = sbr.rel (0) target = $region5
    $region4: #{pallas_forward.1} parent=1 // pred_region
      _
    $region5: #{pallas_forward.1} parent=1 // pred_fallthru
      _
    // Predicated region
    $region6: #{pallas_forward.1} parent=1 // pred_check
      _
    $region7: #{pallas_forward.1} parent=1 // pred_check_branch
      %23 = sbr.rel (0) target = $region9
    $region8: #{pallas_forward.1} parent=1 // pred_region
      _
    $region9: #{pallas_forward.1} parent=1 // pred_fallthru
      _
    // Predicated region
    $region10: #{pallas_forward.1} parent=1 // pred_check
      _
    $region11: #{pallas_forward.1} parent=1 // pred_check_branch
      %25 = sbr.rel (0) target = $region13
    $region12: #{pallas_forward.1} parent=1 // pred_region
      _
    $region13: #{pallas_forward.1} parent=1 // pred_fallthru
      _
    // Predicated region
    $region14: #{pallas_forward.1} parent=1 // pred_check
      _
    $region15: #{pallas_forward.1} parent=1 // pred_check_branch
      %27 = sbr.rel (0) target = $region17
    $region16: #{pallas_forward.1} parent=1 // pred_region
      _
    $region17: #{pallas_forward.1} parent=1 // pred_fallthru
      _
    // Predicated region
    $region18: #{pallas_forward.1} parent=1 // pred_check
      _
    $region19: #{pallas_forward.1} parent=1 // pred_check_branch
      %29 = sbr.rel (0) target = $region21
    $region20: #{pallas_forward.1} parent=1 // pred_region
      _
    $region21: #{pallas_forward.1} parent=1 // pred_fallthru
      _
    // Predicated region
    $region22: #{pallas_forward.1} parent=1 // pred_check
      _
    $region23: #{pallas_forward.1} parent=1 // pred_check_branch
      %31 = sbr.rel (0) target = $region25
    $region24: #{pallas_forward.1} parent=1 // pred_region
      _
    $region25: #{pallas_forward.1} parent=1 // pred_fallthru
      _
    // Predicated region
    $region26: #{pallas_forward.1} parent=1 // pred_check
      _
    $region27: #{pallas_forward.1} parent=1 // pred_check_branch
      %33 = sbr.rel (0) target = $region29
    $region28: #{pallas_forward.1} parent=1 // pred_region
      _
    $region29: #{pallas_forward.1} parent=1 // pred_fallthru
      _
    // Predicated region
    $region30: #{pallas_forward.1} parent=1 // pred_check
      _
    $region31: #{pallas_forward.1} parent=1 // pred_check_branch
      %35 = sbr.rel (0) target = $region33
    $region32: #{pallas_forward.1} parent=1 // pred_region
      _
    $region33: #{pallas_forward.1} parent=1 // pred_fallthru
      _
    // Predicated region
    $region34: #{pallas_forward.1} parent=1 // pred_check
      _
    $region35: #{pallas_forward.1} parent=1 // pred_check_branch
      %37 = sbr.rel (0) target = $region37
    $region36: #{pallas_forward.1} parent=1 // pred_region
      _
    $region37: #{pallas_forward.1} parent=1 // pred_fallthru
      _
    // Predicated region
    $region38: #{pallas_forward.1} parent=1 // pred_check
      _
    $region39: #{pallas_forward.1} parent=1 // pred_check_branch
      %39 = sbr.rel (0) target = $region41
    $region40: #{pallas_forward.1} parent=1 // pred_region
      _
    $region41: #{pallas_forward.1} parent=1 // pred_fallthru
      _
    // Predicated region
    $region42: #{pallas_forward.1} parent=1 // pred_check
      _
    $region43: #{pallas_forward.1} parent=1 // pred_check_branch
      %41 = sbr.rel (0) target = $region45
    $region44: #{pallas_forward.1} parent=1 // pred_region
      _
    $region45: #{pallas_forward.1} parent=1 // pred_fallthru
      _
    // Predicated region
    $region46: #{pallas_forward.1} parent=1 // pred_check
      _
    $region47: #{pallas_forward.1} parent=1 // pred_check_branch
      %43 = sbr.rel (0) target = $region49
    $region48: #{pallas_forward.1} parent=1 // pred_region
      _
    $region49: #{pallas_forward.1} parent=1 // pred_fallthru
      _
    // Predicated region
    $region50: #{pallas_forward.1} parent=1 // pred_check
      _
    $region51: #{pallas_forward.1} parent=1 // pred_check_branch
      %45 = sbr.rel (0) target = $region53
    $region52: #{pallas_forward.1} parent=1 // pred_region
      _
    $region53: #{pallas_forward.1} parent=1 // pred_fallthru
      _
    // Predicated region
    $region54: #{pallas_forward.1} parent=1 // pred_check
      _
    $region55: #{pallas_forward.1} parent=1 // pred_check_branch
      %47 = sbr.rel (0) target = $region57
    $region56: #{pallas_forward.1} parent=1 // pred_region
      _
    $region57: #{pallas_forward.1} parent=1 // pred_fallthru
      _
    %v48 = vld [vmem:[%s2] sm:$0xff]
    %v49 = vld [vmem:[%s2 + $0x8] sm:$0xff]
    %v50 = vld [vmem:[%s2 + $0x10] sm:$0x3]
    %v51 = vld [vmem:[%s3] sm:$0x1]
    %v52 = vld [vmem:[%s0] sm:$0xff]
    %v53 = vld [vmem:[%s0 + $0x8] sm:$0xff]
    %v54 = vld [vmem:[%s0 + $0x10] sm:$0xff]
    %v55 = vld [vmem:[%s0 + $0x18] sm:$0xff]
    %v56 = vld [vmem:[%s0 + $0x20] sm:$0xff]
    %v57 = vld [vmem:[%s0 + $0x28] sm:$0xff]
    %v58 = vld [vmem:[%s0 + $0x30] sm:$0xff]
    %v59 = vld [vmem:[%s0 + $0x38] sm:$0xf]
    %v61 = vlaneseq
    %v62 = vshrl.u32 %v61, 7
    %v63 = vsub.s32 0, %v62
    %v64 = vrot.slane %v51, %v63
    %vm66 = vcmask 146432
    %v68 = vsel %vm66, %v52, 0
    %v71 = vsel %vm66, %v53, 0
    %v74 = vsel %vm66, %v54, 0
    %v77 = vsel %vm66, %v55, 0
    %v80 = vsel %vm66, %v56, 0
    %v83 = vsel %vm66, %v57, 0
    %v86 = vsel %vm66, %v58, 0
    %v89 = vsel %vm66, %v59, 0
    %vm91 = vcmask 1041408
    %v93 = vsel %vm91, %v50, 0
    %95 = vmatprep.subr.mxu0 0.0
    %96 = vmatpush1.msra.mxu0 0.0
    %97 = vmatprep.subr.mxu0 0.0
    %98 = vmatpush1.msra.mxu0 0.0
    %99 = vmatprep.subr.mxu0 0.0
    %100 = vmatpush1.msra.mxu0 0.0
    %101 = vmatprep.subr.mxu0 0.0
    %102 = vmatpush1.msra.mxu0 0.0
    %103 = vmatprep.subr.mxu0 0.0
    %104 = vmatpush1.msra.mxu0 0.0
    %105 = vmatprep.subr.mxu0 0.0
    %106 = vmatpush1.msra.mxu0 0.0
    %107 = vmatprep.subr.mxu0 0.0
    %108 = vmatpush1.msra.mxu0 0.0
    %109 = vmatprep.subr.mxu0 0.0
    %110 = vmatpush1.msra.mxu0 0.0
    %111 = vmatprep.subr.mxu0 0.0
    %112 = vmatpush1.msra.mxu0 0.0
    %113 = vmatprep.subr.mxu0 0.0
    %114 = vmatpush1.msra.mxu0 0.0
    %115 = vmatprep.subr.mxu0 0.0
    %116 = vmatpush1.msra.mxu0 0.0
    %117 = vmatprep.subr.mxu0 0.0
    %118 = vmatpush1.msra.mxu0 0.0
    %119 = vmatprep.subr.mxu0 0.0
    %120 = vmatpush1.msra.mxu0 0.0
    %121 = vmatprep.subr.mxu0 0.0
    %122 = vmatpush1.msra.mxu0 %v93
    %123 = vmatprep.subr.mxu0 0.0
    %124 = vmatpush1.msra.mxu0 %v49
    %125 = vmatprep.subr.mxu0 0.0
    %126 = vmatpush1.msra.mxu0 %v48
    %127 = vmatprep.subr.mxu0 0.0
    %128 = vmatpush2.msra.mxu0 0.0
    %129 = vmatprep.subr.mxu0 0.0
    %130 = vmatpush2.msra.mxu0 0.0
    %131 = vmatprep.subr.mxu0 0.0
    %132 = vmatpush2.msra.mxu0 0.0
    %133 = vmatprep.subr.mxu0 0.0
    %134 = vmatpush2.msra.mxu0 0.0
    %135 = vmatprep.subr.mxu0 0.0
    %136 = vmatpush2.msra.mxu0 0.0
    %137 = vmatprep.subr.mxu0 0.0
    %138 = vmatpush2.msra.mxu0 0.0
    %139 = vmatprep.subr.mxu0 0.0
    %140 = vmatpush2.msra.mxu0 0.0
    %141 = vmatprep.subr.mxu0 0.0
    %142 = vmatpush2.msra.mxu0 0.0
    %143 = vmatprep.subr.mxu0 0.0
    %144 = vmatpush2.msra.mxu0 0.0
    %145 = vmatprep.subr.mxu0 0.0
    %146 = vmatpush2.msra.mxu0 0.0
    %147 = vmatprep.subr.mxu0 0.0
    %148 = vmatpush2.msra.mxu0 0.0
    %149 = vmatprep.subr.mxu0 0.0
    %150 = vmatpush2.msra.mxu0 0.0
    %151 = vmatprep.subr.mxu0 0.0
    %152 = vmatpush2.msra.mxu0 0.0
    %153 = vmatprep.subr.mxu0 0.0
    %154 = vmatpush2.msra.mxu0 0.0
    %155 = vmatprep.subr.mxu0 0.0
    %156 = vmatpush2.msra.mxu0 0.0
    %157 = vmatprep.subr.mxu0 0.0
    %158 = vmatpush2.msra.mxu0 0.0
    %159 = vmatprep.mubr.f32.mxu0 0.0
    %160 = vmatmul.mubr.f32.gmra.mxu0 %v68
    %v161 = vpop.f32.mrf.mxu0
    %v162 = vadd.f32 %v64, %v161
    %v163 = vpop.f32.mrf.mxu0
    %164 = vmatprep.mubr.f32.mxu0 0.0
    %165 = vmatmul.mubr.f32.gmra.mxu0 %v71
    %v166 = vpop.f32.mrf.mxu0
    %v167 = vadd.f32 %v64, %v166
    %v168 = vpop.f32.mrf.mxu0
    %169 = vmatprep.mubr.f32.mxu0 0.0
    %170 = vmatmul.mubr.f32.gmra.mxu0 %v74
    %v171 = vpop.f32.mrf.mxu0
    %v172 = vadd.f32 %v64, %v171
    %v173 = vpop.f32.mrf.mxu0
    %174 = vmatprep.mubr.f32.mxu0 0.0
    %175 = vmatmul.mubr.f32.gmra.mxu0 %v77
    %v176 = vpop.f32.mrf.mxu0
    %v177 = vadd.f32 %v64, %v176
    %v178 = vpop.f32.mrf.mxu0
    %179 = vmatprep.mubr.f32.mxu0 0.0
    %180 = vmatmul.mubr.f32.gmra.mxu0 %v80
    %v181 = vpop.f32.mrf.mxu0
    %v182 = vadd.f32 %v64, %v181
    %v183 = vpop.f32.mrf.mxu0
    %184 = vmatprep.mubr.f32.mxu0 0.0
    %185 = vmatmul.mubr.f32.gmra.mxu0 %v83
    %v186 = vpop.f32.mrf.mxu0
    %v187 = vadd.f32 %v64, %v186
    %v188 = vpop.f32.mrf.mxu0
    %189 = vmatprep.mubr.f32.mxu0 0.0
    %190 = vmatmul.mubr.f32.gmra.mxu0 %v86
    %v191 = vpop.f32.mrf.mxu0
    %v192 = vadd.f32 %v64, %v191
    %v193 = vpop.f32.mrf.mxu0
    %194 = vmatprep.mubr.f32.mxu0 0.0
    %195 = vmatmul.mubr.f32.gmra.mxu0 %v89
    %v196 = vpop.f32.mrf.mxu0
    %v197 = vadd.f32 %v64, %v196
    %v198 = vpop.f32.mrf.mxu0
    %199 = vdwg.mxu0
    %v200 = vmax.f32 %v162, 0.0
    %v201 = vmax.f32 %v167, 0.0
    %v202 = vmax.f32 %v172, 0.0
    %v203 = vmax.f32 %v177, 0.0
    %v204 = vmax.f32 %v182, 0.0
    %v205 = vmax.f32 %v187, 0.0
    %v206 = vmax.f32 %v192, 0.0
    %v207 = vmax.f32 %v197, 0.0
    %v208 = vld [vmem:[%s1] sm:$0xff]
    %v209 = vld [vmem:[%s1 + $0x8] sm:$0xff]
    %v210 = vld [vmem:[%s1 + $0x10] sm:$0xff]
    %v211 = vld [vmem:[%s1 + $0x18] sm:$0xff]
    %v212 = vld [vmem:[%s1 + $0x20] sm:$0xff]
    %v213 = vld [vmem:[%s1 + $0x28] sm:$0xff]
    %v214 = vld [vmem:[%s1 + $0x30] sm:$0xff]
    %v215 = vld [vmem:[%s1 + $0x38] sm:$0xf]
    %v217 = vsel %vm66, %v208, 0
    %v220 = vsel %vm66, %v209, 0
    %v223 = vsel %vm66, %v210, 0
    %v226 = vsel %vm66, %v211, 0
    %v229 = vsel %vm66, %v212, 0
    %v232 = vsel %vm66, %v213, 0
    %v235 = vsel %vm66, %v214, 0
    %v238 = vsel %vm66, %v215, 0
    %240 = vmatprep.subr.mxu0 0.0
    %241 = vmatpush1.msra.mxu0 0.0
    %242 = vmatprep.subr.mxu0 0.0
    %243 = vmatpush1.msra.mxu0 0.0
    %244 = vmatprep.subr.mxu0 0.0
    %245 = vmatpush1.msra.mxu0 0.0
    %246 = vmatprep.subr.mxu0 0.0
    %247 = vmatpush1.msra.mxu0 0.0
    %248 = vmatprep.subr.mxu0 0.0
    %249 = vmatpush1.msra.mxu0 0.0
    %250 = vmatprep.subr.mxu0 0.0
    %251 = vmatpush1.msra.mxu0 0.0
    %252 = vmatprep.subr.mxu0 0.0
    %253 = vmatpush1.msra.mxu0 0.0
    %254 = vmatprep.subr.mxu0 0.0
    %255 = vmatpush1.msra.mxu0 0.0
    %256 = vmatprep.subr.mxu0 0.0
    %257 = vmatpush1.msra.mxu0 0.0
    %258 = vmatprep.subr.mxu0 0.0
    %259 = vmatpush1.msra.mxu0 0.0
    %260 = vmatprep.subr.mxu0 0.0
    %261 = vmatpush1.msra.mxu0 0.0
    %262 = vmatprep.subr.mxu0 0.0
    %263 = vmatpush1.msra.mxu0 0.0
    %264 = vmatprep.subr.mxu0 0.0
    %265 = vmatpush1.msra.mxu0 0.0
    %266 = vmatprep.subr.mxu0 0.0
    %267 = vmatpush1.msra.mxu0 %v93
    %268 = vmatprep.subr.mxu0 0.0
    %269 = vmatpush1.msra.mxu0 %v49
    %270 = vmatprep.subr.mxu0 0.0
    %271 = vmatpush1.msra.mxu0 %v48
    %272 = vmatprep.subr.mxu0 0.0
    %273 = vmatpush2.msra.mxu0 0.0
    %274 = vmatprep.subr.mxu0 0.0
    %275 = vmatpush2.msra.mxu0 0.0
    %276 = vmatprep.subr.mxu0 0.0
    %277 = vmatpush2.msra.mxu0 0.0
    %278 = vmatprep.subr.mxu0 0.0
    %279 = vmatpush2.msra.mxu0 0.0
    %280 = vmatprep.subr.mxu0 0.0
    %281 = vmatpush2.msra.mxu0 0.0
    %282 = vmatprep.subr.mxu0 0.0
    %283 = vmatpush2.msra.mxu0 0.0
    %284 = vmatprep.subr.mxu0 0.0
    %285 = vmatpush2.msra.mxu0 0.0
    %286 = vmatprep.subr.mxu0 0.0
    %287 = vmatpush2.msra.mxu0 0.0
    %288 = vmatprep.subr.mxu0 0.0
    %289 = vmatpush2.msra.mxu0 0.0
    %290 = vmatprep.subr.mxu0 0.0
    %291 = vmatpush2.msra.mxu0 0.0
    %292 = vmatprep.subr.mxu0 0.0
    %293 = vmatpush2.msra.mxu0 0.0
    %294 = vmatprep.subr.mxu0 0.0
    %295 = vmatpush2.msra.mxu0 0.0
    %296 = vmatprep.subr.mxu0 0.0
    %297 = vmatpush2.msra.mxu0 0.0
    %298 = vmatprep.subr.mxu0 0.0
    %299 = vmatpush2.msra.mxu0 0.0
    %300 = vmatprep.subr.mxu0 0.0
    %301 = vmatpush2.msra.mxu0 0.0
    %302 = vmatprep.subr.mxu0 0.0
    %303 = vmatpush2.msra.mxu0 0.0
    %304 = vmatprep.mubr.f32.mxu0 0.0
    %305 = vmatmul.mubr.f32.gmra.mxu0 %v217
    %v306 = vpop.f32.mrf.mxu0
    %v307 = vadd.f32 %v64, %v306
    %v308 = vpop.f32.mrf.mxu0
    %309 = vmatprep.mubr.f32.mxu0 0.0
    %310 = vmatmul.mubr.f32.gmra.mxu0 %v220
    %v311 = vpop.f32.mrf.mxu0
    %v312 = vadd.f32 %v64, %v311
    %v313 = vpop.f32.mrf.mxu0
    %314 = vmatprep.mubr.f32.mxu0 0.0
    %315 = vmatmul.mubr.f32.gmra.mxu0 %v223
    %v316 = vpop.f32.mrf.mxu0
    %v317 = vadd.f32 %v64, %v316
    %v318 = vpop.f32.mrf.mxu0
    %319 = vmatprep.mubr.f32.mxu0 0.0
    %320 = vmatmul.mubr.f32.gmra.mxu0 %v226
    %v321 = vpop.f32.mrf.mxu0
    %v322 = vadd.f32 %v64, %v321
    %v323 = vpop.f32.mrf.mxu0
    %324 = vmatprep.mubr.f32.mxu0 0.0
    %325 = vmatmul.mubr.f32.gmra.mxu0 %v229
    %v326 = vpop.f32.mrf.mxu0
    %v327 = vadd.f32 %v64, %v326
    %v328 = vpop.f32.mrf.mxu0
    %329 = vmatprep.mubr.f32.mxu0 0.0
    %330 = vmatmul.mubr.f32.gmra.mxu0 %v232
    %v331 = vpop.f32.mrf.mxu0
    %v332 = vadd.f32 %v64, %v331
    %v333 = vpop.f32.mrf.mxu0
    %334 = vmatprep.mubr.f32.mxu0 0.0
    %335 = vmatmul.mubr.f32.gmra.mxu0 %v235
    %v336 = vpop.f32.mrf.mxu0
    %v337 = vadd.f32 %v64, %v336
    %v338 = vpop.f32.mrf.mxu0
    %339 = vmatprep.mubr.f32.mxu0 0.0
    %340 = vmatmul.mubr.f32.gmra.mxu0 %v238
    %v341 = vpop.f32.mrf.mxu0
    %v342 = vadd.f32 %v64, %v341
    %v343 = vpop.f32.mrf.mxu0
    %344 = vdwg.mxu0
    %v345 = vmax.f32 %v307, 0.0
    %v346 = vmax.f32 %v312, 0.0
    %v347 = vmax.f32 %v317, 0.0
    %v348 = vmax.f32 %v322, 0.0
    %v349 = vmax.f32 %v327, 0.0
    %v350 = vmax.f32 %v332, 0.0
    %v351 = vmax.f32 %v337, 0.0
    %v352 = vmax.f32 %v342, 0.0
    %v353 = vmax.f32 %v200, %v345
    %v354 = vmax.f32 %v201, %v346
    %v355 = vmax.f32 %v202, %v347
    %v356 = vmax.f32 %v203, %v348
    %v357 = vmax.f32 %v204, %v349
    %v358 = vmax.f32 %v205, %v350
    %v359 = vmax.f32 %v206, %v351
    %v360 = vmax.f32 %v207, %v352
    %vm361 = vcmask 261120
    %362 = vst.msk [vmem:[#allocation2] sm:$0xff] %vm361, 0.0
    %363 = vst.msk [vmem:[#allocation2 + $0x8] sm:$0xff] %vm361, 0.0
    %vm364 = vcmask 253952
    %365 = vst.msk [vmem:[#allocation2 + $0x10] sm:$0x1] %vm364, 0.0
    %366 = vst.msk [vmem:[#allocation2 + $0x18] sm:$0xff] %vm361, 0.0
    %367 = vst.msk [vmem:[#allocation2 + $0x20] sm:$0xff] %vm361, 0.0
    %368 = vst.msk [vmem:[#allocation2 + $0x28] sm:$0x1] %vm364, 0.0
    %369 = vst.msk [vmem:[#allocation3] sm:$0xff] %vm361, 0.0
    %370 = vst.msk [vmem:[#allocation3 + $0x8] sm:$0xff] %vm361, 0.0
    %371 = vst.msk [vmem:[#allocation3 + $0x10] sm:$0x1] %vm364, 0.0
    %372 = vst.msk [vmem:[#allocation3 + $0x18] sm:$0xff] %vm361, 0.0
    %373 = vst.msk [vmem:[#allocation3 + $0x20] sm:$0xff] %vm361, 0.0
    %374 = vst.msk [vmem:[#allocation3 + $0x28] sm:$0x1] %vm364, 0.0
    %375 = vst.msk [vmem:[#allocation2 + $0x1] sm:$0xff] %vm361, %v353
    %vm376 = vcmask 260096
    %377 = vst.msk [vmem:[#allocation2 + $0x9] sm:$0x7f] %vm376, %v354
    %vm378 = vcmask 261127
    %379 = vst.msk [vmem:[#allocation3 - $0x6] sm:$0x80] %vm378, %v354
    %380 = vst.msk [vmem:[#allocation3 + $0x2] sm:$0xff] %vm361, %v355
    %vm381 = vcmask 259072
    %382 = vst.msk [vmem:[#allocation3 + $0xa] sm:$0x3f] %vm381, %v356
    %s383 = scalar_lea.vmem [#allocation2], 24
    %vm384 = vcmask 261126
    %385 = vst.msk [vmem:[%s383 - $0x5] sm:$0xc0] %vm384, %v356
    %386 = vst.msk [vmem:[%s383 + $0x3] sm:$0xff] %vm361, %v357
    %vm387 = vcmask 258048
    %388 = vst.msk [vmem:[%s383 + $0xb] sm:$0x1f] %vm387, %v358
    %s389 = scalar_lea.vmem [#allocation3], 24
    %vm390 = vcmask 261125
    %391 = vst.msk [vmem:[%s389 - $0x4] sm:$0xe0] %vm390, %v358
    %392 = vst.msk [vmem:[%s389 + $0x4] sm:$0xff] %vm361, %v359
    %vm393 = vcmask 257024
    %394 = vst.msk [vmem:[%s389 + $0xc] sm:$0xf] %vm393, %v360
    %v395 = vld [vmem:[%s4] sm:$0xff]
    %v396 = vld [vmem:[%s4 + $0x8] sm:$0xff]
    %v397 = vld [vmem:[%s4 + $0x10] sm:$0xff]
    %v398 = vld [vmem:[%s4 + $0x18] sm:$0xff]
    %v399 = vld [vmem:[%s4 + $0x20] sm:$0xff]
    %v400 = vld [vmem:[%s4 + $0x28] sm:$0xff]
    %v401 = vld [vmem:[%s4 + $0x30] sm:$0xff]
    %v402 = vld [vmem:[%s4 + $0x38] sm:$0xff]
    %v403 = vld [vmem:[%s4 + $0x40] sm:$0xff]
    %v404 = vld [vmem:[%s4 + $0x48] sm:$0xff]
    %v405 = vld [vmem:[%s4 + $0x50] sm:$0xff]
    %v406 = vld [vmem:[%s4 + $0x58] sm:$0xff]
    %v407 = vld [vmem:[%s4 + $0x60] sm:$0xff]
    %v408 = vld [vmem:[%s4 + $0x68] sm:$0xff]
    %v409 = vld [vmem:[%s4 + $0x70] sm:$0xff]
    %v410 = vld [vmem:[%s4 + $0x78] sm:$0xff]
    %v411 = vld [vmem:[%s4 + $0x80] sm:$0xff]
    %v412 = vld [vmem:[%s4 + $0x88] sm:$0xff]
    %v413 = vld [vmem:[%s4 + $0x90] sm:$0xff]
    %v414 = vld [vmem:[%s4 + $0x98] sm:$0xff]
    %v415 = vld [vmem:[%s5] sm:$0x1]
    %v416 = vld [vmem:[#allocation2] sm:$0xff]
    %v417 = vld [vmem:[#allocation2 + $0x8] sm:$0x7f]
    %v418 = vld [vmem:[#allocation2 + $0x1] sm:$0xff]
    %v419 = vld [vmem:[#allocation2 + $0x9] sm:$0x7f]
    %v420 = vld [vmem:[#allocation2 + $0x2] sm:$0xff]
    %v421 = vld [vmem:[#allocation2 + $0xa] sm:$0x7f]
    %v422 = vld [vmem:[#allocation3] sm:$0xff]
    %v423 = vld [vmem:[#allocation3 + $0x8] sm:$0x7f]
    %v424 = vld [vmem:[#allocation3 + $0x1] sm:$0xff]
    %v425 = vld [vmem:[#allocation3 + $0x9] sm:$0x7f]
    %v426 = vld [vmem:[#allocation3 + $0x2] sm:$0xff]
    %v427 = vld [vmem:[#allocation3 + $0xa] sm:$0x7f]
    %430 = vrot.lane.b32.xlu0 %v422, 32
    %v431 = vpop.permute.xlu0 %430
    %432 = vrot.lane.b32.xlu0 %v423, 32
    %v433 = vpop.permute.xlu0 %432
    %438 = vrot.lane.b32.xlu0 %v418, 64
    %v439 = vpop.permute.xlu0 %438
    %440 = vrot.lane.b32.xlu0 %v419, 64
    %v441 = vpop.permute.xlu0 %440
    %446 = vrot.lane.b32.xlu0 %v424, 96
    %v447 = vpop.permute.xlu0 %446
    %448 = vrot.lane.b32.xlu0 %v425, 96
    %v449 = vpop.permute.xlu0 %448
    %v452 = vsel %vm361, %v416, %v431
    %v453 = vsel %vm361, %v417, %v433
    %vm454 = vcmask 523264
    %v455 = vsel %vm454, %v452, %v439
    %v456 = vsel %vm454, %v453, %v441
    %vm457 = vcmask 785408
    %v458 = vsel %vm457, %v455, %v447
    %v459 = vsel %vm457, %v456, %v449
    %460 = vrot.lane.b32.xlu0 %v418, 32
    %v461 = vpop.permute.xlu0 %460
    %462 = vrot.lane.b32.xlu0 %v419, 32
    %v463 = vpop.permute.xlu0 %462
    %466 = vrot.lane.b32.xlu0 %v424, 64
    %v467 = vpop.permute.xlu0 %466
    %468 = vrot.lane.b32.xlu0 %v425, 64
    %v469 = vpop.permute.xlu0 %468
    %474 = vrot.lane.b32.xlu0 %v420, 96
    %v475 = vpop.permute.xlu0 %474
    %476 = vrot.lane.b32.xlu0 %v421, 96
    %v477 = vpop.permute.xlu0 %476
    %v480 = vsel %vm361, %v422, %v461
    %v481 = vsel %vm361, %v423, %v463
    %v482 = vsel %vm454, %v480, %v467
    %v483 = vsel %vm454, %v481, %v469
    %v484 = vsel %vm457, %v482, %v475
    %v485 = vsel %vm457, %v483, %v477
    %v487 = vlaneseq
    %v488 = vshrl.u32 %v487, 7
    %v489 = vsub.s32 0, %v488
    %v490 = vrot.slane %v415, %v489
    %v492 = vsel %vm361, %v420, 0
    %v494 = vsel %vm361, %v421, 0
    %496 = vmatprep.subr.mxu0 0.0
    %497 = vmatpush1.msra.mxu0 %v410
    %498 = vmatprep.subr.mxu0 0.0
    %499 = vmatpush1.msra.mxu0 %v409
    %500 = vmatprep.subr.mxu0 0.0
    %501 = vmatpush1.msra.mxu0 %v408
    %502 = vmatprep.subr.mxu0 0.0
    %503 = vmatpush1.msra.mxu0 %v407
    %504 = vmatprep.subr.mxu0 0.0
    %505 = vmatpush1.msra.mxu0 %v406
    %506 = vmatprep.subr.mxu0 0.0
    %507 = vmatpush1.msra.mxu0 %v405
    %508 = vmatprep.subr.mxu0 0.0
    %509 = vmatpush1.msra.mxu0 %v404
    %510 = vmatprep.subr.mxu0 0.0
    %511 = vmatpush1.msra.mxu0 %v403
    %512 = vmatprep.subr.mxu0 0.0
    %513 = vmatpush1.msra.mxu0 %v402
    %514 = vmatprep.subr.mxu0 0.0
    %515 = vmatpush1.msra.mxu0 %v401
    %516 = vmatprep.subr.mxu0 0.0
    %517 = vmatpush1.msra.mxu0 %v400
    %518 = vmatprep.subr.mxu0 0.0
    %519 = vmatpush1.msra.mxu0 %v399
    %520 = vmatprep.subr.mxu0 0.0
    %521 = vmatpush1.msra.mxu0 %v398
    %522 = vmatprep.subr.mxu0 0.0
    %523 = vmatpush1.msra.mxu0 %v397
    %524 = vmatprep.subr.mxu0 0.0
    %525 = vmatpush1.msra.mxu0 %v396
    %526 = vmatprep.subr.mxu0 0.0
    %527 = vmatpush1.msra.mxu0 %v395
    %528 = vmatprep.subr.mxu0 0.0
    %529 = vmatpush2.msra.mxu0 0.0
    %530 = vmatprep.subr.mxu0 0.0
    %531 = vmatpush2.msra.mxu0 0.0
    %532 = vmatprep.subr.mxu0 0.0
    %533 = vmatpush2.msra.mxu0 0.0
    %534 = vmatprep.subr.mxu0 0.0
    %535 = vmatpush2.msra.mxu0 0.0
    %536 = vmatprep.subr.mxu0 0.0
    %537 = vmatpush2.msra.mxu0 0.0
    %538 = vmatprep.subr.mxu0 0.0
    %539 = vmatpush2.msra.mxu0 0.0
    %540 = vmatprep.subr.mxu0 0.0
    %541 = vmatpush2.msra.mxu0 0.0
    %542 = vmatprep.subr.mxu0 0.0
    %543 = vmatpush2.msra.mxu0 0.0
    %544 = vmatprep.subr.mxu0 0.0
    %545 = vmatpush2.msra.mxu0 0.0
    %546 = vmatprep.subr.mxu0 0.0
    %547 = vmatpush2.msra.mxu0 0.0
    %548 = vmatprep.subr.mxu0 0.0
    %549 = vmatpush2.msra.mxu0 0.0
    %550 = vmatprep.subr.mxu0 0.0
    %551 = vmatpush2.msra.mxu0 0.0
    %552 = vmatprep.subr.mxu0 0.0
    %553 = vmatpush2.msra.mxu0 %v414
    %554 = vmatprep.subr.mxu0 0.0
    %555 = vmatpush2.msra.mxu0 %v413
    %556 = vmatprep.subr.mxu0 0.0
    %557 = vmatpush2.msra.mxu0 %v412
    %558 = vmatprep.subr.mxu0 0.0
    %559 = vmatpush2.msra.mxu0 %v411
    %560 = vmatprep.mubr.f32.mxu0 %v492
    %561 = vmatmul.mubr.f32.gmra.mxu0 %v458
    %v562 = vpop.f32.mrf.mxu0
    %v563 = vadd.f32 %v490, %v562
    %v564 = vpop.f32.mrf.mxu0
    %565 = vmatprep.mubr.f32.mxu0 %v494
    %566 = vmatmul.mubr.f32.gmra.mxu0 %v459
    %v567 = vpop.f32.mrf.mxu0
    %v568 = vadd.f32 %v490, %v567
    %v569 = vpop.f32.mrf.mxu0
    %570 = vdwg.mxu0
    %v571 = vmax.f32 %v563, 0.0
    %v572 = vmax.f32 %v568, 0.0
    %v574 = vsel %vm361, %v426, 0
    %v577 = vsel %vm361, %v427, 0
    %579 = vmatprep.subr.mxu0 0.0
    %580 = vmatpush1.msra.mxu0 %v410
    %581 = vmatprep.subr.mxu0 0.0
    %582 = vmatpush1.msra.mxu0 %v409
    %583 = vmatprep.subr.mxu0 0.0
    %584 = vmatpush1.msra.mxu0 %v408
    %585 = vmatprep.subr.mxu0 0.0
    %586 = vmatpush1.msra.mxu0 %v407
    %587 = vmatprep.subr.mxu0 0.0
    %588 = vmatpush1.msra.mxu0 %v406
    %589 = vmatprep.subr.mxu0 0.0
    %590 = vmatpush1.msra.mxu0 %v405
    %591 = vmatprep.subr.mxu0 0.0
    %592 = vmatpush1.msra.mxu0 %v404
    %593 = vmatprep.subr.mxu0 0.0
    %594 = vmatpush1.msra.mxu0 %v403
    %595 = vmatprep.subr.mxu0 0.0
    %596 = vmatpush1.msra.mxu0 %v402
    %597 = vmatprep.subr.mxu0 0.0
    %598 = vmatpush1.msra.mxu0 %v401
    %599 = vmatprep.subr.mxu0 0.0
    %600 = vmatpush1.msra.mxu0 %v400
    %601 = vmatprep.subr.mxu0 0.0
    %602 = vmatpush1.msra.mxu0 %v399
    %603 = vmatprep.subr.mxu0 0.0
    %604 = vmatpush1.msra.mxu0 %v398
    %605 = vmatprep.subr.mxu0 0.0
    %606 = vmatpush1.msra.mxu0 %v397
    %607 = vmatprep.subr.mxu0 0.0
    %608 = vmatpush1.msra.mxu0 %v396
    %609 = vmatprep.subr.mxu0 0.0
    %610 = vmatpush1.msra.mxu0 %v395
    %611 = vmatprep.subr.mxu0 0.0
    %612 = vmatpush2.msra.mxu0 0.0
    %613 = vmatprep.subr.mxu0 0.0
    %614 = vmatpush2.msra.mxu0 0.0
    %615 = vmatprep.subr.mxu0 0.0
    %616 = vmatpush2.msra.mxu0 0.0
    %617 = vmatprep.subr.mxu0 0.0
    %618 = vmatpush2.msra.mxu0 0.0
    %619 = vmatprep.subr.mxu0 0.0
    %620 = vmatpush2.msra.mxu0 0.0
    %621 = vmatprep.subr.mxu0 0.0
    %622 = vmatpush2.msra.mxu0 0.0
    %623 = vmatprep.subr.mxu0 0.0
    %624 = vmatpush2.msra.mxu0 0.0
    %625 = vmatprep.subr.mxu0 0.0
    %626 = vmatpush2.msra.mxu0 0.0
    %627 = vmatprep.subr.mxu0 0.0
    %628 = vmatpush2.msra.mxu0 0.0
    %629 = vmatprep.subr.mxu0 0.0
    %630 = vmatpush2.msra.mxu0 0.0
    %631 = vmatprep.subr.mxu0 0.0
    %632 = vmatpush2.msra.mxu0 0.0
    %633 = vmatprep.subr.mxu0 0.0
    %634 = vmatpush2.msra.mxu0 0.0
    %635 = vmatprep.subr.mxu0 0.0
    %636 = vmatpush2.msra.mxu0 %v414
    %637 = vmatprep.subr.mxu0 0.0
    %638 = vmatpush2.msra.mxu0 %v413
    %639 = vmatprep.subr.mxu0 0.0
    %640 = vmatpush2.msra.mxu0 %v412
    %641 = vmatprep.subr.mxu0 0.0
    %642 = vmatpush2.msra.mxu0 %v411
    %643 = vmatprep.mubr.f32.mxu0 %v574
    %644 = vmatmul.mubr.f32.gmra.mxu0 %v484
    %v645 = vpop.f32.mrf.mxu0
    %v646 = vadd.f32 %v490, %v645
    %v647 = vpop.f32.mrf.mxu0
    %648 = vmatprep.mubr.f32.mxu0 %v577
    %649 = vmatmul.mubr.f32.gmra.mxu0 %v485
    %v650 = vpop.f32.mrf.mxu0
    %v651 = vadd.f32 %v490, %v650
    %v652 = vpop.f32.mrf.mxu0
    %653 = vdwg.mxu0
    %v654 = vmax.f32 %v646, 0.0
    %v655 = vmax.f32 %v651, 0.0
    %v656 = vmax.f32 %v571, %v654
    %v657 = vmax.f32 %v572, %v655
    %v658 = vld [vmem:[%s383] sm:$0xff]
    %v659 = vld [vmem:[%s383 + $0x8] sm:$0x7f]
    %v660 = vld [vmem:[%s383 + $0x1] sm:$0xff]
    %v661 = vld [vmem:[%s383 + $0x9] sm:$0x7f]
    %v662 = vld [vmem:[%s383 + $0x2] sm:$0xff]
    %v663 = vld [vmem:[%s383 + $0xa] sm:$0x7f]
    %v664 = vld [vmem:[%s389] sm:$0xff]
    %v665 = vld [vmem:[%s389 + $0x8] sm:$0x7f]
    %v666 = vld [vmem:[%s389 + $0x1] sm:$0xff]
    %v667 = vld [vmem:[%s389 + $0x9] sm:$0x7f]
    %v668 = vld [vmem:[%s389 + $0x2] sm:$0xff]
    %v669 = vld [vmem:[%s389 + $0xa] sm:$0x7f]
    %672 = vrot.lane.b32.xlu0 %v664, 32
    %v673 = vpop.permute.xlu0 %672
    %674 = vrot.lane.b32.xlu0 %v665, 32
    %v675 = vpop.permute.xlu0 %674
    %680 = vrot.lane.b32.xlu0 %v660, 64
    %v681 = vpop.permute.xlu0 %680
    %682 = vrot.lane.b32.xlu0 %v661, 64
    %v683 = vpop.permute.xlu0 %682
    %688 = vrot.lane.b32.xlu0 %v666, 96
    %v689 = vpop.permute.xlu0 %688
    %690 = vrot.lane.b32.xlu0 %v667, 96
    %v691 = vpop.permute.xlu0 %690
    %v694 = vsel %vm361, %v658, %v673
    %v695 = vsel %vm361, %v659, %v675
    %v696 = vsel %vm454, %v694, %v681
    %v697 = vsel %vm454, %v695, %v683
    %v698 = vsel %vm457, %v696, %v689
    %v699 = vsel %vm457, %v697, %v691
    %700 = vrot.lane.b32.xlu0 %v660, 32
    %v701 = vpop.permute.xlu0 %700
    %702 = vrot.lane.b32.xlu0 %v661, 32
    %v703 = vpop.permute.xlu0 %702
    %706 = vrot.lane.b32.xlu0 %v666, 64
    %v707 = vpop.permute.xlu0 %706
    %708 = vrot.lane.b32.xlu0 %v667, 64
    %v709 = vpop.permute.xlu0 %708
    %714 = vrot.lane.b32.xlu0 %v662, 96
    %v715 = vpop.permute.xlu0 %714
    %716 = vrot.lane.b32.xlu0 %v663, 96
    %v717 = vpop.permute.xlu0 %716
    %v720 = vsel %vm361, %v664, %v701
    %v721 = vsel %vm361, %v665, %v703
    %v722 = vsel %vm454, %v720, %v707
    %v723 = vsel %vm454, %v721, %v709
    %v724 = vsel %vm457, %v722, %v715
    %v725 = vsel %vm457, %v723, %v717
    %v726 = vsel %vm361, %v662, 0
    %v728 = vsel %vm361, %v663, 0
    %730 = vmatprep.subr.mxu0 0.0
    %731 = vmatpush1.msra.mxu0 %v410
    %732 = vmatprep.subr.mxu0 0.0
    %733 = vmatpush1.msra.mxu0 %v409
    %734 = vmatprep.subr.mxu0 0.0
    %735 = vmatpush1.msra.mxu0 %v408
    %736 = vmatprep.subr.mxu0 0.0
    %737 = vmatpush1.msra.mxu0 %v407
    %738 = vmatprep.subr.mxu0 0.0
    %739 = vmatpush1.msra.mxu0 %v406
    %740 = vmatprep.subr.mxu0 0.0
    %741 = vmatpush1.msra.mxu0 %v405
    %742 = vmatprep.subr.mxu0 0.0
    %743 = vmatpush1.msra.mxu0 %v404
    %744 = vmatprep.subr.mxu0 0.0
    %745 = vmatpush1.msra.mxu0 %v403
    %746 = vmatprep.subr.mxu0 0.0
    %747 = vmatpush1.msra.mxu0 %v402
    %748 = vmatprep.subr.mxu0 0.0
    %749 = vmatpush1.msra.mxu0 %v401
    %750 = vmatprep.subr.mxu0 0.0
    %751 = vmatpush1.msra.mxu0 %v400
    %752 = vmatprep.subr.mxu0 0.0
    %753 = vmatpush1.msra.mxu0 %v399
    %754 = vmatprep.subr.mxu0 0.0
    %755 = vmatpush1.msra.mxu0 %v398
    %756 = vmatprep.subr.mxu0 0.0
    %757 = vmatpush1.msra.mxu0 %v397
    %758 = vmatprep.subr.mxu0 0.0
    %759 = vmatpush1.msra.mxu0 %v396
    %760 = vmatprep.subr.mxu0 0.0
    %761 = vmatpush1.msra.mxu0 %v395
    %762 = vmatprep.subr.mxu0 0.0
    %763 = vmatpush2.msra.mxu0 0.0
    %764 = vmatprep.subr.mxu0 0.0
    %765 = vmatpush2.msra.mxu0 0.0
    %766 = vmatprep.subr.mxu0 0.0
    %767 = vmatpush2.msra.mxu0 0.0
    %768 = vmatprep.subr.mxu0 0.0
    %769 = vmatpush2.msra.mxu0 0.0
    %770 = vmatprep.subr.mxu0 0.0
    %771 = vmatpush2.msra.mxu0 0.0
    %772 = vmatprep.subr.mxu0 0.0
    %773 = vmatpush2.msra.mxu0 0.0
    %774 = vmatprep.subr.mxu0 0.0
    %775 = vmatpush2.msra.mxu0 0.0
    %776 = vmatprep.subr.mxu0 0.0
    %777 = vmatpush2.msra.mxu0 0.0
    %778 = vmatprep.subr.mxu0 0.0
    %779 = vmatpush2.msra.mxu0 0.0
    %780 = vmatprep.subr.mxu0 0.0
    %781 = vmatpush2.msra.mxu0 0.0
    %782 = vmatprep.subr.mxu0 0.0
    %783 = vmatpush2.msra.mxu0 0.0
    %784 = vmatprep.subr.mxu0 0.0
    %785 = vmatpush2.msra.mxu0 0.0
    %786 = vmatprep.subr.mxu0 0.0
    %787 = vmatpush2.msra.mxu0 %v414
    %788 = vmatprep.subr.mxu0 0.0
    %789 = vmatpush2.msra.mxu0 %v413
    %790 = vmatprep.subr.mxu0 0.0
    %791 = vmatpush2.msra.mxu0 %v412
    %792 = vmatprep.subr.mxu0 0.0
    %793 = vmatpush2.msra.mxu0 %v411
    %794 = vmatprep.mubr.f32.mxu0 %v726
    %795 = vmatmul.mubr.f32.gmra.mxu0 %v698
    %v796 = vpop.f32.mrf.mxu0
    %v797 = vadd.f32 %v490, %v796
    %v798 = vpop.f32.mrf.mxu0
    %799 = vmatprep.mubr.f32.mxu0 %v728
    %800 = vmatmul.mubr.f32.gmra.mxu0 %v699
    %v801 = vpop.f32.mrf.mxu0
    %v802 = vadd.f32 %v490, %v801
    %v803 = vpop.f32.mrf.mxu0
    %804 = vdwg.mxu0
    %v805 = vmax.f32 %v797, 0.0
    %v806 = vmax.f32 %v802, 0.0
    %v808 = vsel %vm361, %v668, 0
    %v811 = vsel %vm361, %v669, 0
    %813 = vmatprep.subr.mxu0 0.0
    %814 = vmatpush1.msra.mxu0 %v410
    %815 = vmatprep.subr.mxu0 0.0
    %816 = vmatpush1.msra.mxu0 %v409
    %817 = vmatprep.subr.mxu0 0.0
    %818 = vmatpush1.msra.mxu0 %v408
    %819 = vmatprep.subr.mxu0 0.0
    %820 = vmatpush1.msra.mxu0 %v407
    %821 = vmatprep.subr.mxu0 0.0
    %822 = vmatpush1.msra.mxu0 %v406
    %823 = vmatprep.subr.mxu0 0.0
    %824 = vmatpush1.msra.mxu0 %v405
    %825 = vmatprep.subr.mxu0 0.0
    %826 = vmatpush1.msra.mxu0 %v404
    %827 = vmatprep.subr.mxu0 0.0
    %828 = vmatpush1.msra.mxu0 %v403
    %829 = vmatprep.subr.mxu0 0.0
    %830 = vmatpush1.msra.mxu0 %v402
    %831 = vmatprep.subr.mxu0 0.0
    %832 = vmatpush1.msra.mxu0 %v401
    %833 = vmatprep.subr.mxu0 0.0
    %834 = vmatpush1.msra.mxu0 %v400
    %835 = vmatprep.subr.mxu0 0.0
    %836 = vmatpush1.msra.mxu0 %v399
    %837 = vmatprep.subr.mxu0 0.0
    %838 = vmatpush1.msra.mxu0 %v398
    %839 = vmatprep.subr.mxu0 0.0
    %840 = vmatpush1.msra.mxu0 %v397
    %841 = vmatprep.subr.mxu0 0.0
    %842 = vmatpush1.msra.mxu0 %v396
    %843 = vmatprep.subr.mxu0 0.0
    %844 = vmatpush1.msra.mxu0 %v395
    %845 = vmatprep.subr.mxu0 0.0
    %846 = vmatpush2.msra.mxu0 0.0
    %847 = vmatprep.subr.mxu0 0.0
    %848 = vmatpush2.msra.mxu0 0.0
    %849 = vmatprep.subr.mxu0 0.0
    %850 = vmatpush2.msra.mxu0 0.0
    %851 = vmatprep.subr.mxu0 0.0
    %852 = vmatpush2.msra.mxu0 0.0
    %853 = vmatprep.subr.mxu0 0.0
    %854 = vmatpush2.msra.mxu0 0.0
    %855 = vmatprep.subr.mxu0 0.0
    %856 = vmatpush2.msra.mxu0 0.0
    %857 = vmatprep.subr.mxu0 0.0
    %858 = vmatpush2.msra.mxu0 0.0
    %859 = vmatprep.subr.mxu0 0.0
    %860 = vmatpush2.msra.mxu0 0.0
    %861 = vmatprep.subr.mxu0 0.0
    %862 = vmatpush2.msra.mxu0 0.0
    %863 = vmatprep.subr.mxu0 0.0
    %864 = vmatpush2.msra.mxu0 0.0
    %865 = vmatprep.subr.mxu0 0.0
    %866 = vmatpush2.msra.mxu0 0.0
    %867 = vmatprep.subr.mxu0 0.0
    %868 = vmatpush2.msra.mxu0 0.0
    %869 = vmatprep.subr.mxu0 0.0
    %870 = vmatpush2.msra.mxu0 %v414
    %871 = vmatprep.subr.mxu0 0.0
    %872 = vmatpush2.msra.mxu0 %v413
    %873 = vmatprep.subr.mxu0 0.0
    %874 = vmatpush2.msra.mxu0 %v412
    %875 = vmatprep.subr.mxu0 0.0
    %876 = vmatpush2.msra.mxu0 %v411
    %877 = vmatprep.mubr.f32.mxu0 %v808
    %878 = vmatmul.mubr.f32.gmra.mxu0 %v724
    %v879 = vpop.f32.mrf.mxu0
    %v880 = vadd.f32 %v490, %v879
    %v881 = vpop.f32.mrf.mxu0
    %882 = vmatprep.mubr.f32.mxu0 %v811
    %883 = vmatmul.mubr.f32.gmra.mxu0 %v725
    %v884 = vpop.f32.mrf.mxu0
    %v885 = vadd.f32 %v490, %v884
    %v886 = vpop.f32.mrf.mxu0
    %887 = vdwg.mxu0
    %v888 = vmax.f32 %v880, 0.0
    %v889 = vmax.f32 %v885, 0.0
    %v890 = vmax.f32 %v805, %v888
    %v891 = vmax.f32 %v806, %v889
    %v892 = vlaneseq
    %v893 = vshrl.u32 %v892, 7
    %vm894 = vcmp.eq.s32.totalorder %v893, 0
    %v895 = vsel %vm894, 1, 0
    %v896 = vcvt.s32.f32 %v895
    %vm897 = vcmp.eq.s32.totalorder %v893, 1
    %v898 = vsel %vm897, 1, 0
    %v899 = vcvt.s32.f32 %v898
    %v900 = vlaneseq
    %v901 = vshrl.u32 %v900, 7
    %v902 = vsub.s32 0, %v901
    %v903 = vrot.slane %v656, %v902
    %v904 = vmul.f32 %v896, %v903
    %v905 = vlaneseq
    %v906 = vshrl.u32 %v905, 7
    %v907 = vsub.s32 0, %v906
    %v908 = vrot.slane %v890, %v907
    %v909 = vmul.f32 %v899, %v908
    %v910 = vadd.f32 %v904, %v909
    %v911 = vld [vmem:[%s6] sm:$0xff]
    %v912 = vld [vmem:[%s6 + $0x8] sm:$0xff]
    %v913 = vld [vmem:[%s6 + $0x10] sm:$0xff]
    %v914 = vld [vmem:[%s6 + $0x18] sm:$0xff]
    %v915 = vld [vmem:[%s6 + $0x20] sm:$0xff]
    %v916 = vld [vmem:[%s6 + $0x28] sm:$0xff]
    %v917 = vld [vmem:[%s6 + $0x30] sm:$0xff]
    %v918 = vld [vmem:[%s6 + $0x38] sm:$0xff]
    %v919 = vld [vmem:[%s6 + $0x40] sm:$0xff]
    %v920 = vld [vmem:[%s6 + $0x48] sm:$0xff]
    %v921 = vld [vmem:[%s6 + $0x50] sm:$0xff]
    %v922 = vld [vmem:[%s6 + $0x58] sm:$0xff]
    %v923 = vld [vmem:[%s6 + $0x60] sm:$0xff]
    %v924 = vld [vmem:[%s6 + $0x68] sm:$0xff]
    %v925 = vld [vmem:[%s6 + $0x70] sm:$0xff]
    %v926 = vld [vmem:[%s6 + $0x78] sm:$0xff]
    %v927 = vlaneseq
    %v928 = vshrl.u32 %v927, 7
    %v929 = vsub.s32 1, %v928
    %v930 = vrot.slane %v656, %v929
    %v931 = vmul.f32 %v896, %v930
    %v932 = vlaneseq
    %v933 = vshrl.u32 %v932, 7
    %v934 = vsub.s32 1, %v933
    %v935 = vrot.slane %v890, %v934
    %v936 = vmul.f32 %v899, %v935
    %v937 = vadd.f32 %v931, %v936
    %s938 = scalar_lea.vmem %s6, 128
    %v939 = vld [vmem:[%s938] sm:$0xff]
    %v940 = vld [vmem:[%s938 + $0x8] sm:$0xff]
    %v941 = vld [vmem:[%s938 + $0x10] sm:$0xff]
    %v942 = vld [vmem:[%s938 + $0x18] sm:$0xff]
    %v943 = vld [vmem:[%s938 + $0x20] sm:$0xff]
    %v944 = vld [vmem:[%s938 + $0x28] sm:$0xff]
    %v945 = vld [vmem:[%s938 + $0x30] sm:$0xff]
    %v946 = vld [vmem:[%s938 + $0x38] sm:$0xff]
    %v947 = vld [vmem:[%s938 + $0x40] sm:$0xff]
    %v948 = vld [vmem:[%s938 + $0x48] sm:$0xff]
    %v949 = vld [vmem:[%s938 + $0x50] sm:$0xff]
    %v950 = vld [vmem:[%s938 + $0x58] sm:$0xff]
    %v951 = vld [vmem:[%s938 + $0x60] sm:$0xff]
    %v952 = vld [vmem:[%s938 + $0x68] sm:$0xff]
    %v953 = vld [vmem:[%s938 + $0x70] sm:$0xff]
    %v954 = vld [vmem:[%s938 + $0x78] sm:$0xff]
    %v956 = vsel %vm454, %v937, 0
    %958 = vmatprep.subr.mxu0 0.0
    %959 = vmatpush1.msra.mxu0 0.0
    %960 = vmatprep.subr.mxu0 0.0
    %961 = vmatpush1.msra.mxu0 0.0
    %962 = vmatprep.subr.mxu0 0.0
    %963 = vmatpush1.msra.mxu0 0.0
    %964 = vmatprep.subr.mxu0 0.0
    %965 = vmatpush1.msra.mxu0 0.0
    %966 = vmatprep.subr.mxu0 0.0
    %967 = vmatpush1.msra.mxu0 0.0
    %968 = vmatprep.subr.mxu0 0.0
    %969 = vmatpush1.msra.mxu0 0.0
    %970 = vmatprep.subr.mxu0 0.0
    %971 = vmatpush1.msra.mxu0 0.0
    %972 = vmatprep.subr.mxu0 0.0
    %973 = vmatpush1.msra.mxu0 0.0
    %974 = vmatprep.subr.mxu0 %v954
    %975 = vmatpush1.msra.mxu0 %v953
    %976 = vmatprep.subr.mxu0 %v952
    %977 = vmatpush1.msra.mxu0 %v951
    %978 = vmatprep.subr.mxu0 %v950
    %979 = vmatpush1.msra.mxu0 %v949
    %980 = vmatprep.subr.mxu0 %v948
    %981 = vmatpush1.msra.mxu0 %v947
    %982 = vmatprep.subr.mxu0 %v946
    %983 = vmatpush1.msra.mxu0 %v945
    %984 = vmatprep.subr.mxu0 %v944
    %985 = vmatpush1.msra.mxu0 %v943
    %986 = vmatprep.subr.mxu0 %v942
    %987 = vmatpush1.msra.mxu0 %v941
    %988 = vmatprep.subr.mxu0 %v940
    %989 = vmatpush1.msra.mxu0 %v939
    %990 = vmatprep.subr.mxu0 0.0
    %991 = vmatpush2.msra.mxu0 0.0
    %992 = vmatprep.subr.mxu0 0.0
    %993 = vmatpush2.msra.mxu0 0.0
    %994 = vmatprep.subr.mxu0 0.0
    %995 = vmatpush2.msra.mxu0 0.0
    %996 = vmatprep.subr.mxu0 0.0
    %997 = vmatpush2.msra.mxu0 0.0
    %998 = vmatprep.subr.mxu0 0.0
    %999 = vmatpush2.msra.mxu0 0.0
    %1000 = vmatprep.subr.mxu0 0.0
    %1001 = vmatpush2.msra.mxu0 0.0
    %1002 = vmatprep.subr.mxu0 0.0
    %1003 = vmatpush2.msra.mxu0 0.0
    %1004 = vmatprep.subr.mxu0 0.0
    %1005 = vmatpush2.msra.mxu0 0.0
    %1006 = vmatprep.subr.mxu0 0.0
    %1007 = vmatpush2.msra.mxu0 0.0
    %1008 = vmatprep.subr.mxu0 0.0
    %1009 = vmatpush2.msra.mxu0 0.0
    %1010 = vmatprep.subr.mxu0 0.0
    %1011 = vmatpush2.msra.mxu0 0.0
    %1012 = vmatprep.subr.mxu0 0.0
    %1013 = vmatpush2.msra.mxu0 0.0
    %1014 = vmatprep.subr.mxu0 0.0
    %1015 = vmatpush2.msra.mxu0 0.0
    %1016 = vmatprep.subr.mxu0 0.0
    %1017 = vmatpush2.msra.mxu0 0.0
    %1018 = vmatprep.subr.mxu0 0.0
    %1019 = vmatpush2.msra.mxu0 0.0
    %1020 = vmatprep.subr.mxu0 0.0
    %1021 = vmatpush2.msra.mxu0 0.0
    %1022 = vmatprep.mubr.f32.mxu0 0.0
    %1023 = vmatmul.mubr.f32.gmra.mxu0 %v956
    %v1024 = vpop.f32.mrf.mxu0
    %v1025 = vadd.f32 0.0, %v1024
    %v1026 = vpop.f32.mrf.mxu0
    %v1027 = vadd.f32 0.0, %v1026
    %1028 = vdwg.mxu0
    %v1030 = vsel %vm454, %v910, 0
    %1032 = vmatprep.subr.mxu0 0.0
    %1033 = vmatpush1.msra.mxu0 0.0
    %1034 = vmatprep.subr.mxu0 0.0
    %1035 = vmatpush1.msra.mxu0 0.0
    %1036 = vmatprep.subr.mxu0 0.0
    %1037 = vmatpush1.msra.mxu0 0.0
    %1038 = vmatprep.subr.mxu0 0.0
    %1039 = vmatpush1.msra.mxu0 0.0
    %1040 = vmatprep.subr.mxu0 0.0
    %1041 = vmatpush1.msra.mxu0 0.0
    %1042 = vmatprep.subr.mxu0 0.0
    %1043 = vmatpush1.msra.mxu0 0.0
    %1044 = vmatprep.subr.mxu0 0.0
    %1045 = vmatpush1.msra.mxu0 0.0
    %1046 = vmatprep.subr.mxu0 0.0
    %1047 = vmatpush1.msra.mxu0 0.0
    %1048 = vmatprep.subr.mxu0 %v926
    %1049 = vmatpush1.msra.mxu0 %v925
    %1050 = vmatprep.subr.mxu0 %v924
    %1051 = vmatpush1.msra.mxu0 %v923
    %1052 = vmatprep.subr.mxu0 %v922
    %1053 = vmatpush1.msra.mxu0 %v921
    %1054 = vmatprep.subr.mxu0 %v920
    %1055 = vmatpush1.msra.mxu0 %v919
    %1056 = vmatprep.subr.mxu0 %v918
    %1057 = vmatpush1.msra.mxu0 %v917
    %1058 = vmatprep.subr.mxu0 %v916
    %1059 = vmatpush1.msra.mxu0 %v915
    %1060 = vmatprep.subr.mxu0 %v914
    %1061 = vmatpush1.msra.mxu0 %v913
    %1062 = vmatprep.subr.mxu0 %v912
    %1063 = vmatpush1.msra.mxu0 %v911
    %1064 = vmatprep.subr.mxu0 0.0
    %1065 = vmatpush2.msra.mxu0 0.0
    %1066 = vmatprep.subr.mxu0 0.0
    %1067 = vmatpush2.msra.mxu0 0.0
    %1068 = vmatprep.subr.mxu0 0.0
    %1069 = vmatpush2.msra.mxu0 0.0
    %1070 = vmatprep.subr.mxu0 0.0
    %1071 = vmatpush2.msra.mxu0 0.0
    %1072 = vmatprep.subr.mxu0 0.0
    %1073 = vmatpush2.msra.mxu0 0.0
    %1074 = vmatprep.subr.mxu0 0.0
    %1075 = vmatpush2.msra.mxu0 0.0
    %1076 = vmatprep.subr.mxu0 0.0
    %1077 = vmatpush2.msra.mxu0 0.0
    %1078 = vmatprep.subr.mxu0 0.0
    %1079 = vmatpush2.msra.mxu0 0.0
    %1080 = vmatprep.subr.mxu0 0.0
    %1081 = vmatpush2.msra.mxu0 0.0
    %1082 = vmatprep.subr.mxu0 0.0
    %1083 = vmatpush2.msra.mxu0 0.0
    %1084 = vmatprep.subr.mxu0 0.0
    %1085 = vmatpush2.msra.mxu0 0.0
    %1086 = vmatprep.subr.mxu0 0.0
    %1087 = vmatpush2.msra.mxu0 0.0
    %1088 = vmatprep.subr.mxu0 0.0
    %1089 = vmatpush2.msra.mxu0 0.0
    %1090 = vmatprep.subr.mxu0 0.0
    %1091 = vmatpush2.msra.mxu0 0.0
    %1092 = vmatprep.subr.mxu0 0.0
    %1093 = vmatpush2.msra.mxu0 0.0
    %1094 = vmatprep.subr.mxu0 0.0
    %1095 = vmatpush2.msra.mxu0 0.0
    %1096 = vmatprep.mubr.f32.mxu0 0.0
    %1097 = vmatmul.mubr.f32.gmra.mxu0 %v1030
    %v1098 = vpop.f32.mrf.mxu0
    %v1099 = vadd.f32 %v1025, %v1098
    %v1100 = vpop.f32.mrf.mxu0
    %v1101 = vadd.f32 %v1027, %v1100
    %1102 = vdwg.mxu0
    %v1103 = vlaneseq
    %v1104 = vshrl.u32 %v1103, 7
    %v1105 = vsub.s32 2, %v1104
    %v1106 = vrot.slane %v656, %v1105
    %v1107 = vmul.f32 %v896, %v1106
    %v1108 = vlaneseq
    %v1109 = vshrl.u32 %v1108, 7
    %v1110 = vsub.s32 2, %v1109
    %v1111 = vrot.slane %v890, %v1110
    %v1112 = vmul.f32 %v899, %v1111
    %v1113 = vadd.f32 %v1107, %v1112
    %s1114 = scalar_lea.vmem %s6, 256
    %v1115 = vld [vmem:[%s1114] sm:$0xff]
    %v1116 = vld [vmem:[%s1114 + $0x8] sm:$0xff]
    %v1117 = vld [vmem:[%s1114 + $0x10] sm:$0xff]
    %v1118 = vld [vmem:[%s1114 + $0x18] sm:$0xff]
    %v1119 = vld [vmem:[%s1114 + $0x20] sm:$0xff]
    %v1120 = vld [vmem:[%s1114 + $0x28] sm:$0xff]
    %v1121 = vld [vmem:[%s1114 + $0x30] sm:$0xff]
    %v1122 = vld [vmem:[%s1114 + $0x38] sm:$0xff]
    %v1123 = vld [vmem:[%s1114 + $0x40] sm:$0xff]
    %v1124 = vld [vmem:[%s1114 + $0x48] sm:$0xff]
    %v1125 = vld [vmem:[%s1114 + $0x50] sm:$0xff]
    %v1126 = vld [vmem:[%s1114 + $0x58] sm:$0xff]
    %v1127 = vld [vmem:[%s1114 + $0x60] sm:$0xff]
    %v1128 = vld [vmem:[%s1114 + $0x68] sm:$0xff]
    %v1129 = vld [vmem:[%s1114 + $0x70] sm:$0xff]
    %v1130 = vld [vmem:[%s1114 + $0x78] sm:$0xff]
    %v1132 = vsel %vm454, %v1113, 0
    %1134 = vmatprep.subr.mxu0 0.0
    %1135 = vmatpush1.msra.mxu0 0.0
    %1136 = vmatprep.subr.mxu0 0.0
    %1137 = vmatpush1.msra.mxu0 0.0
    %1138 = vmatprep.subr.mxu0 0.0
    %1139 = vmatpush1.msra.mxu0 0.0
    %1140 = vmatprep.subr.mxu0 0.0
    %1141 = vmatpush1.msra.mxu0 0.0
    %1142 = vmatprep.subr.mxu0 0.0
    %1143 = vmatpush1.msra.mxu0 0.0
    %1144 = vmatprep.subr.mxu0 0.0
    %1145 = vmatpush1.msra.mxu0 0.0
    %1146 = vmatprep.subr.mxu0 0.0
    %1147 = vmatpush1.msra.mxu0 0.0
    %1148 = vmatprep.subr.mxu0 0.0
    %1149 = vmatpush1.msra.mxu0 0.0
    %1150 = vmatprep.subr.mxu0 %v1130
    %1151 = vmatpush1.msra.mxu0 %v1129
    %1152 = vmatprep.subr.mxu0 %v1128
    %1153 = vmatpush1.msra.mxu0 %v1127
    %1154 = vmatprep.subr.mxu0 %v1126
    %1155 = vmatpush1.msra.mxu0 %v1125
    %1156 = vmatprep.subr.mxu0 %v1124
    %1157 = vmatpush1.msra.mxu0 %v1123
    %1158 = vmatprep.subr.mxu0 %v1122
    %1159 = vmatpush1.msra.mxu0 %v1121
    %1160 = vmatprep.subr.mxu0 %v1120
    %1161 = vmatpush1.msra.mxu0 %v1119
    %1162 = vmatprep.subr.mxu0 %v1118
    %1163 = vmatpush1.msra.mxu0 %v1117
    %1164 = vmatprep.subr.mxu0 %v1116
    %1165 = vmatpush1.msra.mxu0 %v1115
    %1166 = vmatprep.subr.mxu0 0.0
    %1167 = vmatpush2.msra.mxu0 0.0
    %1168 = vmatprep.subr.mxu0 0.0
    %1169 = vmatpush2.msra.mxu0 0.0
    %1170 = vmatprep.subr.mxu0 0.0
    %1171 = vmatpush2.msra.mxu0 0.0
    %1172 = vmatprep.subr.mxu0 0.0
    %1173 = vmatpush2.msra.mxu0 0.0
    %1174 = vmatprep.subr.mxu0 0.0
    %1175 = vmatpush2.msra.mxu0 0.0
    %1176 = vmatprep.subr.mxu0 0.0
    %1177 = vmatpush2.msra.mxu0 0.0
    %1178 = vmatprep.subr.mxu0 0.0
    %1179 = vmatpush2.msra.mxu0 0.0
    %1180 = vmatprep.subr.mxu0 0.0
    %1181 = vmatpush2.msra.mxu0 0.0
    %1182 = vmatprep.subr.mxu0 0.0
    %1183 = vmatpush2.msra.mxu0 0.0
    %1184 = vmatprep.subr.mxu0 0.0
    %1185 = vmatpush2.msra.mxu0 0.0
    %1186 = vmatprep.subr.mxu0 0.0
    %1187 = vmatpush2.msra.mxu0 0.0
    %1188 = vmatprep.subr.mxu0 0.0
    %1189 = vmatpush2.msra.mxu0 0.0
    %1190 = vmatprep.subr.mxu0 0.0
    %1191 = vmatpush2.msra.mxu0 0.0
    %1192 = vmatprep.subr.mxu0 0.0
    %1193 = vmatpush2.msra.mxu0 0.0
    %1194 = vmatprep.subr.mxu0 0.0
    %1195 = vmatpush2.msra.mxu0 0.0
    %1196 = vmatprep.subr.mxu0 0.0
    %1197 = vmatpush2.msra.mxu0 0.0
    %1198 = vmatprep.mubr.f32.mxu0 0.0
    %1199 = vmatmul.mubr.f32.gmra.mxu0 %v1132
    %v1200 = vpop.f32.mrf.mxu0
    %v1201 = vadd.f32 0.0, %v1200
    %v1202 = vpop.f32.mrf.mxu0
    %v1203 = vadd.f32 0.0, %v1202
    %1204 = vdwg.mxu0
    %v1205 = vadd.f32 %v1099, %v1201
    %v1206 = vadd.f32 %v1101, %v1203
    %v1207 = vlaneseq
    %v1208 = vshrl.u32 %v1207, 7
    %v1209 = vsub.s32 3, %v1208
    %v1210 = vrot.slane %v656, %v1209
    %v1211 = vmul.f32 %v896, %v1210
    %v1212 = vlaneseq
    %v1213 = vshrl.u32 %v1212, 7
    %v1214 = vsub.s32 3, %v1213
    %v1215 = vrot.slane %v890, %v1214
    %v1216 = vmul.f32 %v899, %v1215
    %v1217 = vadd.f32 %v1211, %v1216
    %s1218 = scalar_lea.vmem %s6, 384
    %v1219 = vld [vmem:[%s1218] sm:$0xff]
    %v1220 = vld [vmem:[%s1218 + $0x8] sm:$0xff]
    %v1221 = vld [vmem:[%s1218 + $0x10] sm:$0xff]
    %v1222 = vld [vmem:[%s1218 + $0x18] sm:$0xff]
    %v1223 = vld [vmem:[%s1218 + $0x20] sm:$0xff]
    %v1224 = vld [vmem:[%s1218 + $0x28] sm:$0xff]
    %v1225 = vld [vmem:[%s1218 + $0x30] sm:$0xff]
    %v1226 = vld [vmem:[%s1218 + $0x38] sm:$0xff]
    %v1227 = vld [vmem:[%s1218 + $0x40] sm:$0xff]
    %v1228 = vld [vmem:[%s1218 + $0x48] sm:$0xff]
    %v1229 = vld [vmem:[%s1218 + $0x50] sm:$0xff]
    %v1230 = vld [vmem:[%s1218 + $0x58] sm:$0xff]
    %v1231 = vld [vmem:[%s1218 + $0x60] sm:$0xff]
    %v1232 = vld [vmem:[%s1218 + $0x68] sm:$0xff]
    %v1233 = vld [vmem:[%s1218 + $0x70] sm:$0xff]
    %v1234 = vld [vmem:[%s1218 + $0x78] sm:$0xff]
    %v1236 = vsel %vm454, %v1217, 0
    %1238 = vmatprep.subr.mxu0 0.0
    %1239 = vmatpush1.msra.mxu0 0.0
    %1240 = vmatprep.subr.mxu0 0.0
    %1241 = vmatpush1.msra.mxu0 0.0
    %1242 = vmatprep.subr.mxu0 0.0
    %1243 = vmatpush1.msra.mxu0 0.0
    %1244 = vmatprep.subr.mxu0 0.0
    %1245 = vmatpush1.msra.mxu0 0.0
    %1246 = vmatprep.subr.mxu0 0.0
    %1247 = vmatpush1.msra.mxu0 0.0
    %1248 = vmatprep.subr.mxu0 0.0
    %1249 = vmatpush1.msra.mxu0 0.0
    %1250 = vmatprep.subr.mxu0 0.0
    %1251 = vmatpush1.msra.mxu0 0.0
    %1252 = vmatprep.subr.mxu0 0.0
    %1253 = vmatpush1.msra.mxu0 0.0
    %1254 = vmatprep.subr.mxu0 %v1234
    %1255 = vmatpush1.msra.mxu0 %v1233
    %1256 = vmatprep.subr.mxu0 %v1232
    %1257 = vmatpush1.msra.mxu0 %v1231
    %1258 = vmatprep.subr.mxu0 %v1230
    %1259 = vmatpush1.msra.mxu0 %v1229
    %1260 = vmatprep.subr.mxu0 %v1228
    %1261 = vmatpush1.msra.mxu0 %v1227
    %1262 = vmatprep.subr.mxu0 %v1226
    %1263 = vmatpush1.msra.mxu0 %v1225
    %1264 = vmatprep.subr.mxu0 %v1224
    %1265 = vmatpush1.msra.mxu0 %v1223
    %1266 = vmatprep.subr.mxu0 %v1222
    %1267 = vmatpush1.msra.mxu0 %v1221
    %1268 = vmatprep.subr.mxu0 %v1220
    %1269 = vmatpush1.msra.mxu0 %v1219
    %1270 = vmatprep.subr.mxu0 0.0
    %1271 = vmatpush2.msra.mxu0 0.0
    %1272 = vmatprep.subr.mxu0 0.0
    %1273 = vmatpush2.msra.mxu0 0.0
    %1274 = vmatprep.subr.mxu0 0.0
    %1275 = vmatpush2.msra.mxu0 0.0
    %1276 = vmatprep.subr.mxu0 0.0
    %1277 = vmatpush2.msra.mxu0 0.0
    %1278 = vmatprep.subr.mxu0 0.0
    %1279 = vmatpush2.msra.mxu0 0.0
    %1280 = vmatprep.subr.mxu0 0.0
    %1281 = vmatpush2.msra.mxu0 0.0
    %1282 = vmatprep.subr.mxu0 0.0
    %1283 = vmatpush2.msra.mxu0 0.0
    %1284 = vmatprep.subr.mxu0 0.0
    %1285 = vmatpush2.msra.mxu0 0.0
    %1286 = vmatprep.subr.mxu0 0.0
    %1287 = vmatpush2.msra.mxu0 0.0
    %1288 = vmatprep.subr.mxu0 0.0
    %1289 = vmatpush2.msra.mxu0 0.0
    %1290 = vmatprep.subr.mxu0 0.0
    %1291 = vmatpush2.msra.mxu0 0.0
    %1292 = vmatprep.subr.mxu0 0.0
    %1293 = vmatpush2.msra.mxu0 0.0
    %1294 = vmatprep.subr.mxu0 0.0
    %1295 = vmatpush2.msra.mxu0 0.0
    %1296 = vmatprep.subr.mxu0 0.0
    %1297 = vmatpush2.msra.mxu0 0.0
    %1298 = vmatprep.subr.mxu0 0.0
    %1299 = vmatpush2.msra.mxu0 0.0
    %1300 = vmatprep.subr.mxu0 0.0
    %1301 = vmatpush2.msra.mxu0 0.0
    %1302 = vmatprep.mubr.f32.mxu0 0.0
    %1303 = vmatmul.mubr.f32.gmra.mxu0 %v1236
    %v1304 = vpop.f32.mrf.mxu0
    %v1305 = vadd.f32 0.0, %v1304
    %v1306 = vpop.f32.mrf.mxu0
    %v1307 = vadd.f32 0.0, %v1306
    %1308 = vdwg.mxu0
    %v1309 = vadd.f32 %v1205, %v1305
    %v1310 = vadd.f32 %v1206, %v1307
    %v1311 = vlaneseq
    %v1312 = vshrl.u32 %v1311, 7
    %v1313 = vsub.s32 4, %v1312
    %v1314 = vrot.slane %v656, %v1313
    %v1315 = vmul.f32 %v896, %v1314
    %v1316 = vlaneseq
    %v1317 = vshrl.u32 %v1316, 7
    %v1318 = vsub.s32 4, %v1317
    %v1319 = vrot.slane %v890, %v1318
    %v1320 = vmul.f32 %v899, %v1319
    %v1321 = vadd.f32 %v1315, %v1320
    %s1322 = scalar_lea.vmem %s6, 512
    %v1323 = vld [vmem:[%s1322] sm:$0xff]
    %v1324 = vld [vmem:[%s1322 + $0x8] sm:$0xff]
    %v1325 = vld [vmem:[%s1322 + $0x10] sm:$0xff]
    %v1326 = vld [vmem:[%s1322 + $0x18] sm:$0xff]
    %v1327 = vld [vmem:[%s1322 + $0x20] sm:$0xff]
    %v1328 = vld [vmem:[%s1322 + $0x28] sm:$0xff]
    %v1329 = vld [vmem:[%s1322 + $0x30] sm:$0xff]
    %v1330 = vld [vmem:[%s1322 + $0x38] sm:$0xff]
    %v1331 = vld [vmem:[%s1322 + $0x40] sm:$0xff]
    %v1332 = vld [vmem:[%s1322 + $0x48] sm:$0xff]
    %v1333 = vld [vmem:[%s1322 + $0x50] sm:$0xff]
    %v1334 = vld [vmem:[%s1322 + $0x58] sm:$0xff]
    %v1335 = vld [vmem:[%s1322 + $0x60] sm:$0xff]
    %v1336 = vld [vmem:[%s1322 + $0x68] sm:$0xff]
    %v1337 = vld [vmem:[%s1322 + $0x70] sm:$0xff]
    %v1338 = vld [vmem:[%s1322 + $0x78] sm:$0xff]
    %v1340 = vsel %vm454, %v1321, 0
    %1342 = vmatprep.subr.mxu0 0.0
    %1343 = vmatpush1.msra.mxu0 0.0
    %1344 = vmatprep.subr.mxu0 0.0
    %1345 = vmatpush1.msra.mxu0 0.0
    %1346 = vmatprep.subr.mxu0 0.0
    %1347 = vmatpush1.msra.mxu0 0.0
    %1348 = vmatprep.subr.mxu0 0.0
    %1349 = vmatpush1.msra.mxu0 0.0
    %1350 = vmatprep.subr.mxu0 0.0
    %1351 = vmatpush1.msra.mxu0 0.0
    %1352 = vmatprep.subr.mxu0 0.0
    %1353 = vmatpush1.msra.mxu0 0.0
    %1354 = vmatprep.subr.mxu0 0.0
    %1355 = vmatpush1.msra.mxu0 0.0
    %1356 = vmatprep.subr.mxu0 0.0
    %1357 = vmatpush1.msra.mxu0 0.0
    %1358 = vmatprep.subr.mxu0 %v1338
    %1359 = vmatpush1.msra.mxu0 %v1337
    %1360 = vmatprep.subr.mxu0 %v1336
    %1361 = vmatpush1.msra.mxu0 %v1335
    %1362 = vmatprep.subr.mxu0 %v1334
    %1363 = vmatpush1.msra.mxu0 %v1333
    %1364 = vmatprep.subr.mxu0 %v1332
    %1365 = vmatpush1.msra.mxu0 %v1331
    %1366 = vmatprep.subr.mxu0 %v1330
    %1367 = vmatpush1.msra.mxu0 %v1329
    %1368 = vmatprep.subr.mxu0 %v1328
    %1369 = vmatpush1.msra.mxu0 %v1327
    %1370 = vmatprep.subr.mxu0 %v1326
    %1371 = vmatpush1.msra.mxu0 %v1325
    %1372 = vmatprep.subr.mxu0 %v1324
    %1373 = vmatpush1.msra.mxu0 %v1323
    %1374 = vmatprep.subr.mxu0 0.0
    %1375 = vmatpush2.msra.mxu0 0.0
    %1376 = vmatprep.subr.mxu0 0.0
    %1377 = vmatpush2.msra.mxu0 0.0
    %1378 = vmatprep.subr.mxu0 0.0
    %1379 = vmatpush2.msra.mxu0 0.0
    %1380 = vmatprep.subr.mxu0 0.0
    %1381 = vmatpush2.msra.mxu0 0.0
    %1382 = vmatprep.subr.mxu0 0.0
    %1383 = vmatpush2.msra.mxu0 0.0
    %1384 = vmatprep.subr.mxu0 0.0
    %1385 = vmatpush2.msra.mxu0 0.0
    %1386 = vmatprep.subr.mxu0 0.0
    %1387 = vmatpush2.msra.mxu0 0.0
    %1388 = vmatprep.subr.mxu0 0.0
    %1389 = vmatpush2.msra.mxu0 0.0
    %1390 = vmatprep.subr.mxu0 0.0
    %1391 = vmatpush2.msra.mxu0 0.0
    %1392 = vmatprep.subr.mxu0 0.0
    %1393 = vmatpush2.msra.mxu0 0.0
    %1394 = vmatprep.subr.mxu0 0.0
    %1395 = vmatpush2.msra.mxu0 0.0
    %1396 = vmatprep.subr.mxu0 0.0
    %1397 = vmatpush2.msra.mxu0 0.0
    %1398 = vmatprep.subr.mxu0 0.0
    %1399 = vmatpush2.msra.mxu0 0.0
    %1400 = vmatprep.subr.mxu0 0.0
    %1401 = vmatpush2.msra.mxu0 0.0
    %1402 = vmatprep.subr.mxu0 0.0
    %1403 = vmatpush2.msra.mxu0 0.0
    %1404 = vmatprep.subr.mxu0 0.0
    %1405 = vmatpush2.msra.mxu0 0.0
    %1406 = vmatprep.mubr.f32.mxu0 0.0
    %1407 = vmatmul.mubr.f32.gmra.mxu0 %v1340
    %v1408 = vpop.f32.mrf.mxu0
    %v1409 = vadd.f32 0.0, %v1408
    %v1410 = vpop.f32.mrf.mxu0
    %v1411 = vadd.f32 0.0, %v1410
    %1412 = vdwg.mxu0
    %v1413 = vadd.f32 %v1309, %v1409
    %v1414 = vadd.f32 %v1310, %v1411
    %v1415 = vlaneseq
    %v1416 = vshrl.u32 %v1415, 7
    %v1417 = vsub.s32 5, %v1416
    %v1418 = vrot.slane %v656, %v1417
    %v1419 = vmul.f32 %v896, %v1418
    %v1420 = vlaneseq
    %v1421 = vshrl.u32 %v1420, 7
    %v1422 = vsub.s32 5, %v1421
    %v1423 = vrot.slane %v890, %v1422
    %v1424 = vmul.f32 %v899, %v1423
    %v1425 = vadd.f32 %v1419, %v1424
    %s1426 = scalar_lea.vmem %s6, 640
    %v1427 = vld [vmem:[%s1426] sm:$0xff]
    %v1428 = vld [vmem:[%s1426 + $0x8] sm:$0xff]
    %v1429 = vld [vmem:[%s1426 + $0x10] sm:$0xff]
    %v1430 = vld [vmem:[%s1426 + $0x18] sm:$0xff]
    %v1431 = vld [vmem:[%s1426 + $0x20] sm:$0xff]
    %v1432 = vld [vmem:[%s1426 + $0x28] sm:$0xff]
    %v1433 = vld [vmem:[%s1426 + $0x30] sm:$0xff]
    %v1434 = vld [vmem:[%s1426 + $0x38] sm:$0xff]
    %v1435 = vld [vmem:[%s1426 + $0x40] sm:$0xff]
    %v1436 = vld [vmem:[%s1426 + $0x48] sm:$0xff]
    %v1437 = vld [vmem:[%s1426 + $0x50] sm:$0xff]
    %v1438 = vld [vmem:[%s1426 + $0x58] sm:$0xff]
    %v1439 = vld [vmem:[%s1426 + $0x60] sm:$0xff]
    %v1440 = vld [vmem:[%s1426 + $0x68] sm:$0xff]
    %v1441 = vld [vmem:[%s1426 + $0x70] sm:$0xff]
    %v1442 = vld [vmem:[%s1426 + $0x78] sm:$0xff]
    %v1444 = vsel %vm454, %v1425, 0
    %1446 = vmatprep.subr.mxu0 0.0
    %1447 = vmatpush1.msra.mxu0 0.0
    %1448 = vmatprep.subr.mxu0 0.0
    %1449 = vmatpush1.msra.mxu0 0.0
    %1450 = vmatprep.subr.mxu0 0.0
    %1451 = vmatpush1.msra.mxu0 0.0
    %1452 = vmatprep.subr.mxu0 0.0
    %1453 = vmatpush1.msra.mxu0 0.0
    %1454 = vmatprep.subr.mxu0 0.0
    %1455 = vmatpush1.msra.mxu0 0.0
    %1456 = vmatprep.subr.mxu0 0.0
    %1457 = vmatpush1.msra.mxu0 0.0
    %1458 = vmatprep.subr.mxu0 0.0
    %1459 = vmatpush1.msra.mxu0 0.0
    %1460 = vmatprep.subr.mxu0 0.0
    %1461 = vmatpush1.msra.mxu0 0.0
    %1462 = vmatprep.subr.mxu0 %v1442
    %1463 = vmatpush1.msra.mxu0 %v1441
    %1464 = vmatprep.subr.mxu0 %v1440
    %1465 = vmatpush1.msra.mxu0 %v1439
    %1466 = vmatprep.subr.mxu0 %v1438
    %1467 = vmatpush1.msra.mxu0 %v1437
    %1468 = vmatprep.subr.mxu0 %v1436
    %1469 = vmatpush1.msra.mxu0 %v1435
    %1470 = vmatprep.subr.mxu0 %v1434
    %1471 = vmatpush1.msra.mxu0 %v1433
    %1472 = vmatprep.subr.mxu0 %v1432
    %1473 = vmatpush1.msra.mxu0 %v1431
    %1474 = vmatprep.subr.mxu0 %v1430
    %1475 = vmatpush1.msra.mxu0 %v1429
    %1476 = vmatprep.subr.mxu0 %v1428
    %1477 = vmatpush1.msra.mxu0 %v1427
    %1478 = vmatprep.subr.mxu0 0.0
    %1479 = vmatpush2.msra.mxu0 0.0
    %1480 = vmatprep.subr.mxu0 0.0
    %1481 = vmatpush2.msra.mxu0 0.0
    %1482 = vmatprep.subr.mxu0 0.0
    %1483 = vmatpush2.msra.mxu0 0.0
    %1484 = vmatprep.subr.mxu0 0.0
    %1485 = vmatpush2.msra.mxu0 0.0
    %1486 = vmatprep.subr.mxu0 0.0
    %1487 = vmatpush2.msra.mxu0 0.0
    %1488 = vmatprep.subr.mxu0 0.0
    %1489 = vmatpush2.msra.mxu0 0.0
    %1490 = vmatprep.subr.mxu0 0.0
    %1491 = vmatpush2.msra.mxu0 0.0
    %1492 = vmatprep.subr.mxu0 0.0
    %1493 = vmatpush2.msra.mxu0 0.0
    %1494 = vmatprep.subr.mxu0 0.0
    %1495 = vmatpush2.msra.mxu0 0.0
    %1496 = vmatprep.subr.mxu0 0.0
    %1497 = vmatpush2.msra.mxu0 0.0
    %1498 = vmatprep.subr.mxu0 0.0
    %1499 = vmatpush2.msra.mxu0 0.0
    %1500 = vmatprep.subr.mxu0 0.0
    %1501 = vmatpush2.msra.mxu0 0.0
    %1502 = vmatprep.subr.mxu0 0.0
    %1503 = vmatpush2.msra.mxu0 0.0
    %1504 = vmatprep.subr.mxu0 0.0
    %1505 = vmatpush2.msra.mxu0 0.0
    %1506 = vmatprep.subr.mxu0 0.0
    %1507 = vmatpush2.msra.mxu0 0.0
    %1508 = vmatprep.subr.mxu0 0.0
    %1509 = vmatpush2.msra.mxu0 0.0
    %1510 = vmatprep.mubr.f32.mxu0 0.0
    %1511 = vmatmul.mubr.f32.gmra.mxu0 %v1444
    %v1512 = vpop.f32.mrf.mxu0
    %v1513 = vadd.f32 0.0, %v1512
    %v1514 = vpop.f32.mrf.mxu0
    %v1515 = vadd.f32 0.0, %v1514
    %1516 = vdwg.mxu0
    %v1517 = vadd.f32 %v1413, %v1513
    %v1518 = vadd.f32 %v1414, %v1515
    %v1519 = vlaneseq
    %v1520 = vshrl.u32 %v1519, 7
    %v1521 = vsub.s32 6, %v1520
    %v1522 = vrot.slane %v656, %v1521
    %v1523 = vmul.f32 %v896, %v1522
    %v1524 = vlaneseq
    %v1525 = vshrl.u32 %v1524, 7
    %v1526 = vsub.s32 6, %v1525
    %v1527 = vrot.slane %v890, %v1526
    %v1528 = vmul.f32 %v899, %v1527
    %v1529 = vadd.f32 %v1523, %v1528
    %s1530 = scalar_lea.vmem %s6, 768
    %v1531 = vld [vmem:[%s1530] sm:$0xff]
    %v1532 = vld [vmem:[%s1530 + $0x8] sm:$0xff]
    %v1533 = vld [vmem:[%s1530 + $0x10] sm:$0xff]
    %v1534 = vld [vmem:[%s1530 + $0x18] sm:$0xff]
    %v1535 = vld [vmem:[%s1530 + $0x20] sm:$0xff]
    %v1536 = vld [vmem:[%s1530 + $0x28] sm:$0xff]
    %v1537 = vld [vmem:[%s1530 + $0x30] sm:$0xff]
    %v1538 = vld [vmem:[%s1530 + $0x38] sm:$0xff]
    %v1539 = vld [vmem:[%s1530 + $0x40] sm:$0xff]
    %v1540 = vld [vmem:[%s1530 + $0x48] sm:$0xff]
    %v1541 = vld [vmem:[%s1530 + $0x50] sm:$0xff]
    %v1542 = vld [vmem:[%s1530 + $0x58] sm:$0xff]
    %v1543 = vld [vmem:[%s1530 + $0x60] sm:$0xff]
    %v1544 = vld [vmem:[%s1530 + $0x68] sm:$0xff]
    %v1545 = vld [vmem:[%s1530 + $0x70] sm:$0xff]
    %v1546 = vld [vmem:[%s1530 + $0x78] sm:$0xff]
    %v1548 = vsel %vm454, %v1529, 0
    %1550 = vmatprep.subr.mxu0 0.0
    %1551 = vmatpush1.msra.mxu0 0.0
    %1552 = vmatprep.subr.mxu0 0.0
    %1553 = vmatpush1.msra.mxu0 0.0
    %1554 = vmatprep.subr.mxu0 0.0
    %1555 = vmatpush1.msra.mxu0 0.0
    %1556 = vmatprep.subr.mxu0 0.0
    %1557 = vmatpush1.msra.mxu0 0.0
    %1558 = vmatprep.subr.mxu0 0.0
    %1559 = vmatpush1.msra.mxu0 0.0
    %1560 = vmatprep.subr.mxu0 0.0
    %1561 = vmatpush1.msra.mxu0 0.0
    %1562 = vmatprep.subr.mxu0 0.0
    %1563 = vmatpush1.msra.mxu0 0.0
    %1564 = vmatprep.subr.mxu0 0.0
    %1565 = vmatpush1.msra.mxu0 0.0
    %1566 = vmatprep.subr.mxu0 %v1546
    %1567 = vmatpush1.msra.mxu0 %v1545
    %1568 = vmatprep.subr.mxu0 %v1544
    %1569 = vmatpush1.msra.mxu0 %v1543
    %1570 = vmatprep.subr.mxu0 %v1542
    %1571 = vmatpush1.msra.mxu0 %v1541
    %1572 = vmatprep.subr.mxu0 %v1540
    %1573 = vmatpush1.msra.mxu0 %v1539
    %1574 = vmatprep.subr.mxu0 %v1538
    %1575 = vmatpush1.msra.mxu0 %v1537
    %1576 = vmatprep.subr.mxu0 %v1536
    %1577 = vmatpush1.msra.mxu0 %v1535
    %1578 = vmatprep.subr.mxu0 %v1534
    %1579 = vmatpush1.msra.mxu0 %v1533
    %1580 = vmatprep.subr.mxu0 %v1532
    %1581 = vmatpush1.msra.mxu0 %v1531
    %1582 = vmatprep.subr.mxu0 0.0
    %1583 = vmatpush2.msra.mxu0 0.0
    %1584 = vmatprep.subr.mxu0 0.0
    %1585 = vmatpush2.msra.mxu0 0.0
    %1586 = vmatprep.subr.mxu0 0.0
    %1587 = vmatpush2.msra.mxu0 0.0
    %1588 = vmatprep.subr.mxu0 0.0
    %1589 = vmatpush2.msra.mxu0 0.0
    %1590 = vmatprep.subr.mxu0 0.0
    %1591 = vmatpush2.msra.mxu0 0.0
    %1592 = vmatprep.subr.mxu0 0.0
    %1593 = vmatpush2.msra.mxu0 0.0
    %1594 = vmatprep.subr.mxu0 0.0
    %1595 = vmatpush2.msra.mxu0 0.0
    %1596 = vmatprep.subr.mxu0 0.0
    %1597 = vmatpush2.msra.mxu0 0.0
    %1598 = vmatprep.subr.mxu0 0.0
    %1599 = vmatpush2.msra.mxu0 0.0
    %1600 = vmatprep.subr.mxu0 0.0
    %1601 = vmatpush2.msra.mxu0 0.0
    %1602 = vmatprep.subr.mxu0 0.0
    %1603 = vmatpush2.msra.mxu0 0.0
    %1604 = vmatprep.subr.mxu0 0.0
    %1605 = vmatpush2.msra.mxu0 0.0
    %1606 = vmatprep.subr.mxu0 0.0
    %1607 = vmatpush2.msra.mxu0 0.0
    %1608 = vmatprep.subr.mxu0 0.0
    %1609 = vmatpush2.msra.mxu0 0.0
    %1610 = vmatprep.subr.mxu0 0.0
    %1611 = vmatpush2.msra.mxu0 0.0
    %1612 = vmatprep.subr.mxu0 0.0
    %1613 = vmatpush2.msra.mxu0 0.0
    %1614 = vmatprep.mubr.f32.mxu0 0.0
    %1615 = vmatmul.mubr.f32.gmra.mxu0 %v1548
    %v1616 = vpop.f32.mrf.mxu0
    %v1617 = vadd.f32 0.0, %v1616
    %v1618 = vpop.f32.mrf.mxu0
    %v1619 = vadd.f32 0.0, %v1618
    %1620 = vdwg.mxu0
    %v1621 = vadd.f32 %v1517, %v1617
    %v1622 = vadd.f32 %v1518, %v1619
    %v1623 = vlaneseq
    %v1624 = vshrl.u32 %v1623, 7
    %v1625 = vsub.s32 7, %v1624
    %v1626 = vrot.slane %v656, %v1625
    %v1627 = vmul.f32 %v896, %v1626
    %v1628 = vlaneseq
    %v1629 = vshrl.u32 %v1628, 7
    %v1630 = vsub.s32 7, %v1629
    %v1631 = vrot.slane %v890, %v1630
    %v1632 = vmul.f32 %v899, %v1631
    %v1633 = vadd.f32 %v1627, %v1632
    %s1634 = scalar_lea.vmem %s6, 896
    %v1635 = vld [vmem:[%s1634] sm:$0xff]
    %v1636 = vld [vmem:[%s1634 + $0x8] sm:$0xff]
    %v1637 = vld [vmem:[%s1634 + $0x10] sm:$0xff]
    %v1638 = vld [vmem:[%s1634 + $0x18] sm:$0xff]
    %v1639 = vld [vmem:[%s1634 + $0x20] sm:$0xff]
    %v1640 = vld [vmem:[%s1634 + $0x28] sm:$0xff]
    %v1641 = vld [vmem:[%s1634 + $0x30] sm:$0xff]
    %v1642 = vld [vmem:[%s1634 + $0x38] sm:$0xff]
    %v1643 = vld [vmem:[%s1634 + $0x40] sm:$0xff]
    %v1644 = vld [vmem:[%s1634 + $0x48] sm:$0xff]
    %v1645 = vld [vmem:[%s1634 + $0x50] sm:$0xff]
    %v1646 = vld [vmem:[%s1634 + $0x58] sm:$0xff]
    %v1647 = vld [vmem:[%s1634 + $0x60] sm:$0xff]
    %v1648 = vld [vmem:[%s1634 + $0x68] sm:$0xff]
    %v1649 = vld [vmem:[%s1634 + $0x70] sm:$0xff]
    %v1650 = vld [vmem:[%s1634 + $0x78] sm:$0xff]
    %v1652 = vsel %vm454, %v1633, 0
    %1654 = vmatprep.subr.mxu0 0.0
    %1655 = vmatpush1.msra.mxu0 0.0
    %1656 = vmatprep.subr.mxu0 0.0
    %1657 = vmatpush1.msra.mxu0 0.0
    %1658 = vmatprep.subr.mxu0 0.0
    %1659 = vmatpush1.msra.mxu0 0.0
    %1660 = vmatprep.subr.mxu0 0.0
    %1661 = vmatpush1.msra.mxu0 0.0
    %1662 = vmatprep.subr.mxu0 0.0
    %1663 = vmatpush1.msra.mxu0 0.0
    %1664 = vmatprep.subr.mxu0 0.0
    %1665 = vmatpush1.msra.mxu0 0.0
    %1666 = vmatprep.subr.mxu0 0.0
    %1667 = vmatpush1.msra.mxu0 0.0
    %1668 = vmatprep.subr.mxu0 0.0
    %1669 = vmatpush1.msra.mxu0 0.0
    %1670 = vmatprep.subr.mxu0 %v1650
    %1671 = vmatpush1.msra.mxu0 %v1649
    %1672 = vmatprep.subr.mxu0 %v1648
    %1673 = vmatpush1.msra.mxu0 %v1647
    %1674 = vmatprep.subr.mxu0 %v1646
    %1675 = vmatpush1.msra.mxu0 %v1645
    %1676 = vmatprep.subr.mxu0 %v1644
    %1677 = vmatpush1.msra.mxu0 %v1643
    %1678 = vmatprep.subr.mxu0 %v1642
    %1679 = vmatpush1.msra.mxu0 %v1641
    %1680 = vmatprep.subr.mxu0 %v1640
    %1681 = vmatpush1.msra.mxu0 %v1639
    %1682 = vmatprep.subr.mxu0 %v1638
    %1683 = vmatpush1.msra.mxu0 %v1637
    %1684 = vmatprep.subr.mxu0 %v1636
    %1685 = vmatpush1.msra.mxu0 %v1635
    %1686 = vmatprep.subr.mxu0 0.0
    %1687 = vmatpush2.msra.mxu0 0.0
    %1688 = vmatprep.subr.mxu0 0.0
    %1689 = vmatpush2.msra.mxu0 0.0
    %1690 = vmatprep.subr.mxu0 0.0
    %1691 = vmatpush2.msra.mxu0 0.0
    %1692 = vmatprep.subr.mxu0 0.0
    %1693 = vmatpush2.msra.mxu0 0.0
    %1694 = vmatprep.subr.mxu0 0.0
    %1695 = vmatpush2.msra.mxu0 0.0
    %1696 = vmatprep.subr.mxu0 0.0
    %1697 = vmatpush2.msra.mxu0 0.0
    %1698 = vmatprep.subr.mxu0 0.0
    %1699 = vmatpush2.msra.mxu0 0.0
    %1700 = vmatprep.subr.mxu0 0.0
    %1701 = vmatpush2.msra.mxu0 0.0
    %1702 = vmatprep.subr.mxu0 0.0
    %1703 = vmatpush2.msra.mxu0 0.0
    %1704 = vmatprep.subr.mxu0 0.0
    %1705 = vmatpush2.msra.mxu0 0.0
    %1706 = vmatprep.subr.mxu0 0.0
    %1707 = vmatpush2.msra.mxu0 0.0
    %1708 = vmatprep.subr.mxu0 0.0
    %1709 = vmatpush2.msra.mxu0 0.0
    %1710 = vmatprep.subr.mxu0 0.0
    %1711 = vmatpush2.msra.mxu0 0.0
    %1712 = vmatprep.subr.mxu0 0.0
    %1713 = vmatpush2.msra.mxu0 0.0
    %1714 = vmatprep.subr.mxu0 0.0
    %1715 = vmatpush2.msra.mxu0 0.0
    %1716 = vmatprep.subr.mxu0 0.0
    %1717 = vmatpush2.msra.mxu0 0.0
    %1718 = vmatprep.mubr.f32.mxu0 0.0
    %1719 = vmatmul.mubr.f32.gmra.mxu0 %v1652
    %v1720 = vpop.f32.mrf.mxu0
    %v1721 = vadd.f32 0.0, %v1720
    %v1722 = vpop.f32.mrf.mxu0
    %v1723 = vadd.f32 0.0, %v1722
    %1724 = vdwg.mxu0
    %v1725 = vadd.f32 %v1621, %v1721
    %v1726 = vadd.f32 %v1622, %v1723
    %v1727 = vlaneseq
    %v1728 = vshrl.u32 %v1727, 7
    %v1729 = vsub.s32 0, %v1728
    %v1730 = vrot.slane %v657, %v1729
    %v1731 = vmul.f32 %v896, %v1730
    %v1732 = vlaneseq
    %v1733 = vshrl.u32 %v1732, 7
    %v1734 = vsub.s32 0, %v1733
    %v1735 = vrot.slane %v891, %v1734
    %v1736 = vmul.f32 %v899, %v1735
    %v1737 = vadd.f32 %v1731, %v1736
    %s1738 = scalar_lea.vmem %s6, 1024
    %v1739 = vld [vmem:[%s1738] sm:$0xff]
    %v1740 = vld [vmem:[%s1738 + $0x8] sm:$0xff]
    %v1741 = vld [vmem:[%s1738 + $0x10] sm:$0xff]
    %v1742 = vld [vmem:[%s1738 + $0x18] sm:$0xff]
    %v1743 = vld [vmem:[%s1738 + $0x20] sm:$0xff]
    %v1744 = vld [vmem:[%s1738 + $0x28] sm:$0xff]
    %v1745 = vld [vmem:[%s1738 + $0x30] sm:$0xff]
    %v1746 = vld [vmem:[%s1738 + $0x38] sm:$0xff]
    %v1747 = vld [vmem:[%s1738 + $0x40] sm:$0xff]
    %v1748 = vld [vmem:[%s1738 + $0x48] sm:$0xff]
    %v1749 = vld [vmem:[%s1738 + $0x50] sm:$0xff]
    %v1750 = vld [vmem:[%s1738 + $0x58] sm:$0xff]
    %v1751 = vld [vmem:[%s1738 + $0x60] sm:$0xff]
    %v1752 = vld [vmem:[%s1738 + $0x68] sm:$0xff]
    %v1753 = vld [vmem:[%s1738 + $0x70] sm:$0xff]
    %v1754 = vld [vmem:[%s1738 + $0x78] sm:$0xff]
    %v1756 = vsel %vm454, %v1737, 0
    %1758 = vmatprep.subr.mxu0 0.0
    %1759 = vmatpush1.msra.mxu0 0.0
    %1760 = vmatprep.subr.mxu0 0.0
    %1761 = vmatpush1.msra.mxu0 0.0
    %1762 = vmatprep.subr.mxu0 0.0
    %1763 = vmatpush1.msra.mxu0 0.0
    %1764 = vmatprep.subr.mxu0 0.0
    %1765 = vmatpush1.msra.mxu0 0.0
    %1766 = vmatprep.subr.mxu0 0.0
    %1767 = vmatpush1.msra.mxu0 0.0
    %1768 = vmatprep.subr.mxu0 0.0
    %1769 = vmatpush1.msra.mxu0 0.0
    %1770 = vmatprep.subr.mxu0 0.0
    %1771 = vmatpush1.msra.mxu0 0.0
    %1772 = vmatprep.subr.mxu0 0.0
    %1773 = vmatpush1.msra.mxu0 0.0
    %1774 = vmatprep.subr.mxu0 %v1754
    %1775 = vmatpush1.msra.mxu0 %v1753
    %1776 = vmatprep.subr.mxu0 %v1752
    %1777 = vmatpush1.msra.mxu0 %v1751
    %1778 = vmatprep.subr.mxu0 %v1750
    %1779 = vmatpush1.msra.mxu0 %v1749
    %1780 = vmatprep.subr.mxu0 %v1748
    %1781 = vmatpush1.msra.mxu0 %v1747
    %1782 = vmatprep.subr.mxu0 %v1746
    %1783 = vmatpush1.msra.mxu0 %v1745
    %1784 = vmatprep.subr.mxu0 %v1744
    %1785 = vmatpush1.msra.mxu0 %v1743
    %1786 = vmatprep.subr.mxu0 %v1742
    %1787 = vmatpush1.msra.mxu0 %v1741
    %1788 = vmatprep.subr.mxu0 %v1740
    %1789 = vmatpush1.msra.mxu0 %v1739
    %1790 = vmatprep.subr.mxu0 0.0
    %1791 = vmatpush2.msra.mxu0 0.0
    %1792 = vmatprep.subr.mxu0 0.0
    %1793 = vmatpush2.msra.mxu0 0.0
    %1794 = vmatprep.subr.mxu0 0.0
    %1795 = vmatpush2.msra.mxu0 0.0
    %1796 = vmatprep.subr.mxu0 0.0
    %1797 = vmatpush2.msra.mxu0 0.0
    %1798 = vmatprep.subr.mxu0 0.0
    %1799 = vmatpush2.msra.mxu0 0.0
    %1800 = vmatprep.subr.mxu0 0.0
    %1801 = vmatpush2.msra.mxu0 0.0
    %1802 = vmatprep.subr.mxu0 0.0
    %1803 = vmatpush2.msra.mxu0 0.0
    %1804 = vmatprep.subr.mxu0 0.0
    %1805 = vmatpush2.msra.mxu0 0.0
    %1806 = vmatprep.subr.mxu0 0.0
    %1807 = vmatpush2.msra.mxu0 0.0
    %1808 = vmatprep.subr.mxu0 0.0
    %1809 = vmatpush2.msra.mxu0 0.0
    %1810 = vmatprep.subr.mxu0 0.0
    %1811 = vmatpush2.msra.mxu0 0.0
    %1812 = vmatprep.subr.mxu0 0.0
    %1813 = vmatpush2.msra.mxu0 0.0
    %1814 = vmatprep.subr.mxu0 0.0
    %1815 = vmatpush2.msra.mxu0 0.0
    %1816 = vmatprep.subr.mxu0 0.0
    %1817 = vmatpush2.msra.mxu0 0.0
    %1818 = vmatprep.subr.mxu0 0.0
    %1819 = vmatpush2.msra.mxu0 0.0
    %1820 = vmatprep.subr.mxu0 0.0
    %1821 = vmatpush2.msra.mxu0 0.0
    %1822 = vmatprep.mubr.f32.mxu0 0.0
    %1823 = vmatmul.mubr.f32.gmra.mxu0 %v1756
    %v1824 = vpop.f32.mrf.mxu0
    %v1825 = vadd.f32 0.0, %v1824
    %v1826 = vpop.f32.mrf.mxu0
    %v1827 = vadd.f32 0.0, %v1826
    %1828 = vdwg.mxu0
    %v1829 = vadd.f32 %v1725, %v1825
    %v1830 = vadd.f32 %v1726, %v1827
    %v1831 = vlaneseq
    %v1832 = vshrl.u32 %v1831, 7
    %v1833 = vsub.s32 1, %v1832
    %v1834 = vrot.slane %v657, %v1833
    %v1835 = vmul.f32 %v896, %v1834
    %v1836 = vlaneseq
    %v1837 = vshrl.u32 %v1836, 7
    %v1838 = vsub.s32 1, %v1837
    %v1839 = vrot.slane %v891, %v1838
    %v1840 = vmul.f32 %v899, %v1839
    %v1841 = vadd.f32 %v1835, %v1840
    %s1842 = scalar_lea.vmem %s6, 1152
    %v1843 = vld [vmem:[%s1842] sm:$0xff]
    %v1844 = vld [vmem:[%s1842 + $0x8] sm:$0xff]
    %v1845 = vld [vmem:[%s1842 + $0x10] sm:$0xff]
    %v1846 = vld [vmem:[%s1842 + $0x18] sm:$0xff]
    %v1847 = vld [vmem:[%s1842 + $0x20] sm:$0xff]
    %v1848 = vld [vmem:[%s1842 + $0x28] sm:$0xff]
    %v1849 = vld [vmem:[%s1842 + $0x30] sm:$0xff]
    %v1850 = vld [vmem:[%s1842 + $0x38] sm:$0xff]
    %v1851 = vld [vmem:[%s1842 + $0x40] sm:$0xff]
    %v1852 = vld [vmem:[%s1842 + $0x48] sm:$0xff]
    %v1853 = vld [vmem:[%s1842 + $0x50] sm:$0xff]
    %v1854 = vld [vmem:[%s1842 + $0x58] sm:$0xff]
    %v1855 = vld [vmem:[%s1842 + $0x60] sm:$0xff]
    %v1856 = vld [vmem:[%s1842 + $0x68] sm:$0xff]
    %v1857 = vld [vmem:[%s1842 + $0x70] sm:$0xff]
    %v1858 = vld [vmem:[%s1842 + $0x78] sm:$0xff]
    %v1860 = vsel %vm454, %v1841, 0
    %1862 = vmatprep.subr.mxu0 0.0
    %1863 = vmatpush1.msra.mxu0 0.0
    %1864 = vmatprep.subr.mxu0 0.0
    %1865 = vmatpush1.msra.mxu0 0.0
    %1866 = vmatprep.subr.mxu0 0.0
    %1867 = vmatpush1.msra.mxu0 0.0
    %1868 = vmatprep.subr.mxu0 0.0
    %1869 = vmatpush1.msra.mxu0 0.0
    %1870 = vmatprep.subr.mxu0 0.0
    %1871 = vmatpush1.msra.mxu0 0.0
    %1872 = vmatprep.subr.mxu0 0.0
    %1873 = vmatpush1.msra.mxu0 0.0
    %1874 = vmatprep.subr.mxu0 0.0
    %1875 = vmatpush1.msra.mxu0 0.0
    %1876 = vmatprep.subr.mxu0 0.0
    %1877 = vmatpush1.msra.mxu0 0.0
    %1878 = vmatprep.subr.mxu0 %v1858
    %1879 = vmatpush1.msra.mxu0 %v1857
    %1880 = vmatprep.subr.mxu0 %v1856
    %1881 = vmatpush1.msra.mxu0 %v1855
    %1882 = vmatprep.subr.mxu0 %v1854
    %1883 = vmatpush1.msra.mxu0 %v1853
    %1884 = vmatprep.subr.mxu0 %v1852
    %1885 = vmatpush1.msra.mxu0 %v1851
    %1886 = vmatprep.subr.mxu0 %v1850
    %1887 = vmatpush1.msra.mxu0 %v1849
    %1888 = vmatprep.subr.mxu0 %v1848
    %1889 = vmatpush1.msra.mxu0 %v1847
    %1890 = vmatprep.subr.mxu0 %v1846
    %1891 = vmatpush1.msra.mxu0 %v1845
    %1892 = vmatprep.subr.mxu0 %v1844
    %1893 = vmatpush1.msra.mxu0 %v1843
    %1894 = vmatprep.subr.mxu0 0.0
    %1895 = vmatpush2.msra.mxu0 0.0
    %1896 = vmatprep.subr.mxu0 0.0
    %1897 = vmatpush2.msra.mxu0 0.0
    %1898 = vmatprep.subr.mxu0 0.0
    %1899 = vmatpush2.msra.mxu0 0.0
    %1900 = vmatprep.subr.mxu0 0.0
    %1901 = vmatpush2.msra.mxu0 0.0
    %1902 = vmatprep.subr.mxu0 0.0
    %1903 = vmatpush2.msra.mxu0 0.0
    %1904 = vmatprep.subr.mxu0 0.0
    %1905 = vmatpush2.msra.mxu0 0.0
    %1906 = vmatprep.subr.mxu0 0.0
    %1907 = vmatpush2.msra.mxu0 0.0
    %1908 = vmatprep.subr.mxu0 0.0
    %1909 = vmatpush2.msra.mxu0 0.0
    %1910 = vmatprep.subr.mxu0 0.0
    %1911 = vmatpush2.msra.mxu0 0.0
    %1912 = vmatprep.subr.mxu0 0.0
    %1913 = vmatpush2.msra.mxu0 0.0
    %1914 = vmatprep.subr.mxu0 0.0
    %1915 = vmatpush2.msra.mxu0 0.0
    %1916 = vmatprep.subr.mxu0 0.0
    %1917 = vmatpush2.msra.mxu0 0.0
    %1918 = vmatprep.subr.mxu0 0.0
    %1919 = vmatpush2.msra.mxu0 0.0
    %1920 = vmatprep.subr.mxu0 0.0
    %1921 = vmatpush2.msra.mxu0 0.0
    %1922 = vmatprep.subr.mxu0 0.0
    %1923 = vmatpush2.msra.mxu0 0.0
    %1924 = vmatprep.subr.mxu0 0.0
    %1925 = vmatpush2.msra.mxu0 0.0
    %1926 = vmatprep.mubr.f32.mxu0 0.0
    %1927 = vmatmul.mubr.f32.gmra.mxu0 %v1860
    %v1928 = vpop.f32.mrf.mxu0
    %v1929 = vadd.f32 0.0, %v1928
    %v1930 = vpop.f32.mrf.mxu0
    %v1931 = vadd.f32 0.0, %v1930
    %1932 = vdwg.mxu0
    %v1933 = vadd.f32 %v1829, %v1929
    %v1934 = vadd.f32 %v1830, %v1931
    %v1935 = vlaneseq
    %v1936 = vshrl.u32 %v1935, 7
    %v1937 = vsub.s32 2, %v1936
    %v1938 = vrot.slane %v657, %v1937
    %v1939 = vmul.f32 %v896, %v1938
    %v1940 = vlaneseq
    %v1941 = vshrl.u32 %v1940, 7
    %v1942 = vsub.s32 2, %v1941
    %v1943 = vrot.slane %v891, %v1942
    %v1944 = vmul.f32 %v899, %v1943
    %v1945 = vadd.f32 %v1939, %v1944
    %s1946 = scalar_lea.vmem %s6, 1280
    %v1947 = vld [vmem:[%s1946] sm:$0xff]
    %v1948 = vld [vmem:[%s1946 + $0x8] sm:$0xff]
    %v1949 = vld [vmem:[%s1946 + $0x10] sm:$0xff]
    %v1950 = vld [vmem:[%s1946 + $0x18] sm:$0xff]
    %v1951 = vld [vmem:[%s1946 + $0x20] sm:$0xff]
    %v1952 = vld [vmem:[%s1946 + $0x28] sm:$0xff]
    %v1953 = vld [vmem:[%s1946 + $0x30] sm:$0xff]
    %v1954 = vld [vmem:[%s1946 + $0x38] sm:$0xff]
    %v1955 = vld [vmem:[%s1946 + $0x40] sm:$0xff]
    %v1956 = vld [vmem:[%s1946 + $0x48] sm:$0xff]
    %v1957 = vld [vmem:[%s1946 + $0x50] sm:$0xff]
    %v1958 = vld [vmem:[%s1946 + $0x58] sm:$0xff]
    %v1959 = vld [vmem:[%s1946 + $0x60] sm:$0xff]
    %v1960 = vld [vmem:[%s1946 + $0x68] sm:$0xff]
    %v1961 = vld [vmem:[%s1946 + $0x70] sm:$0xff]
    %v1962 = vld [vmem:[%s1946 + $0x78] sm:$0xff]
    %v1964 = vsel %vm454, %v1945, 0
    %1966 = vmatprep.subr.mxu0 0.0
    %1967 = vmatpush1.msra.mxu0 0.0
    %1968 = vmatprep.subr.mxu0 0.0
    %1969 = vmatpush1.msra.mxu0 0.0
    %1970 = vmatprep.subr.mxu0 0.0
    %1971 = vmatpush1.msra.mxu0 0.0
    %1972 = vmatprep.subr.mxu0 0.0
    %1973 = vmatpush1.msra.mxu0 0.0
    %1974 = vmatprep.subr.mxu0 0.0
    %1975 = vmatpush1.msra.mxu0 0.0
    %1976 = vmatprep.subr.mxu0 0.0
    %1977 = vmatpush1.msra.mxu0 0.0
    %1978 = vmatprep.subr.mxu0 0.0
    %1979 = vmatpush1.msra.mxu0 0.0
    %1980 = vmatprep.subr.mxu0 0.0
    %1981 = vmatpush1.msra.mxu0 0.0
    %1982 = vmatprep.subr.mxu0 %v1962
    %1983 = vmatpush1.msra.mxu0 %v1961
    %1984 = vmatprep.subr.mxu0 %v1960
    %1985 = vmatpush1.msra.mxu0 %v1959
    %1986 = vmatprep.subr.mxu0 %v1958
    %1987 = vmatpush1.msra.mxu0 %v1957
    %1988 = vmatprep.subr.mxu0 %v1956
    %1989 = vmatpush1.msra.mxu0 %v1955
    %1990 = vmatprep.subr.mxu0 %v1954
    %1991 = vmatpush1.msra.mxu0 %v1953
    %1992 = vmatprep.subr.mxu0 %v1952
    %1993 = vmatpush1.msra.mxu0 %v1951
    %1994 = vmatprep.subr.mxu0 %v1950
    %1995 = vmatpush1.msra.mxu0 %v1949
    %1996 = vmatprep.subr.mxu0 %v1948
    %1997 = vmatpush1.msra.mxu0 %v1947
    %1998 = vmatprep.subr.mxu0 0.0
    %1999 = vmatpush2.msra.mxu0 0.0
    %2000 = vmatprep.subr.mxu0 0.0
    %2001 = vmatpush2.msra.mxu0 0.0
    %2002 = vmatprep.subr.mxu0 0.0
    %2003 = vmatpush2.msra.mxu0 0.0
    %2004 = vmatprep.subr.mxu0 0.0
    %2005 = vmatpush2.msra.mxu0 0.0
    %2006 = vmatprep.subr.mxu0 0.0
    %2007 = vmatpush2.msra.mxu0 0.0
    %2008 = vmatprep.subr.mxu0 0.0
    %2009 = vmatpush2.msra.mxu0 0.0
    %2010 = vmatprep.subr.mxu0 0.0
    %2011 = vmatpush2.msra.mxu0 0.0
    %2012 = vmatprep.subr.mxu0 0.0
    %2013 = vmatpush2.msra.mxu0 0.0
    %2014 = vmatprep.subr.mxu0 0.0
    %2015 = vmatpush2.msra.mxu0 0.0
    %2016 = vmatprep.subr.mxu0 0.0
    %2017 = vmatpush2.msra.mxu0 0.0
    %2018 = vmatprep.subr.mxu0 0.0
    %2019 = vmatpush2.msra.mxu0 0.0
    %2020 = vmatprep.subr.mxu0 0.0
    %2021 = vmatpush2.msra.mxu0 0.0
    %2022 = vmatprep.subr.mxu0 0.0
    %2023 = vmatpush2.msra.mxu0 0.0
    %2024 = vmatprep.subr.mxu0 0.0
    %2025 = vmatpush2.msra.mxu0 0.0
    %2026 = vmatprep.subr.mxu0 0.0
    %2027 = vmatpush2.msra.mxu0 0.0
    %2028 = vmatprep.subr.mxu0 0.0
    %2029 = vmatpush2.msra.mxu0 0.0
    %2030 = vmatprep.mubr.f32.mxu0 0.0
    %2031 = vmatmul.mubr.f32.gmra.mxu0 %v1964
    %v2032 = vpop.f32.mrf.mxu0
    %v2033 = vadd.f32 0.0, %v2032
    %v2034 = vpop.f32.mrf.mxu0
    %v2035 = vadd.f32 0.0, %v2034
    %2036 = vdwg.mxu0
    %v2037 = vadd.f32 %v1933, %v2033
    %v2038 = vadd.f32 %v1934, %v2035
    %v2039 = vlaneseq
    %v2040 = vshrl.u32 %v2039, 7
    %v2041 = vsub.s32 3, %v2040
    %v2042 = vrot.slane %v657, %v2041
    %v2043 = vmul.f32 %v896, %v2042
    %v2044 = vlaneseq
    %v2045 = vshrl.u32 %v2044, 7
    %v2046 = vsub.s32 3, %v2045
    %v2047 = vrot.slane %v891, %v2046
    %v2048 = vmul.f32 %v899, %v2047
    %v2049 = vadd.f32 %v2043, %v2048
    %s2050 = scalar_lea.vmem %s6, 1408
    %v2051 = vld [vmem:[%s2050] sm:$0xff]
    %v2052 = vld [vmem:[%s2050 + $0x8] sm:$0xff]
    %v2053 = vld [vmem:[%s2050 + $0x10] sm:$0xff]
    %v2054 = vld [vmem:[%s2050 + $0x18] sm:$0xff]
    %v2055 = vld [vmem:[%s2050 + $0x20] sm:$0xff]
    %v2056 = vld [vmem:[%s2050 + $0x28] sm:$0xff]
    %v2057 = vld [vmem:[%s2050 + $0x30] sm:$0xff]
    %v2058 = vld [vmem:[%s2050 + $0x38] sm:$0xff]
    %v2059 = vld [vmem:[%s2050 + $0x40] sm:$0xff]
    %v2060 = vld [vmem:[%s2050 + $0x48] sm:$0xff]
    %v2061 = vld [vmem:[%s2050 + $0x50] sm:$0xff]
    %v2062 = vld [vmem:[%s2050 + $0x58] sm:$0xff]
    %v2063 = vld [vmem:[%s2050 + $0x60] sm:$0xff]
    %v2064 = vld [vmem:[%s2050 + $0x68] sm:$0xff]
    %v2065 = vld [vmem:[%s2050 + $0x70] sm:$0xff]
    %v2066 = vld [vmem:[%s2050 + $0x78] sm:$0xff]
    %v2068 = vsel %vm454, %v2049, 0
    %2070 = vmatprep.subr.mxu0 0.0
    %2071 = vmatpush1.msra.mxu0 0.0
    %2072 = vmatprep.subr.mxu0 0.0
    %2073 = vmatpush1.msra.mxu0 0.0
    %2074 = vmatprep.subr.mxu0 0.0
    %2075 = vmatpush1.msra.mxu0 0.0
    %2076 = vmatprep.subr.mxu0 0.0
    %2077 = vmatpush1.msra.mxu0 0.0
    %2078 = vmatprep.subr.mxu0 0.0
    %2079 = vmatpush1.msra.mxu0 0.0
    %2080 = vmatprep.subr.mxu0 0.0
    %2081 = vmatpush1.msra.mxu0 0.0
    %2082 = vmatprep.subr.mxu0 0.0
    %2083 = vmatpush1.msra.mxu0 0.0
    %2084 = vmatprep.subr.mxu0 0.0
    %2085 = vmatpush1.msra.mxu0 0.0
    %2086 = vmatprep.subr.mxu0 %v2066
    %2087 = vmatpush1.msra.mxu0 %v2065
    %2088 = vmatprep.subr.mxu0 %v2064
    %2089 = vmatpush1.msra.mxu0 %v2063
    %2090 = vmatprep.subr.mxu0 %v2062
    %2091 = vmatpush1.msra.mxu0 %v2061
    %2092 = vmatprep.subr.mxu0 %v2060
    %2093 = vmatpush1.msra.mxu0 %v2059
    %2094 = vmatprep.subr.mxu0 %v2058
    %2095 = vmatpush1.msra.mxu0 %v2057
    %2096 = vmatprep.subr.mxu0 %v2056
    %2097 = vmatpush1.msra.mxu0 %v2055
    %2098 = vmatprep.subr.mxu0 %v2054
    %2099 = vmatpush1.msra.mxu0 %v2053
    %2100 = vmatprep.subr.mxu0 %v2052
    %2101 = vmatpush1.msra.mxu0 %v2051
    %2102 = vmatprep.subr.mxu0 0.0
    %2103 = vmatpush2.msra.mxu0 0.0
    %2104 = vmatprep.subr.mxu0 0.0
    %2105 = vmatpush2.msra.mxu0 0.0
    %2106 = vmatprep.subr.mxu0 0.0
    %2107 = vmatpush2.msra.mxu0 0.0
    %2108 = vmatprep.subr.mxu0 0.0
    %2109 = vmatpush2.msra.mxu0 0.0
    %2110 = vmatprep.subr.mxu0 0.0
    %2111 = vmatpush2.msra.mxu0 0.0
    %2112 = vmatprep.subr.mxu0 0.0
    %2113 = vmatpush2.msra.mxu0 0.0
    %2114 = vmatprep.subr.mxu0 0.0
    %2115 = vmatpush2.msra.mxu0 0.0
    %2116 = vmatprep.subr.mxu0 0.0
    %2117 = vmatpush2.msra.mxu0 0.0
    %2118 = vmatprep.subr.mxu0 0.0
    %2119 = vmatpush2.msra.mxu0 0.0
    %2120 = vmatprep.subr.mxu0 0.0
    %2121 = vmatpush2.msra.mxu0 0.0
    %2122 = vmatprep.subr.mxu0 0.0
    %2123 = vmatpush2.msra.mxu0 0.0
    %2124 = vmatprep.subr.mxu0 0.0
    %2125 = vmatpush2.msra.mxu0 0.0
    %2126 = vmatprep.subr.mxu0 0.0
    %2127 = vmatpush2.msra.mxu0 0.0
    %2128 = vmatprep.subr.mxu0 0.0
    %2129 = vmatpush2.msra.mxu0 0.0
    %2130 = vmatprep.subr.mxu0 0.0
    %2131 = vmatpush2.msra.mxu0 0.0
    %2132 = vmatprep.subr.mxu0 0.0
    %2133 = vmatpush2.msra.mxu0 0.0
    %2134 = vmatprep.mubr.f32.mxu0 0.0
    %2135 = vmatmul.mubr.f32.gmra.mxu0 %v2068
    %v2136 = vpop.f32.mrf.mxu0
    %v2137 = vadd.f32 0.0, %v2136
    %v2138 = vpop.f32.mrf.mxu0
    %v2139 = vadd.f32 0.0, %v2138
    %2140 = vdwg.mxu0
    %v2141 = vadd.f32 %v2037, %v2137
    %v2142 = vadd.f32 %v2038, %v2139
    %v2143 = vlaneseq
    %v2144 = vshrl.u32 %v2143, 7
    %v2145 = vsub.s32 4, %v2144
    %v2146 = vrot.slane %v657, %v2145
    %v2147 = vmul.f32 %v896, %v2146
    %v2148 = vlaneseq
    %v2149 = vshrl.u32 %v2148, 7
    %v2150 = vsub.s32 4, %v2149
    %v2151 = vrot.slane %v891, %v2150
    %v2152 = vmul.f32 %v899, %v2151
    %v2153 = vadd.f32 %v2147, %v2152
    %s2154 = scalar_lea.vmem %s6, 1536
    %v2155 = vld [vmem:[%s2154] sm:$0xff]
    %v2156 = vld [vmem:[%s2154 + $0x8] sm:$0xff]
    %v2157 = vld [vmem:[%s2154 + $0x10] sm:$0xff]
    %v2158 = vld [vmem:[%s2154 + $0x18] sm:$0xff]
    %v2159 = vld [vmem:[%s2154 + $0x20] sm:$0xff]
    %v2160 = vld [vmem:[%s2154 + $0x28] sm:$0xff]
    %v2161 = vld [vmem:[%s2154 + $0x30] sm:$0xff]
    %v2162 = vld [vmem:[%s2154 + $0x38] sm:$0xff]
    %v2163 = vld [vmem:[%s2154 + $0x40] sm:$0xff]
    %v2164 = vld [vmem:[%s2154 + $0x48] sm:$0xff]
    %v2165 = vld [vmem:[%s2154 + $0x50] sm:$0xff]
    %v2166 = vld [vmem:[%s2154 + $0x58] sm:$0xff]
    %v2167 = vld [vmem:[%s2154 + $0x60] sm:$0xff]
    %v2168 = vld [vmem:[%s2154 + $0x68] sm:$0xff]
    %v2169 = vld [vmem:[%s2154 + $0x70] sm:$0xff]
    %v2170 = vld [vmem:[%s2154 + $0x78] sm:$0xff]
    %v2172 = vsel %vm454, %v2153, 0
    %2174 = vmatprep.subr.mxu0 0.0
    %2175 = vmatpush1.msra.mxu0 0.0
    %2176 = vmatprep.subr.mxu0 0.0
    %2177 = vmatpush1.msra.mxu0 0.0
    %2178 = vmatprep.subr.mxu0 0.0
    %2179 = vmatpush1.msra.mxu0 0.0
    %2180 = vmatprep.subr.mxu0 0.0
    %2181 = vmatpush1.msra.mxu0 0.0
    %2182 = vmatprep.subr.mxu0 0.0
    %2183 = vmatpush1.msra.mxu0 0.0
    %2184 = vmatprep.subr.mxu0 0.0
    %2185 = vmatpush1.msra.mxu0 0.0
    %2186 = vmatprep.subr.mxu0 0.0
    %2187 = vmatpush1.msra.mxu0 0.0
    %2188 = vmatprep.subr.mxu0 0.0
    %2189 = vmatpush1.msra.mxu0 0.0
    %2190 = vmatprep.subr.mxu0 %v2170
    %2191 = vmatpush1.msra.mxu0 %v2169
    %2192 = vmatprep.subr.mxu0 %v2168
    %2193 = vmatpush1.msra.mxu0 %v2167
    %2194 = vmatprep.subr.mxu0 %v2166
    %2195 = vmatpush1.msra.mxu0 %v2165
    %2196 = vmatprep.subr.mxu0 %v2164
    %2197 = vmatpush1.msra.mxu0 %v2163
    %2198 = vmatprep.subr.mxu0 %v2162
    %2199 = vmatpush1.msra.mxu0 %v2161
    %2200 = vmatprep.subr.mxu0 %v2160
    %2201 = vmatpush1.msra.mxu0 %v2159
    %2202 = vmatprep.subr.mxu0 %v2158
    %2203 = vmatpush1.msra.mxu0 %v2157
    %2204 = vmatprep.subr.mxu0 %v2156
    %2205 = vmatpush1.msra.mxu0 %v2155
    %2206 = vmatprep.subr.mxu0 0.0
    %2207 = vmatpush2.msra.mxu0 0.0
    %2208 = vmatprep.subr.mxu0 0.0
    %2209 = vmatpush2.msra.mxu0 0.0
    %2210 = vmatprep.subr.mxu0 0.0
    %2211 = vmatpush2.msra.mxu0 0.0
    %2212 = vmatprep.subr.mxu0 0.0
    %2213 = vmatpush2.msra.mxu0 0.0
    %2214 = vmatprep.subr.mxu0 0.0
    %2215 = vmatpush2.msra.mxu0 0.0
    %2216 = vmatprep.subr.mxu0 0.0
    %2217 = vmatpush2.msra.mxu0 0.0
    %2218 = vmatprep.subr.mxu0 0.0
    %2219 = vmatpush2.msra.mxu0 0.0
    %2220 = vmatprep.subr.mxu0 0.0
    %2221 = vmatpush2.msra.mxu0 0.0
    %2222 = vmatprep.subr.mxu0 0.0
    %2223 = vmatpush2.msra.mxu0 0.0
    %2224 = vmatprep.subr.mxu0 0.0
    %2225 = vmatpush2.msra.mxu0 0.0
    %2226 = vmatprep.subr.mxu0 0.0
    %2227 = vmatpush2.msra.mxu0 0.0
    %2228 = vmatprep.subr.mxu0 0.0
    %2229 = vmatpush2.msra.mxu0 0.0
    %2230 = vmatprep.subr.mxu0 0.0
    %2231 = vmatpush2.msra.mxu0 0.0
    %2232 = vmatprep.subr.mxu0 0.0
    %2233 = vmatpush2.msra.mxu0 0.0
    %2234 = vmatprep.subr.mxu0 0.0
    %2235 = vmatpush2.msra.mxu0 0.0
    %2236 = vmatprep.subr.mxu0 0.0
    %2237 = vmatpush2.msra.mxu0 0.0
    %2238 = vmatprep.mubr.f32.mxu0 0.0
    %2239 = vmatmul.mubr.f32.gmra.mxu0 %v2172
    %v2240 = vpop.f32.mrf.mxu0
    %v2241 = vadd.f32 0.0, %v2240
    %v2242 = vpop.f32.mrf.mxu0
    %v2243 = vadd.f32 0.0, %v2242
    %2244 = vdwg.mxu0
    %v2245 = vadd.f32 %v2141, %v2241
    %v2246 = vadd.f32 %v2142, %v2243
    %v2247 = vlaneseq
    %v2248 = vshrl.u32 %v2247, 7
    %v2249 = vsub.s32 5, %v2248
    %v2250 = vrot.slane %v657, %v2249
    %v2251 = vmul.f32 %v896, %v2250
    %v2252 = vlaneseq
    %v2253 = vshrl.u32 %v2252, 7
    %v2254 = vsub.s32 5, %v2253
    %v2255 = vrot.slane %v891, %v2254
    %v2256 = vmul.f32 %v899, %v2255
    %v2257 = vadd.f32 %v2251, %v2256
    %s2258 = scalar_lea.vmem %s6, 1664
    %v2259 = vld [vmem:[%s2258] sm:$0xff]
    %v2260 = vld [vmem:[%s2258 + $0x8] sm:$0xff]
    %v2261 = vld [vmem:[%s2258 + $0x10] sm:$0xff]
    %v2262 = vld [vmem:[%s2258 + $0x18] sm:$0xff]
    %v2263 = vld [vmem:[%s2258 + $0x20] sm:$0xff]
    %v2264 = vld [vmem:[%s2258 + $0x28] sm:$0xff]
    %v2265 = vld [vmem:[%s2258 + $0x30] sm:$0xff]
    %v2266 = vld [vmem:[%s2258 + $0x38] sm:$0xff]
    %v2267 = vld [vmem:[%s2258 + $0x40] sm:$0xff]
    %v2268 = vld [vmem:[%s2258 + $0x48] sm:$0xff]
    %v2269 = vld [vmem:[%s2258 + $0x50] sm:$0xff]
    %v2270 = vld [vmem:[%s2258 + $0x58] sm:$0xff]
    %v2271 = vld [vmem:[%s2258 + $0x60] sm:$0xff]
    %v2272 = vld [vmem:[%s2258 + $0x68] sm:$0xff]
    %v2273 = vld [vmem:[%s2258 + $0x70] sm:$0xff]
    %v2274 = vld [vmem:[%s2258 + $0x78] sm:$0xff]
    %v2276 = vsel %vm454, %v2257, 0
    %2278 = vmatprep.subr.mxu0 0.0
    %2279 = vmatpush1.msra.mxu0 0.0
    %2280 = vmatprep.subr.mxu0 0.0
    %2281 = vmatpush1.msra.mxu0 0.0
    %2282 = vmatprep.subr.mxu0 0.0
    %2283 = vmatpush1.msra.mxu0 0.0
    %2284 = vmatprep.subr.mxu0 0.0
    %2285 = vmatpush1.msra.mxu0 0.0
    %2286 = vmatprep.subr.mxu0 0.0
    %2287 = vmatpush1.msra.mxu0 0.0
    %2288 = vmatprep.subr.mxu0 0.0
    %2289 = vmatpush1.msra.mxu0 0.0
    %2290 = vmatprep.subr.mxu0 0.0
    %2291 = vmatpush1.msra.mxu0 0.0
    %2292 = vmatprep.subr.mxu0 0.0
    %2293 = vmatpush1.msra.mxu0 0.0
    %2294 = vmatprep.subr.mxu0 %v2274
    %2295 = vmatpush1.msra.mxu0 %v2273
    %2296 = vmatprep.subr.mxu0 %v2272
    %2297 = vmatpush1.msra.mxu0 %v2271
    %2298 = vmatprep.subr.mxu0 %v2270
    %2299 = vmatpush1.msra.mxu0 %v2269
    %2300 = vmatprep.subr.mxu0 %v2268
    %2301 = vmatpush1.msra.mxu0 %v2267
    %2302 = vmatprep.subr.mxu0 %v2266
    %2303 = vmatpush1.msra.mxu0 %v2265
    %2304 = vmatprep.subr.mxu0 %v2264
    %2305 = vmatpush1.msra.mxu0 %v2263
    %2306 = vmatprep.subr.mxu0 %v2262
    %2307 = vmatpush1.msra.mxu0 %v2261
    %2308 = vmatprep.subr.mxu0 %v2260
    %2309 = vmatpush1.msra.mxu0 %v2259
    %2310 = vmatprep.subr.mxu0 0.0
    %2311 = vmatpush2.msra.mxu0 0.0
    %2312 = vmatprep.subr.mxu0 0.0
    %2313 = vmatpush2.msra.mxu0 0.0
    %2314 = vmatprep.subr.mxu0 0.0
    %2315 = vmatpush2.msra.mxu0 0.0
    %2316 = vmatprep.subr.mxu0 0.0
    %2317 = vmatpush2.msra.mxu0 0.0
    %2318 = vmatprep.subr.mxu0 0.0
    %2319 = vmatpush2.msra.mxu0 0.0
    %2320 = vmatprep.subr.mxu0 0.0
    %2321 = vmatpush2.msra.mxu0 0.0
    %2322 = vmatprep.subr.mxu0 0.0
    %2323 = vmatpush2.msra.mxu0 0.0
    %2324 = vmatprep.subr.mxu0 0.0
    %2325 = vmatpush2.msra.mxu0 0.0
    %2326 = vmatprep.subr.mxu0 0.0
    %2327 = vmatpush2.msra.mxu0 0.0
    %2328 = vmatprep.subr.mxu0 0.0
    %2329 = vmatpush2.msra.mxu0 0.0
    %2330 = vmatprep.subr.mxu0 0.0
    %2331 = vmatpush2.msra.mxu0 0.0
    %2332 = vmatprep.subr.mxu0 0.0
    %2333 = vmatpush2.msra.mxu0 0.0
    %2334 = vmatprep.subr.mxu0 0.0
    %2335 = vmatpush2.msra.mxu0 0.0
    %2336 = vmatprep.subr.mxu0 0.0
    %2337 = vmatpush2.msra.mxu0 0.0
    %2338 = vmatprep.subr.mxu0 0.0
    %2339 = vmatpush2.msra.mxu0 0.0
    %2340 = vmatprep.subr.mxu0 0.0
    %2341 = vmatpush2.msra.mxu0 0.0
    %2342 = vmatprep.mubr.f32.mxu0 0.0
    %2343 = vmatmul.mubr.f32.gmra.mxu0 %v2276
    %v2344 = vpop.f32.mrf.mxu0
    %v2345 = vadd.f32 0.0, %v2344
    %v2346 = vpop.f32.mrf.mxu0
    %v2347 = vadd.f32 0.0, %v2346
    %2348 = vdwg.mxu0
    %v2349 = vadd.f32 %v2245, %v2345
    %v2350 = vadd.f32 %v2246, %v2347
    %v2351 = vlaneseq
    %v2352 = vshrl.u32 %v2351, 7
    %v2353 = vsub.s32 6, %v2352
    %v2354 = vrot.slane %v657, %v2353
    %v2355 = vmul.f32 %v896, %v2354
    %v2356 = vlaneseq
    %v2357 = vshrl.u32 %v2356, 7
    %v2358 = vsub.s32 6, %v2357
    %v2359 = vrot.slane %v891, %v2358
    %v2360 = vmul.f32 %v899, %v2359
    %v2361 = vadd.f32 %v2355, %v2360
    %s2362 = scalar_lea.vmem %s6, 1792
    %v2363 = vld [vmem:[%s2362] sm:$0xff]
    %v2364 = vld [vmem:[%s2362 + $0x8] sm:$0xff]
    %v2365 = vld [vmem:[%s2362 + $0x10] sm:$0xff]
    %v2366 = vld [vmem:[%s2362 + $0x18] sm:$0xff]
    %v2367 = vld [vmem:[%s2362 + $0x20] sm:$0xff]
    %v2368 = vld [vmem:[%s2362 + $0x28] sm:$0xff]
    %v2369 = vld [vmem:[%s2362 + $0x30] sm:$0xff]
    %v2370 = vld [vmem:[%s2362 + $0x38] sm:$0xff]
    %v2371 = vld [vmem:[%s2362 + $0x40] sm:$0xff]
    %v2372 = vld [vmem:[%s2362 + $0x48] sm:$0xff]
    %v2373 = vld [vmem:[%s2362 + $0x50] sm:$0xff]
    %v2374 = vld [vmem:[%s2362 + $0x58] sm:$0xff]
    %v2375 = vld [vmem:[%s2362 + $0x60] sm:$0xff]
    %v2376 = vld [vmem:[%s2362 + $0x68] sm:$0xff]
    %v2377 = vld [vmem:[%s2362 + $0x70] sm:$0xff]
    %v2378 = vld [vmem:[%s2362 + $0x78] sm:$0xff]
    %v2380 = vsel %vm454, %v2361, 0
    %2382 = vmatprep.subr.mxu0 0.0
    %2383 = vmatpush1.msra.mxu0 0.0
    %2384 = vmatprep.subr.mxu0 0.0
    %2385 = vmatpush1.msra.mxu0 0.0
    %2386 = vmatprep.subr.mxu0 0.0
    %2387 = vmatpush1.msra.mxu0 0.0
    %2388 = vmatprep.subr.mxu0 0.0
    %2389 = vmatpush1.msra.mxu0 0.0
    %2390 = vmatprep.subr.mxu0 0.0
    %2391 = vmatpush1.msra.mxu0 0.0
    %2392 = vmatprep.subr.mxu0 0.0
    %2393 = vmatpush1.msra.mxu0 0.0
    %2394 = vmatprep.subr.mxu0 0.0
    %2395 = vmatpush1.msra.mxu0 0.0
    %2396 = vmatprep.subr.mxu0 0.0
    %2397 = vmatpush1.msra.mxu0 0.0
    %2398 = vmatprep.subr.mxu0 %v2378
    %2399 = vmatpush1.msra.mxu0 %v2377
    %2400 = vmatprep.subr.mxu0 %v2376
    %2401 = vmatpush1.msra.mxu0 %v2375
    %2402 = vmatprep.subr.mxu0 %v2374
    %2403 = vmatpush1.msra.mxu0 %v2373
    %2404 = vmatprep.subr.mxu0 %v2372
    %2405 = vmatpush1.msra.mxu0 %v2371
    %2406 = vmatprep.subr.mxu0 %v2370
    %2407 = vmatpush1.msra.mxu0 %v2369
    %2408 = vmatprep.subr.mxu0 %v2368
    %2409 = vmatpush1.msra.mxu0 %v2367
    %2410 = vmatprep.subr.mxu0 %v2366
    %2411 = vmatpush1.msra.mxu0 %v2365
    %2412 = vmatprep.subr.mxu0 %v2364
    %2413 = vmatpush1.msra.mxu0 %v2363
    %2414 = vmatprep.subr.mxu0 0.0
    %2415 = vmatpush2.msra.mxu0 0.0
    %2416 = vmatprep.subr.mxu0 0.0
    %2417 = vmatpush2.msra.mxu0 0.0
    %2418 = vmatprep.subr.mxu0 0.0
    %2419 = vmatpush2.msra.mxu0 0.0
    %2420 = vmatprep.subr.mxu0 0.0
    %2421 = vmatpush2.msra.mxu0 0.0
    %2422 = vmatprep.subr.mxu0 0.0
    %2423 = vmatpush2.msra.mxu0 0.0
    %2424 = vmatprep.subr.mxu0 0.0
    %2425 = vmatpush2.msra.mxu0 0.0
    %2426 = vmatprep.subr.mxu0 0.0
    %2427 = vmatpush2.msra.mxu0 0.0
    %2428 = vmatprep.subr.mxu0 0.0
    %2429 = vmatpush2.msra.mxu0 0.0
    %2430 = vmatprep.subr.mxu0 0.0
    %2431 = vmatpush2.msra.mxu0 0.0
    %2432 = vmatprep.subr.mxu0 0.0
    %2433 = vmatpush2.msra.mxu0 0.0
    %2434 = vmatprep.subr.mxu0 0.0
    %2435 = vmatpush2.msra.mxu0 0.0
    %2436 = vmatprep.subr.mxu0 0.0
    %2437 = vmatpush2.msra.mxu0 0.0
    %2438 = vmatprep.subr.mxu0 0.0
    %2439 = vmatpush2.msra.mxu0 0.0
    %2440 = vmatprep.subr.mxu0 0.0
    %2441 = vmatpush2.msra.mxu0 0.0
    %2442 = vmatprep.subr.mxu0 0.0
    %2443 = vmatpush2.msra.mxu0 0.0
    %2444 = vmatprep.subr.mxu0 0.0
    %2445 = vmatpush2.msra.mxu0 0.0
    %2446 = vmatprep.mubr.f32.mxu0 0.0
    %2447 = vmatmul.mubr.f32.gmra.mxu0 %v2380
    %v2448 = vpop.f32.mrf.mxu0
    %v2449 = vadd.f32 0.0, %v2448
    %v2450 = vpop.f32.mrf.mxu0
    %v2451 = vadd.f32 0.0, %v2450
    %2452 = vdwg.mxu0
    %v2453 = vadd.f32 %v2349, %v2449
    %v2454 = vadd.f32 %v2350, %v2451
    %v2455 = vld [vmem:[%s7] sm:$0x3]
    %v2457 = vlaneseq
    %v2458 = vshrl.u32 %v2457, 7
    %v2459 = vsub.s32 0, %v2458
    %v2460 = vrot.slane %v2455, %v2459
    %v2461 = vlaneseq
    %v2462 = vshrl.u32 %v2461, 7
    %v2463 = vsub.s32 1, %v2462
    %v2464 = vrot.slane %v2455, %v2463
    %v2467 = vadd.f32 %v2453, %v2460
    %v2468 = vadd.f32 %v2454, %v2464
    %v2469 = vld [vmem:[%s10] sm:$0x3]
    %v2470 = vld [vmem:[%s11] sm:$0xff]
    %v2471 = vld [vmem:[%s11 + $0x8] sm:$0xff]
    %v2472 = vld [vmem:[%s11 + $0x10] sm:$0xff]
    %v2473 = vld [vmem:[%s11 + $0x18] sm:$0xff]
    %v2474 = vld [vmem:[%s11 + $0x20] sm:$0xff]
    %v2475 = vld [vmem:[%s11 + $0x28] sm:$0xff]
    %v2476 = vld [vmem:[%s11 + $0x30] sm:$0xff]
    %v2477 = vld [vmem:[%s11 + $0x38] sm:$0xff]
    %v2478 = vld [vmem:[%s12] sm:$0xff]
    %v2479 = vld [vmem:[%s12 + $0x8] sm:$0xff]
    %v2480 = vld [vmem:[%s12 + $0x10] sm:$0xff]
    %v2481 = vld [vmem:[%s12 + $0x18] sm:$0xff]
    %v2482 = vld [vmem:[%s12 + $0x20] sm:$0xff]
    %v2483 = vld [vmem:[%s12 + $0x28] sm:$0xff]
    %v2484 = vld [vmem:[%s12 + $0x30] sm:$0xff]
    %v2485 = vld [vmem:[%s12 + $0x38] sm:$0xff]
    %v2486 = vld [vmem:[%s12 + $0x40] sm:$0xff]
    %v2487 = vld [vmem:[%s12 + $0x48] sm:$0xff]
    %v2488 = vld [vmem:[%s12 + $0x50] sm:$0xff]
    %v2489 = vld [vmem:[%s12 + $0x58] sm:$0xff]
    %vm2490 = vcmask 15360
    %v2492 = vsel %vm2490, %v2470, 0
    %v2495 = vsel %vm2490, %v2471, 0
    %v2498 = vsel %vm2490, %v2472, 0
    %v2501 = vsel %vm2490, %v2473, 0
    %v2504 = vsel %vm2490, %v2474, 0
    %v2507 = vsel %vm2490, %v2475, 0
    %v2510 = vsel %vm2490, %v2476, 0
    %v2513 = vsel %vm2490, %v2477, 0
    %v2516 = vsel %vm91, %v2467, 0
    %v2519 = vsel %vm91, %v2468, 0
    %2521 = vmatprep.subr.mxu0 0.0
    %2522 = vmatpush1.msra.mxu0 0.0
    %2523 = vmatprep.subr.mxu0 0.0
    %2524 = vmatpush1.msra.mxu0 0.0
    %2525 = vmatprep.subr.mxu0 0.0
    %2526 = vmatpush1.msra.mxu0 0.0
    %2527 = vmatprep.subr.mxu0 0.0
    %2528 = vmatpush1.msra.mxu0 0.0
    %2529 = vmatprep.subr.mxu0 0.0
    %2530 = vmatpush1.msra.mxu0 0.0
    %2531 = vmatprep.subr.mxu0 0.0
    %2532 = vmatpush1.msra.mxu0 0.0
    %2533 = vmatprep.subr.mxu0 0.0
    %2534 = vmatpush1.msra.mxu0 0.0
    %2535 = vmatprep.subr.mxu0 0.0
    %2536 = vmatpush1.msra.mxu0 0.0
    %2537 = vmatprep.subr.mxu0 0.0
    %2538 = vmatpush1.msra.mxu0 0.0
    %2539 = vmatprep.subr.mxu0 0.0
    %2540 = vmatpush1.msra.mxu0 0.0
    %2541 = vmatprep.subr.mxu0 0.0
    %2542 = vmatpush1.msra.mxu0 0.0
    %2543 = vmatprep.subr.mxu0 0.0
    %2544 = vmatpush1.msra.mxu0 0.0
    %2545 = vmatprep.subr.mxu0 0.0
    %2546 = vmatpush1.msra.mxu0 0.0
    %2547 = vmatprep.subr.mxu0 0.0
    %2548 = vmatpush1.msra.mxu0 0.0
    %2549 = vmatprep.subr.mxu0 0.0
    %2550 = vmatpush1.msra.mxu0 0.0
    %2551 = vmatprep.subr.mxu0 %v2519
    %2552 = vmatpush1.msra.mxu0 %v2516
    %2553 = vmatprep.subr.mxu0 0.0
    %2554 = vmatpush2.msra.mxu0 0.0
    %2555 = vmatprep.subr.mxu0 0.0
    %2556 = vmatpush2.msra.mxu0 0.0
    %2557 = vmatprep.subr.mxu0 0.0
    %2558 = vmatpush2.msra.mxu0 0.0
    %2559 = vmatprep.subr.mxu0 0.0
    %2560 = vmatpush2.msra.mxu0 0.0
    %2561 = vmatprep.subr.mxu0 0.0
    %2562 = vmatpush2.msra.mxu0 0.0
    %2563 = vmatprep.subr.mxu0 0.0
    %2564 = vmatpush2.msra.mxu0 0.0
    %2565 = vmatprep.subr.mxu0 0.0
    %2566 = vmatpush2.msra.mxu0 0.0
    %2567 = vmatprep.subr.mxu0 0.0
    %2568 = vmatpush2.msra.mxu0 0.0
    %2569 = vmatprep.subr.mxu0 0.0
    %2570 = vmatpush2.msra.mxu0 0.0
    %2571 = vmatprep.subr.mxu0 0.0
    %2572 = vmatpush2.msra.mxu0 0.0
    %2573 = vmatprep.subr.mxu0 0.0
    %2574 = vmatpush2.msra.mxu0 0.0
    %2575 = vmatprep.subr.mxu0 0.0
    %2576 = vmatpush2.msra.mxu0 0.0
    %2577 = vmatprep.subr.mxu0 0.0
    %2578 = vmatpush2.msra.mxu0 0.0
    %2579 = vmatprep.subr.mxu0 0.0
    %2580 = vmatpush2.msra.mxu0 0.0
    %2581 = vmatprep.subr.mxu0 0.0
    %2582 = vmatpush2.msra.mxu0 0.0
    %2583 = vmatprep.subr.mxu0 0.0
    %2584 = vmatpush2.msra.mxu0 0.0
    %2585 = vmatprep.mubr.f32.mxu0 0.0
    %2586 = vmatmul.mubr.f32.gmra.mxu0 %v2492
    %v2587 = vpop.f32.mrf.mxu0
    %v2588 = vadd.f32 0.0, %v2587
    %v2589 = vpop.f32.mrf.mxu0
    %v2590 = vadd.f32 0.0, %v2589
    %2591 = vmatprep.mubr.f32.mxu0 0.0
    %2592 = vmatmul.mubr.f32.gmra.mxu0 %v2495
    %v2593 = vpop.f32.mrf.mxu0
    %v2594 = vadd.f32 0.0, %v2593
    %v2595 = vpop.f32.mrf.mxu0
    %v2596 = vadd.f32 0.0, %v2595
    %2597 = vmatprep.mubr.f32.mxu0 0.0
    %2598 = vmatmul.mubr.f32.gmra.mxu0 %v2498
    %v2599 = vpop.f32.mrf.mxu0
    %v2600 = vadd.f32 0.0, %v2599
    %v2601 = vpop.f32.mrf.mxu0
    %v2602 = vadd.f32 0.0, %v2601
    %2603 = vmatprep.mubr.f32.mxu0 0.0
    %2604 = vmatmul.mubr.f32.gmra.mxu0 %v2501
    %v2605 = vpop.f32.mrf.mxu0
    %v2606 = vadd.f32 0.0, %v2605
    %v2607 = vpop.f32.mrf.mxu0
    %v2608 = vadd.f32 0.0, %v2607
    %2609 = vmatprep.mubr.f32.mxu0 0.0
    %2610 = vmatmul.mubr.f32.gmra.mxu0 %v2504
    %v2611 = vpop.f32.mrf.mxu0
    %v2612 = vadd.f32 0.0, %v2611
    %v2613 = vpop.f32.mrf.mxu0
    %v2614 = vadd.f32 0.0, %v2613
    %2615 = vmatprep.mubr.f32.mxu0 0.0
    %2616 = vmatmul.mubr.f32.gmra.mxu0 %v2507
    %v2617 = vpop.f32.mrf.mxu0
    %v2618 = vadd.f32 0.0, %v2617
    %v2619 = vpop.f32.mrf.mxu0
    %v2620 = vadd.f32 0.0, %v2619
    %2621 = vmatprep.mubr.f32.mxu0 0.0
    %2622 = vmatmul.mubr.f32.gmra.mxu0 %v2510
    %v2623 = vpop.f32.mrf.mxu0
    %v2624 = vadd.f32 0.0, %v2623
    %v2625 = vpop.f32.mrf.mxu0
    %v2626 = vadd.f32 0.0, %v2625
    %2627 = vmatprep.mubr.f32.mxu0 0.0
    %2628 = vmatmul.mubr.f32.gmra.mxu0 %v2513
    %v2629 = vpop.f32.mrf.mxu0
    %v2630 = vadd.f32 0.0, %v2629
    %v2631 = vpop.f32.mrf.mxu0
    %v2632 = vadd.f32 0.0, %v2631
    %2633 = vdwg.mxu0
    %v2634 = vld [vmem:[%s8] sm:$0xff]
    %v2635 = vld [vmem:[%s8 + $0x8] sm:$0xff]
    %v2636 = vld [vmem:[%s8 + $0x10] sm:$0xff]
    %v2637 = vld [vmem:[%s8 + $0x18] sm:$0xff]
    %v2638 = vld [vmem:[%s8 + $0x20] sm:$0xff]
    %v2639 = vld [vmem:[%s8 + $0x28] sm:$0xff]
    %v2640 = vld [vmem:[%s8 + $0x30] sm:$0xff]
    %v2641 = vld [vmem:[%s8 + $0x38] sm:$0xff]
    %v2642 = vld [vmem:[%s8 + $0x40] sm:$0xff]
    %v2643 = vld [vmem:[%s8 + $0x48] sm:$0xff]
    %v2644 = vld [vmem:[%s8 + $0x50] sm:$0xff]
    %v2645 = vld [vmem:[%s8 + $0x58] sm:$0xff]
    %v2646 = vld [vmem:[%s8 + $0x60] sm:$0xff]
    %v2647 = vld [vmem:[%s8 + $0x68] sm:$0xff]
    %v2648 = vld [vmem:[%s8 + $0x70] sm:$0xff]
    %v2649 = vld [vmem:[%s8 + $0x78] sm:$0xff]
    %v2650 = vmul.f32 %v2634, %v2588
    %v2651 = vmul.f32 %v2635, %v2590
    %v2652 = vmul.f32 %v2636, %v2594
    %v2653 = vmul.f32 %v2637, %v2596
    %v2654 = vmul.f32 %v2638, %v2600
    %v2655 = vmul.f32 %v2639, %v2602
    %v2656 = vmul.f32 %v2640, %v2606
    %v2657 = vmul.f32 %v2641, %v2608
    %v2658 = vmul.f32 %v2642, %v2612
    %v2659 = vmul.f32 %v2643, %v2614
    %v2660 = vmul.f32 %v2644, %v2618
    %v2661 = vmul.f32 %v2645, %v2620
    %v2662 = vmul.f32 %v2646, %v2624
    %v2663 = vmul.f32 %v2647, %v2626
    %v2664 = vmul.f32 %v2648, %v2630
    %v2665 = vmul.f32 %v2649, %v2632
    %v2666 = vld [vmem:[%s9] sm:$0xff]
    %v2667 = vld [vmem:[%s9 + $0x8] sm:$0xff]
    %v2668 = vld [vmem:[%s9 + $0x10] sm:$0xff]
    %v2669 = vld [vmem:[%s9 + $0x18] sm:$0xff]
    %v2670 = vld [vmem:[%s9 + $0x20] sm:$0xff]
    %v2671 = vld [vmem:[%s9 + $0x28] sm:$0xff]
    %v2672 = vld [vmem:[%s9 + $0x30] sm:$0xff]
    %v2673 = vld [vmem:[%s9 + $0x38] sm:$0xff]
    %v2674 = vld [vmem:[%s9 + $0x40] sm:$0xff]
    %v2675 = vld [vmem:[%s9 + $0x48] sm:$0xff]
    %v2676 = vld [vmem:[%s9 + $0x50] sm:$0xff]
    %v2677 = vld [vmem:[%s9 + $0x58] sm:$0xff]
    %v2678 = vld [vmem:[%s9 + $0x60] sm:$0xff]
    %v2679 = vld [vmem:[%s9 + $0x68] sm:$0xff]
    %v2680 = vld [vmem:[%s9 + $0x70] sm:$0xff]
    %v2681 = vld [vmem:[%s9 + $0x78] sm:$0xff]
    %v2682 = vld [vmem:[%s9 + $0x80] sm:$0xff]
    %v2683 = vld [vmem:[%s9 + $0x88] sm:$0xff]
    %v2684 = vld [vmem:[%s9 + $0x90] sm:$0xff]
    %v2685 = vld [vmem:[%s9 + $0x98] sm:$0xff]
    %v2686 = vld [vmem:[%s9 + $0xa0] sm:$0xff]
    %v2687 = vld [vmem:[%s9 + $0xa8] sm:$0xff]
    %v2688 = vld [vmem:[%s9 + $0xb0] sm:$0xff]
    %v2689 = vld [vmem:[%s9 + $0xb8] sm:$0xff]
    %v2690 = vld [vmem:[%s9 + $0xc0] sm:$0xff]
    %v2691 = vld [vmem:[%s9 + $0xc8] sm:$0xff]
    %v2692 = vld [vmem:[%s9 + $0xd0] sm:$0xff]
    %v2693 = vld [vmem:[%s9 + $0xd8] sm:$0xff]
    %v2694 = vld [vmem:[%s9 + $0xe0] sm:$0xff]
    %v2695 = vld [vmem:[%s9 + $0xe8] sm:$0xff]
    %v2696 = vld [vmem:[%s9 + $0xf0] sm:$0xff]
    %v2697 = vld [vmem:[%s9 + $0xf8] sm:$0xff]
    %2698 = vmatprep.subr.mxu0 0.0
    %2699 = vmatpush1.msra.mxu0 %v2681
    %2700 = vmatprep.subr.mxu0 0.0
    %2701 = vmatpush1.msra.mxu0 %v2680
    %2702 = vmatprep.subr.mxu0 0.0
    %2703 = vmatpush1.msra.mxu0 %v2679
    %2704 = vmatprep.subr.mxu0 0.0
    %2705 = vmatpush1.msra.mxu0 %v2678
    %2706 = vmatprep.subr.mxu0 0.0
    %2707 = vmatpush1.msra.mxu0 %v2677
    %2708 = vmatprep.subr.mxu0 0.0
    %2709 = vmatpush1.msra.mxu0 %v2676
    %2710 = vmatprep.subr.mxu0 0.0
    %2711 = vmatpush1.msra.mxu0 %v2675
    %2712 = vmatprep.subr.mxu0 0.0
    %2713 = vmatpush1.msra.mxu0 %v2674
    %2714 = vmatprep.subr.mxu0 0.0
    %2715 = vmatpush1.msra.mxu0 %v2673
    %2716 = vmatprep.subr.mxu0 0.0
    %2717 = vmatpush1.msra.mxu0 %v2672
    %2718 = vmatprep.subr.mxu0 0.0
    %2719 = vmatpush1.msra.mxu0 %v2671
    %2720 = vmatprep.subr.mxu0 0.0
    %2721 = vmatpush1.msra.mxu0 %v2670
    %2722 = vmatprep.subr.mxu0 0.0
    %2723 = vmatpush1.msra.mxu0 %v2669
    %2724 = vmatprep.subr.mxu0 0.0
    %2725 = vmatpush1.msra.mxu0 %v2668
    %2726 = vmatprep.subr.mxu0 0.0
    %2727 = vmatpush1.msra.mxu0 %v2667
    %2728 = vmatprep.subr.mxu0 0.0
    %2729 = vmatpush1.msra.mxu0 %v2666
    %2730 = vmatprep.subr.mxu0 0.0
    %2731 = vmatpush2.msra.mxu0 %v2697
    %2732 = vmatprep.subr.mxu0 0.0
    %2733 = vmatpush2.msra.mxu0 %v2696
    %2734 = vmatprep.subr.mxu0 0.0
    %2735 = vmatpush2.msra.mxu0 %v2695
    %2736 = vmatprep.subr.mxu0 0.0
    %2737 = vmatpush2.msra.mxu0 %v2694
    %2738 = vmatprep.subr.mxu0 0.0
    %2739 = vmatpush2.msra.mxu0 %v2693
    %2740 = vmatprep.subr.mxu0 0.0
    %2741 = vmatpush2.msra.mxu0 %v2692
    %2742 = vmatprep.subr.mxu0 0.0
    %2743 = vmatpush2.msra.mxu0 %v2691
    %2744 = vmatprep.subr.mxu0 0.0
    %2745 = vmatpush2.msra.mxu0 %v2690
    %2746 = vmatprep.subr.mxu0 0.0
    %2747 = vmatpush2.msra.mxu0 %v2689
    %2748 = vmatprep.subr.mxu0 0.0
    %2749 = vmatpush2.msra.mxu0 %v2688
    %2750 = vmatprep.subr.mxu0 0.0
    %2751 = vmatpush2.msra.mxu0 %v2687
    %2752 = vmatprep.subr.mxu0 0.0
    %2753 = vmatpush2.msra.mxu0 %v2686
    %2754 = vmatprep.subr.mxu0 0.0
    %2755 = vmatpush2.msra.mxu0 %v2685
    %2756 = vmatprep.subr.mxu0 0.0
    %2757 = vmatpush2.msra.mxu0 %v2684
    %2758 = vmatprep.subr.mxu0 0.0
    %2759 = vmatpush2.msra.mxu0 %v2683
    %2760 = vmatprep.subr.mxu0 0.0
    %2761 = vmatpush2.msra.mxu0 %v2682
    %2762 = vmatprep.mubr.f32.mxu0 %v2651
    %2763 = vmatmul.mubr.f32.gmra.mxu0 %v2650
    %v2764 = vpop.f32.mrf.mxu0
    %v2765 = vadd.f32 0.0, %v2764
    %v2766 = vpop.f32.mrf.mxu0
    %2767 = vmatprep.mubr.f32.mxu0 %v2653
    %2768 = vmatmul.mubr.f32.gmra.mxu0 %v2652
    %v2769 = vpop.f32.mrf.mxu0
    %v2770 = vadd.f32 0.0, %v2769
    %v2771 = vpop.f32.mrf.mxu0
    %2772 = vmatprep.mubr.f32.mxu0 %v2655
    %2773 = vmatmul.mubr.f32.gmra.mxu0 %v2654
    %v2774 = vpop.f32.mrf.mxu0
    %v2775 = vadd.f32 0.0, %v2774
    %v2776 = vpop.f32.mrf.mxu0
    %2777 = vmatprep.mubr.f32.mxu0 %v2657
    %2778 = vmatmul.mubr.f32.gmra.mxu0 %v2656
    %v2779 = vpop.f32.mrf.mxu0
    %v2780 = vadd.f32 0.0, %v2779
    %v2781 = vpop.f32.mrf.mxu0
    %2782 = vmatprep.mubr.f32.mxu0 %v2659
    %2783 = vmatmul.mubr.f32.gmra.mxu0 %v2658
    %v2784 = vpop.f32.mrf.mxu0
    %v2785 = vadd.f32 0.0, %v2784
    %v2786 = vpop.f32.mrf.mxu0
    %2787 = vmatprep.mubr.f32.mxu0 %v2661
    %2788 = vmatmul.mubr.f32.gmra.mxu0 %v2660
    %v2789 = vpop.f32.mrf.mxu0
    %v2790 = vadd.f32 0.0, %v2789
    %v2791 = vpop.f32.mrf.mxu0
    %2792 = vmatprep.mubr.f32.mxu0 %v2663
    %2793 = vmatmul.mubr.f32.gmra.mxu0 %v2662
    %v2794 = vpop.f32.mrf.mxu0
    %v2795 = vadd.f32 0.0, %v2794
    %v2796 = vpop.f32.mrf.mxu0
    %2797 = vmatprep.mubr.f32.mxu0 %v2665
    %2798 = vmatmul.mubr.f32.gmra.mxu0 %v2664
    %v2799 = vpop.f32.mrf.mxu0
    %v2800 = vadd.f32 0.0, %v2799
    %v2801 = vpop.f32.mrf.mxu0
    %2802 = vdwg.mxu0
    %v2803 = vmul.f32 %v2765, 0.16666667
    %v2804 = vmul.f32 %v2770, 0.16666667
    %v2805 = vmul.f32 %v2775, 0.16666667
    %v2806 = vmul.f32 %v2780, 0.16666667
    %v2807 = vmul.f32 %v2785, 0.16666667
    %v2808 = vmul.f32 %v2790, 0.16666667
    %v2809 = vmul.f32 %v2795, 0.16666667
    %v2810 = vmul.f32 %v2800, 0.16666667
    %v2812 = vsel %vm454, %v2469, 0
    %2814 = vmatprep.subr.mxu0 0.0
    %2815 = vmatpush1.msra.mxu0 0.0
    %2816 = vmatprep.subr.mxu0 0.0
    %2817 = vmatpush1.msra.mxu0 0.0
    %2818 = vmatprep.subr.mxu0 0.0
    %2819 = vmatpush1.msra.mxu0 0.0
    %2820 = vmatprep.subr.mxu0 0.0
    %2821 = vmatpush1.msra.mxu0 0.0
    %2822 = vmatprep.subr.mxu0 0.0
    %2823 = vmatpush1.msra.mxu0 0.0
    %2824 = vmatprep.subr.mxu0 0.0
    %2825 = vmatpush1.msra.mxu0 0.0
    %2826 = vmatprep.subr.mxu0 0.0
    %2827 = vmatpush1.msra.mxu0 0.0
    %2828 = vmatprep.subr.mxu0 0.0
    %2829 = vmatpush1.msra.mxu0 0.0
    %2830 = vmatprep.subr.mxu0 0.0
    %2831 = vmatpush1.msra.mxu0 %v2810
    %2832 = vmatprep.subr.mxu0 0.0
    %2833 = vmatpush1.msra.mxu0 %v2809
    %2834 = vmatprep.subr.mxu0 0.0
    %2835 = vmatpush1.msra.mxu0 %v2808
    %2836 = vmatprep.subr.mxu0 0.0
    %2837 = vmatpush1.msra.mxu0 %v2807
    %2838 = vmatprep.subr.mxu0 0.0
    %2839 = vmatpush1.msra.mxu0 %v2806
    %2840 = vmatprep.subr.mxu0 0.0
    %2841 = vmatpush1.msra.mxu0 %v2805
    %2842 = vmatprep.subr.mxu0 0.0
    %2843 = vmatpush1.msra.mxu0 %v2804
    %2844 = vmatprep.subr.mxu0 0.0
    %2845 = vmatpush1.msra.mxu0 %v2803
    %2846 = vmatprep.subr.mxu0 0.0
    %2847 = vmatpush2.msra.mxu0 0.0
    %2848 = vmatprep.subr.mxu0 0.0
    %2849 = vmatpush2.msra.mxu0 0.0
    %2850 = vmatprep.subr.mxu0 0.0
    %2851 = vmatpush2.msra.mxu0 0.0
    %2852 = vmatprep.subr.mxu0 0.0
    %2853 = vmatpush2.msra.mxu0 0.0
    %2854 = vmatprep.subr.mxu0 0.0
    %2855 = vmatpush2.msra.mxu0 0.0
    %2856 = vmatprep.subr.mxu0 0.0
    %2857 = vmatpush2.msra.mxu0 0.0
    %2858 = vmatprep.subr.mxu0 0.0
    %2859 = vmatpush2.msra.mxu0 0.0
    %2860 = vmatprep.subr.mxu0 0.0
    %2861 = vmatpush2.msra.mxu0 0.0
    %2862 = vmatprep.subr.mxu0 0.0
    %2863 = vmatpush2.msra.mxu0 0.0
    %2864 = vmatprep.subr.mxu0 0.0
    %2865 = vmatpush2.msra.mxu0 0.0
    %2866 = vmatprep.subr.mxu0 0.0
    %2867 = vmatpush2.msra.mxu0 0.0
    %2868 = vmatprep.subr.mxu0 0.0
    %2869 = vmatpush2.msra.mxu0 0.0
    %2870 = vmatprep.subr.mxu0 0.0
    %2871 = vmatpush2.msra.mxu0 0.0
    %2872 = vmatprep.subr.mxu0 0.0
    %2873 = vmatpush2.msra.mxu0 0.0
    %2874 = vmatprep.subr.mxu0 0.0
    %2875 = vmatpush2.msra.mxu0 0.0
    %2876 = vmatprep.subr.mxu0 0.0
    %2877 = vmatpush2.msra.mxu0 0.0
    %2878 = vmatprep.mubr.f32.mxu0 0.0
    %2879 = vmatmul.mubr.f32.gmra.mxu0 %v2812
    %v2880 = vpop.f32.mrf.mxu0
    %v2881 = vadd.f32 0.0, %v2880
    %v2882 = vpop.f32.mrf.mxu0
    %2883 = vdwg.mxu0
    %v2884 = vmul.f32 %v2881, %v2881
    %v2886 = vsel %vm457, %v2884, 0
    %2888 = vmatprep.subr.mxu0 0.0
    %2889 = vmatpush1.msra.mxu0 0.0
    %2890 = vmatprep.subr.mxu0 0.0
    %2891 = vmatpush1.msra.mxu0 0.0
    %2892 = vmatprep.subr.mxu0 0.0
    %2893 = vmatpush1.msra.mxu0 0.0
    %2894 = vmatprep.subr.mxu0 0.0
    %2895 = vmatpush1.msra.mxu0 0.0
    %2896 = vmatprep.subr.mxu0 0.0
    %2897 = vmatpush1.msra.mxu0 %v2489
    %2898 = vmatprep.subr.mxu0 0.0
    %2899 = vmatpush1.msra.mxu0 %v2488
    %2900 = vmatprep.subr.mxu0 0.0
    %2901 = vmatpush1.msra.mxu0 %v2487
    %2902 = vmatprep.subr.mxu0 0.0
    %2903 = vmatpush1.msra.mxu0 %v2486
    %2904 = vmatprep.subr.mxu0 0.0
    %2905 = vmatpush1.msra.mxu0 %v2485
    %2906 = vmatprep.subr.mxu0 0.0
    %2907 = vmatpush1.msra.mxu0 %v2484
    %2908 = vmatprep.subr.mxu0 0.0
    %2909 = vmatpush1.msra.mxu0 %v2483
    %2910 = vmatprep.subr.mxu0 0.0
    %2911 = vmatpush1.msra.mxu0 %v2482
    %2912 = vmatprep.subr.mxu0 0.0
    %2913 = vmatpush1.msra.mxu0 %v2481
    %2914 = vmatprep.subr.mxu0 0.0
    %2915 = vmatpush1.msra.mxu0 %v2480
    %2916 = vmatprep.subr.mxu0 0.0
    %2917 = vmatpush1.msra.mxu0 %v2479
    %2918 = vmatprep.subr.mxu0 0.0
    %2919 = vmatpush1.msra.mxu0 %v2478
    %2920 = vmatprep.subr.mxu0 0.0
    %2921 = vmatpush2.msra.mxu0 0.0
    %2922 = vmatprep.subr.mxu0 0.0
    %2923 = vmatpush2.msra.mxu0 0.0
    %2924 = vmatprep.subr.mxu0 0.0
    %2925 = vmatpush2.msra.mxu0 0.0
    %2926 = vmatprep.subr.mxu0 0.0
    %2927 = vmatpush2.msra.mxu0 0.0
    %2928 = vmatprep.subr.mxu0 0.0
    %2929 = vmatpush2.msra.mxu0 0.0
    %2930 = vmatprep.subr.mxu0 0.0
    %2931 = vmatpush2.msra.mxu0 0.0
    %2932 = vmatprep.subr.mxu0 0.0
    %2933 = vmatpush2.msra.mxu0 0.0
    %2934 = vmatprep.subr.mxu0 0.0
    %2935 = vmatpush2.msra.mxu0 0.0
    %2936 = vmatprep.subr.mxu0 0.0
    %2937 = vmatpush2.msra.mxu0 0.0
    %2938 = vmatprep.subr.mxu0 0.0
    %2939 = vmatpush2.msra.mxu0 0.0
    %2940 = vmatprep.subr.mxu0 0.0
    %2941 = vmatpush2.msra.mxu0 0.0
    %2942 = vmatprep.subr.mxu0 0.0
    %2943 = vmatpush2.msra.mxu0 0.0
    %2944 = vmatprep.subr.mxu0 0.0
    %2945 = vmatpush2.msra.mxu0 0.0
    %2946 = vmatprep.subr.mxu0 0.0
    %2947 = vmatpush2.msra.mxu0 0.0
    %2948 = vmatprep.subr.mxu0 0.0
    %2949 = vmatpush2.msra.mxu0 0.0
    %2950 = vmatprep.subr.mxu0 0.0
    %2951 = vmatpush2.msra.mxu0 0.0
    %2952 = vmatprep.mubr.f32.mxu0 0.0
    %2953 = vmatmul.mubr.f32.gmra.mxu0 %v2886
    %v2954 = vpop.f32.mrf.mxu0
    %v2955 = vadd.f32 0.0, %v2954
    %v2956 = vpop.f32.mrf.mxu0
    %2957 = vdwg.mxu0
    %v2958 = vadd.f32 %v2955, 1.0
    %v2959 = vrcp.pop %v2958
    %v2960 = vmul.f32 %v2955, %v2959
    %v2961 = vadd.f32 %v2955, 1e-08
    %v2962 = vrsqrt.pop %v2961
    %v2963 = vmul.f32 %v2961, %v2962
    %vm2964 = vcmp.eq.f32.partialorder %v2961, inf
    %v2965 = vsel %vm2964, %v2961, %v2963
    %vm2966 = vcmp.eq.f32.partialorder %v2961, 0.0
    %v2967 = vand.u32 %v2961, 2147483648
    %v2968 = vsel %vm2966, %v2967, %v2965
    %v2969 = vrcp.pop %v2968
    %v2970 = vmul.f32 %v2960, %v2969
    %v2971 = vmul.f32 %v2881, %v2970
    %v2973 = vsel %vm91, %v2971, 0
    %2975 = vmatprep.subr.mxu0 0.0
    %2976 = vmatpush1.msra.mxu0 0.0
    %2977 = vmatprep.subr.mxu0 0.0
    %2978 = vmatpush1.msra.mxu0 0.0
    %2979 = vmatprep.subr.mxu0 0.0
    %2980 = vmatpush1.msra.mxu0 0.0
    %2981 = vmatprep.subr.mxu0 0.0
    %2982 = vmatpush1.msra.mxu0 0.0
    %2983 = vmatprep.subr.mxu0 0.0
    %2984 = vmatpush1.msra.mxu0 0.0
    %2985 = vmatprep.subr.mxu0 0.0
    %2986 = vmatpush1.msra.mxu0 0.0
    %2987 = vmatprep.subr.mxu0 0.0
    %2988 = vmatpush1.msra.mxu0 0.0
    %2989 = vmatprep.subr.mxu0 0.0
    %2990 = vmatpush1.msra.mxu0 0.0
    %2991 = vmatprep.subr.mxu0 0.0
    %2992 = vmatpush1.msra.mxu0 0.0
    %2993 = vmatprep.subr.mxu0 0.0
    %2994 = vmatpush1.msra.mxu0 0.0
    %2995 = vmatprep.subr.mxu0 0.0
    %2996 = vmatpush1.msra.mxu0 0.0
    %2997 = vmatprep.subr.mxu0 0.0
    %2998 = vmatpush1.msra.mxu0 0.0
    %2999 = vmatprep.subr.mxu0 0.0
    %3000 = vmatpush1.msra.mxu0 0.0
    %3001 = vmatprep.subr.mxu0 0.0
    %3002 = vmatpush1.msra.mxu0 0.0
    %3003 = vmatprep.subr.mxu0 0.0
    %3004 = vmatpush1.msra.mxu0 0.0
    %3005 = vmatprep.subr.mxu0 0.0
    %3006 = vmatpush1.msra.mxu0 %v2973
    %3007 = vmatprep.subr.mxu0 0.0
    %3008 = vmatpush2.msra.mxu0 0.0
    %3009 = vmatprep.subr.mxu0 0.0
    %3010 = vmatpush2.msra.mxu0 0.0
    %3011 = vmatprep.subr.mxu0 0.0
    %3012 = vmatpush2.msra.mxu0 0.0
    %3013 = vmatprep.subr.mxu0 0.0
    %3014 = vmatpush2.msra.mxu0 0.0
    %3015 = vmatprep.subr.mxu0 0.0
    %3016 = vmatpush2.msra.mxu0 0.0
    %3017 = vmatprep.subr.mxu0 0.0
    %3018 = vmatpush2.msra.mxu0 0.0
    %3019 = vmatprep.subr.mxu0 0.0
    %3020 = vmatpush2.msra.mxu0 0.0
    %3021 = vmatprep.subr.mxu0 0.0
    %3022 = vmatpush2.msra.mxu0 0.0
    %3023 = vmatprep.subr.mxu0 0.0
    %3024 = vmatpush2.msra.mxu0 0.0
    %3025 = vmatprep.subr.mxu0 0.0
    %3026 = vmatpush2.msra.mxu0 0.0
    %3027 = vmatprep.subr.mxu0 0.0
    %3028 = vmatpush2.msra.mxu0 0.0
    %3029 = vmatprep.subr.mxu0 0.0
    %3030 = vmatpush2.msra.mxu0 0.0
    %3031 = vmatprep.subr.mxu0 0.0
    %3032 = vmatpush2.msra.mxu0 0.0
    %3033 = vmatprep.subr.mxu0 0.0
    %3034 = vmatpush2.msra.mxu0 0.0
    %3035 = vmatprep.subr.mxu0 0.0
    %3036 = vmatpush2.msra.mxu0 0.0
    %3037 = vmatprep.subr.mxu0 0.0
    %3038 = vmatpush2.msra.mxu0 0.0
    %3039 = vmatprep.mubr.f32.mxu0 0.0
    %3040 = vmatmul.mubr.f32.gmra.mxu0 %v2492
    %v3041 = vpop.f32.mrf.mxu0
    %v3042 = vadd.f32 0.0, %v3041
    %v3043 = vpop.f32.mrf.mxu0
    %3044 = vmatprep.mubr.f32.mxu0 0.0
    %3045 = vmatmul.mubr.f32.gmra.mxu0 %v2495
    %v3046 = vpop.f32.mrf.mxu0
    %v3047 = vadd.f32 0.0, %v3046
    %v3048 = vpop.f32.mrf.mxu0
    %3049 = vmatprep.mubr.f32.mxu0 0.0
    %3050 = vmatmul.mubr.f32.gmra.mxu0 %v2498
    %v3051 = vpop.f32.mrf.mxu0
    %v3052 = vadd.f32 0.0, %v3051
    %v3053 = vpop.f32.mrf.mxu0
    %3054 = vmatprep.mubr.f32.mxu0 0.0
    %3055 = vmatmul.mubr.f32.gmra.mxu0 %v2501
    %v3056 = vpop.f32.mrf.mxu0
    %v3057 = vadd.f32 0.0, %v3056
    %v3058 = vpop.f32.mrf.mxu0
    %3059 = vmatprep.mubr.f32.mxu0 0.0
    %3060 = vmatmul.mubr.f32.gmra.mxu0 %v2504
    %v3061 = vpop.f32.mrf.mxu0
    %v3062 = vadd.f32 0.0, %v3061
    %v3063 = vpop.f32.mrf.mxu0
    %3064 = vmatprep.mubr.f32.mxu0 0.0
    %3065 = vmatmul.mubr.f32.gmra.mxu0 %v2507
    %v3066 = vpop.f32.mrf.mxu0
    %v3067 = vadd.f32 0.0, %v3066
    %v3068 = vpop.f32.mrf.mxu0
    %3069 = vmatprep.mubr.f32.mxu0 0.0
    %3070 = vmatmul.mubr.f32.gmra.mxu0 %v2510
    %v3071 = vpop.f32.mrf.mxu0
    %v3072 = vadd.f32 0.0, %v3071
    %v3073 = vpop.f32.mrf.mxu0
    %3074 = vmatprep.mubr.f32.mxu0 0.0
    %3075 = vmatmul.mubr.f32.gmra.mxu0 %v2513
    %v3076 = vpop.f32.mrf.mxu0
    %v3077 = vadd.f32 0.0, %v3076
    %v3078 = vpop.f32.mrf.mxu0
    %3079 = vdwg.mxu0
    %v3080 = vmul.f32 %v2765, %v3042
    %v3081 = vmul.f32 %v2770, %v3047
    %v3082 = vmul.f32 %v2775, %v3052
    %v3083 = vmul.f32 %v2780, %v3057
    %v3084 = vmul.f32 %v2785, %v3062
    %v3085 = vmul.f32 %v2790, %v3067
    %v3086 = vmul.f32 %v2795, %v3072
    %v3087 = vmul.f32 %v2800, %v3077
    %v3089 = vsel %vm457, %v3080, 0
    %v3092 = vsel %vm457, %v3081, 0
    %v3095 = vsel %vm457, %v3082, 0
    %v3098 = vsel %vm457, %v3083, 0
    %v3101 = vsel %vm457, %v3084, 0
    %v3104 = vsel %vm457, %v3085, 0
    %v3107 = vsel %vm457, %v3086, 0
    %v3110 = vsel %vm457, %v3087, 0
    %3112 = vmatprep.subr.mxu0 0.0
    %3113 = vmatpush1.msra.mxu0 0.0
    %3114 = vmatprep.subr.mxu0 0.0
    %3115 = vmatpush1.msra.mxu0 0.0
    %3116 = vmatprep.subr.mxu0 0.0
    %3117 = vmatpush1.msra.mxu0 0.0
    %3118 = vmatprep.subr.mxu0 0.0
    %3119 = vmatpush1.msra.mxu0 0.0
    %3120 = vmatprep.subr.mxu0 0.0
    %3121 = vmatpush1.msra.mxu0 %v2489
    %3122 = vmatprep.subr.mxu0 0.0
    %3123 = vmatpush1.msra.mxu0 %v2488
    %3124 = vmatprep.subr.mxu0 0.0
    %3125 = vmatpush1.msra.mxu0 %v2487
    %3126 = vmatprep.subr.mxu0 0.0
    %3127 = vmatpush1.msra.mxu0 %v2486
    %3128 = vmatprep.subr.mxu0 0.0
    %3129 = vmatpush1.msra.mxu0 %v2485
    %3130 = vmatprep.subr.mxu0 0.0
    %3131 = vmatpush1.msra.mxu0 %v2484
    %3132 = vmatprep.subr.mxu0 0.0
    %3133 = vmatpush1.msra.mxu0 %v2483
    %3134 = vmatprep.subr.mxu0 0.0
    %3135 = vmatpush1.msra.mxu0 %v2482
    %3136 = vmatprep.subr.mxu0 0.0
    %3137 = vmatpush1.msra.mxu0 %v2481
    %3138 = vmatprep.subr.mxu0 0.0
    %3139 = vmatpush1.msra.mxu0 %v2480
    %3140 = vmatprep.subr.mxu0 0.0
    %3141 = vmatpush1.msra.mxu0 %v2479
    %3142 = vmatprep.subr.mxu0 0.0
    %3143 = vmatpush1.msra.mxu0 %v2478
    %3144 = vmatprep.subr.mxu0 0.0
    %3145 = vmatpush2.msra.mxu0 0.0
    %3146 = vmatprep.subr.mxu0 0.0
    %3147 = vmatpush2.msra.mxu0 0.0
    %3148 = vmatprep.subr.mxu0 0.0
    %3149 = vmatpush2.msra.mxu0 0.0
    %3150 = vmatprep.subr.mxu0 0.0
    %3151 = vmatpush2.msra.mxu0 0.0
    %3152 = vmatprep.subr.mxu0 0.0
    %3153 = vmatpush2.msra.mxu0 0.0
    %3154 = vmatprep.subr.mxu0 0.0
    %3155 = vmatpush2.msra.mxu0 0.0
    %3156 = vmatprep.subr.mxu0 0.0
    %3157 = vmatpush2.msra.mxu0 0.0
    %3158 = vmatprep.subr.mxu0 0.0
    %3159 = vmatpush2.msra.mxu0 0.0
    %3160 = vmatprep.subr.mxu0 0.0
    %3161 = vmatpush2.msra.mxu0 0.0
    %3162 = vmatprep.subr.mxu0 0.0
    %3163 = vmatpush2.msra.mxu0 0.0
    %3164 = vmatprep.subr.mxu0 0.0
    %3165 = vmatpush2.msra.mxu0 0.0
    %3166 = vmatprep.subr.mxu0 0.0
    %3167 = vmatpush2.msra.mxu0 0.0
    %3168 = vmatprep.subr.mxu0 0.0
    %3169 = vmatpush2.msra.mxu0 0.0
    %3170 = vmatprep.subr.mxu0 0.0
    %3171 = vmatpush2.msra.mxu0 0.0
    %3172 = vmatprep.subr.mxu0 0.0
    %3173 = vmatpush2.msra.mxu0 0.0
    %3174 = vmatprep.subr.mxu0 0.0
    %3175 = vmatpush2.msra.mxu0 0.0
    %3176 = vmatprep.mubr.f32.mxu0 0.0
    %3177 = vmatmul.mubr.f32.gmra.mxu0 %v3089
    %v3178 = vpop.f32.mrf.mxu0
    %v3179 = vadd.f32 0.0, %v3178
    %v3180 = vpop.f32.mrf.mxu0
    %3181 = vmatprep.mubr.f32.mxu0 0.0
    %3182 = vmatmul.mubr.f32.gmra.mxu0 %v3092
    %v3183 = vpop.f32.mrf.mxu0
    %v3184 = vadd.f32 0.0, %v3183
    %v3185 = vpop.f32.mrf.mxu0
    %3186 = vmatprep.mubr.f32.mxu0 0.0
    %3187 = vmatmul.mubr.f32.gmra.mxu0 %v3095
    %v3188 = vpop.f32.mrf.mxu0
    %v3189 = vadd.f32 0.0, %v3188
    %v3190 = vpop.f32.mrf.mxu0
    %3191 = vmatprep.mubr.f32.mxu0 0.0
    %3192 = vmatmul.mubr.f32.gmra.mxu0 %v3098
    %v3193 = vpop.f32.mrf.mxu0
    %v3194 = vadd.f32 0.0, %v3193
    %v3195 = vpop.f32.mrf.mxu0
    %3196 = vmatprep.mubr.f32.mxu0 0.0
    %3197 = vmatmul.mubr.f32.gmra.mxu0 %v3101
    %v3198 = vpop.f32.mrf.mxu0
    %v3199 = vadd.f32 0.0, %v3198
    %v3200 = vpop.f32.mrf.mxu0
    %3201 = vmatprep.mubr.f32.mxu0 0.0
    %3202 = vmatmul.mubr.f32.gmra.mxu0 %v3104
    %v3203 = vpop.f32.mrf.mxu0
    %v3204 = vadd.f32 0.0, %v3203
    %v3205 = vpop.f32.mrf.mxu0
    %3206 = vmatprep.mubr.f32.mxu0 0.0
    %3207 = vmatmul.mubr.f32.gmra.mxu0 %v3107
    %v3208 = vpop.f32.mrf.mxu0
    %v3209 = vadd.f32 0.0, %v3208
    %v3210 = vpop.f32.mrf.mxu0
    %3211 = vmatprep.mubr.f32.mxu0 0.0
    %3212 = vmatmul.mubr.f32.gmra.mxu0 %v3110
    %v3213 = vpop.f32.mrf.mxu0
    %v3214 = vadd.f32 0.0, %v3213
    %v3215 = vpop.f32.mrf.mxu0
    %3216 = vdwg.mxu0
    %v3217 = vsel %vm457, %v3179, -inf
    %3218 = vmax.xlane.f32.xlu0 %v3217
    %v3219 = vpop.xlane.xlu0 %3218
    %v3220 = vsel %vm457, %v3184, -inf
    %3221 = vmax.xlane.f32.xlu0 %v3220
    %v3222 = vpop.xlane.xlu0 %3221
    %v3223 = vsel %vm457, %v3189, -inf
    %3224 = vmax.xlane.f32.xlu0 %v3223
    %v3225 = vpop.xlane.xlu0 %3224
    %v3226 = vsel %vm457, %v3194, -inf
    %3227 = vmax.xlane.f32.xlu0 %v3226
    %v3228 = vpop.xlane.xlu0 %3227
    %v3229 = vsel %vm457, %v3199, -inf
    %3230 = vmax.xlane.f32.xlu0 %v3229
    %v3231 = vpop.xlane.xlu0 %3230
    %v3232 = vsel %vm457, %v3204, -inf
    %3233 = vmax.xlane.f32.xlu0 %v3232
    %v3234 = vpop.xlane.xlu0 %3233
    %v3235 = vsel %vm457, %v3209, -inf
    %3236 = vmax.xlane.f32.xlu0 %v3235
    %v3237 = vpop.xlane.xlu0 %3236
    %v3238 = vsel %vm457, %v3214, -inf
    %3239 = vmax.xlane.f32.xlu0 %v3238
    %v3240 = vpop.xlane.xlu0 %3239
    %v3241 = vsub.f32 %v3179, %v3219
    %v3242 = vsub.f32 %v3184, %v3222
    %v3243 = vsub.f32 %v3189, %v3225
    %v3244 = vsub.f32 %v3194, %v3228
    %v3245 = vsub.f32 %v3199, %v3231
    %v3246 = vsub.f32 %v3204, %v3234
    %v3247 = vsub.f32 %v3209, %v3237
    %v3248 = vsub.f32 %v3214, %v3240
    %v3249 = vmul.f32 %v3241, 1.442695
    %v3250 = vpow.pop %v3249
    %v3251 = vmul.f32 %v3242, 1.442695
    %v3252 = vpow.pop %v3251
    %v3253 = vmul.f32 %v3243, 1.442695
    %v3254 = vpow.pop %v3253
    %v3255 = vmul.f32 %v3244, 1.442695
    %v3256 = vpow.pop %v3255
    %v3257 = vmul.f32 %v3245, 1.442695
    %v3258 = vpow.pop %v3257
    %v3259 = vmul.f32 %v3246, 1.442695
    %v3260 = vpow.pop %v3259
    %v3261 = vmul.f32 %v3247, 1.442695
    %v3262 = vpow.pop %v3261
    %v3263 = vmul.f32 %v3248, 1.442695
    %v3264 = vpow.pop %v3263
    %v3265 = vsel %vm457, %v3250, 0.0
    %3266 = vadd.xlane.f32.xlu0 %v3265
    %v3267 = vpop.xlane.xlu0 %3266
    %v3268 = vsel %vm457, %v3252, 0.0
    %3269 = vadd.xlane.f32.xlu0 %v3268
    %v3270 = vpop.xlane.xlu0 %3269
    %v3271 = vsel %vm457, %v3254, 0.0
    %3272 = vadd.xlane.f32.xlu0 %v3271
    %v3273 = vpop.xlane.xlu0 %3272
    %v3274 = vsel %vm457, %v3256, 0.0
    %3275 = vadd.xlane.f32.xlu0 %v3274
    %v3276 = vpop.xlane.xlu0 %3275
    %v3277 = vsel %vm457, %v3258, 0.0
    %3278 = vadd.xlane.f32.xlu0 %v3277
    %v3279 = vpop.xlane.xlu0 %3278
    %v3280 = vsel %vm457, %v3260, 0.0
    %3281 = vadd.xlane.f32.xlu0 %v3280
    %v3282 = vpop.xlane.xlu0 %3281
    %v3283 = vsel %vm457, %v3262, 0.0
    %3284 = vadd.xlane.f32.xlu0 %v3283
    %v3285 = vpop.xlane.xlu0 %3284
    %v3286 = vsel %vm457, %v3264, 0.0
    %3287 = vadd.xlane.f32.xlu0 %v3286
    %v3288 = vpop.xlane.xlu0 %3287
    %v3289 = vrcp.pop %v3267
    %v3290 = vmul.f32 16.0, %v3289
    %v3291 = vrcp.pop %v3270
    %v3292 = vmul.f32 16.0, %v3291
    %v3293 = vrcp.pop %v3273
    %v3294 = vmul.f32 16.0, %v3293
    %v3295 = vrcp.pop %v3276
    %v3296 = vmul.f32 16.0, %v3295
    %v3297 = vrcp.pop %v3279
    %v3298 = vmul.f32 16.0, %v3297
    %v3299 = vrcp.pop %v3282
    %v3300 = vmul.f32 16.0, %v3299
    %v3301 = vrcp.pop %v3285
    %v3302 = vmul.f32 16.0, %v3301
    %v3303 = vrcp.pop %v3288
    %v3304 = vmul.f32 16.0, %v3303
    %v3305 = vmul.f32 %v3250, %v3290
    %v3306 = vmul.f32 %v3252, %v3292
    %v3307 = vmul.f32 %v3254, %v3294
    %v3308 = vmul.f32 %v3256, %v3296
    %v3309 = vmul.f32 %v3258, %v3298
    %v3310 = vmul.f32 %v3260, %v3300
    %v3311 = vmul.f32 %v3262, %v3302
    %v3312 = vmul.f32 %v3264, %v3304
    %v3313 = vmul.f32 %v3305, %v2765
    %v3314 = vmul.f32 %v3306, %v2770
    %v3315 = vmul.f32 %v3307, %v2775
    %v3316 = vmul.f32 %v3308, %v2780
    %v3317 = vmul.f32 %v3309, %v2785
    %v3318 = vmul.f32 %v3310, %v2790
    %v3319 = vmul.f32 %v3311, %v2795
    %v3320 = vmul.f32 %v3312, %v2800
    %3321 = vmatprep.subr.mxu0 0.0
    %3322 = vmatpush1.msra.mxu0 0.0
    %3323 = vmatprep.subr.mxu0 0.0
    %3324 = vmatpush1.msra.mxu0 0.0
    %3325 = vmatprep.subr.mxu0 0.0
    %3326 = vmatpush1.msra.mxu0 0.0
    %3327 = vmatprep.subr.mxu0 0.0
    %3328 = vmatpush1.msra.mxu0 0.0
    %3329 = vmatprep.subr.mxu0 0.0
    %3330 = vmatpush1.msra.mxu0 0.0
    %3331 = vmatprep.subr.mxu0 0.0
    %3332 = vmatpush1.msra.mxu0 0.0
    %3333 = vmatprep.subr.mxu0 0.0
    %3334 = vmatpush1.msra.mxu0 0.0
    %3335 = vmatprep.subr.mxu0 0.0
    %3336 = vmatpush1.msra.mxu0 0.0
    %3337 = vmatprep.subr.mxu0 0.0
    %3338 = vmatpush1.msra.mxu0 %v3320
    %3339 = vmatprep.subr.mxu0 0.0
    %3340 = vmatpush1.msra.mxu0 %v3319
    %3341 = vmatprep.subr.mxu0 0.0
    %3342 = vmatpush1.msra.mxu0 %v3318
    %3343 = vmatprep.subr.mxu0 0.0
    %3344 = vmatpush1.msra.mxu0 %v3317
    %3345 = vmatprep.subr.mxu0 0.0
    %3346 = vmatpush1.msra.mxu0 %v3316
    %3347 = vmatprep.subr.mxu0 0.0
    %3348 = vmatpush1.msra.mxu0 %v3315
    %3349 = vmatprep.subr.mxu0 0.0
    %3350 = vmatpush1.msra.mxu0 %v3314
    %3351 = vmatprep.subr.mxu0 0.0
    %3352 = vmatpush1.msra.mxu0 %v3313
    %3353 = vmatprep.subr.mxu0 0.0
    %3354 = vmatpush2.msra.mxu0 0.0
    %3355 = vmatprep.subr.mxu0 0.0
    %3356 = vmatpush2.msra.mxu0 0.0
    %3357 = vmatprep.subr.mxu0 0.0
    %3358 = vmatpush2.msra.mxu0 0.0
    %3359 = vmatprep.subr.mxu0 0.0
    %3360 = vmatpush2.msra.mxu0 0.0
    %3361 = vmatprep.subr.mxu0 0.0
    %3362 = vmatpush2.msra.mxu0 0.0
    %3363 = vmatprep.subr.mxu0 0.0
    %3364 = vmatpush2.msra.mxu0 0.0
    %3365 = vmatprep.subr.mxu0 0.0
    %3366 = vmatpush2.msra.mxu0 0.0
    %3367 = vmatprep.subr.mxu0 0.0
    %3368 = vmatpush2.msra.mxu0 0.0
    %3369 = vmatprep.subr.mxu0 0.0
    %3370 = vmatpush2.msra.mxu0 0.0
    %3371 = vmatprep.subr.mxu0 0.0
    %3372 = vmatpush2.msra.mxu0 0.0
    %3373 = vmatprep.subr.mxu0 0.0
    %3374 = vmatpush2.msra.mxu0 0.0
    %3375 = vmatprep.subr.mxu0 0.0
    %3376 = vmatpush2.msra.mxu0 0.0
    %3377 = vmatprep.subr.mxu0 0.0
    %3378 = vmatpush2.msra.mxu0 0.0
    %3379 = vmatprep.subr.mxu0 0.0
    %3380 = vmatpush2.msra.mxu0 0.0
    %3381 = vmatprep.subr.mxu0 0.0
    %3382 = vmatpush2.msra.mxu0 0.0
    %3383 = vmatprep.subr.mxu0 0.0
    %3384 = vmatpush2.msra.mxu0 0.0
    %3385 = vmatprep.mubr.f32.mxu0 0.0
    %3386 = vmatmul.mubr.f32.gmra.mxu0 %v2812
    %v3387 = vpop.f32.mrf.mxu0
    %v3388 = vadd.f32 0.0, %v3387
    %v3389 = vpop.f32.mrf.mxu0
    %3390 = vdwg.mxu0
    %v3391 = vmul.f32 %v3388, %v3388
    %v3393 = vsel %vm457, %v3391, 0
    %3395 = vmatprep.subr.mxu0 0.0
    %3396 = vmatpush1.msra.mxu0 0.0
    %3397 = vmatprep.subr.mxu0 0.0
    %3398 = vmatpush1.msra.mxu0 0.0
    %3399 = vmatprep.subr.mxu0 0.0
    %3400 = vmatpush1.msra.mxu0 0.0
    %3401 = vmatprep.subr.mxu0 0.0
    %3402 = vmatpush1.msra.mxu0 0.0
    %3403 = vmatprep.subr.mxu0 0.0
    %3404 = vmatpush1.msra.mxu0 %v2489
    %3405 = vmatprep.subr.mxu0 0.0
    %3406 = vmatpush1.msra.mxu0 %v2488
    %3407 = vmatprep.subr.mxu0 0.0
    %3408 = vmatpush1.msra.mxu0 %v2487
    %3409 = vmatprep.subr.mxu0 0.0
    %3410 = vmatpush1.msra.mxu0 %v2486
    %3411 = vmatprep.subr.mxu0 0.0
    %3412 = vmatpush1.msra.mxu0 %v2485
    %3413 = vmatprep.subr.mxu0 0.0
    %3414 = vmatpush1.msra.mxu0 %v2484
    %3415 = vmatprep.subr.mxu0 0.0
    %3416 = vmatpush1.msra.mxu0 %v2483
    %3417 = vmatprep.subr.mxu0 0.0
    %3418 = vmatpush1.msra.mxu0 %v2482
    %3419 = vmatprep.subr.mxu0 0.0
    %3420 = vmatpush1.msra.mxu0 %v2481
    %3421 = vmatprep.subr.mxu0 0.0
    %3422 = vmatpush1.msra.mxu0 %v2480
    %3423 = vmatprep.subr.mxu0 0.0
    %3424 = vmatpush1.msra.mxu0 %v2479
    %3425 = vmatprep.subr.mxu0 0.0
    %3426 = vmatpush1.msra.mxu0 %v2478
    %3427 = vmatprep.subr.mxu0 0.0
    %3428 = vmatpush2.msra.mxu0 0.0
    %3429 = vmatprep.subr.mxu0 0.0
    %3430 = vmatpush2.msra.mxu0 0.0
    %3431 = vmatprep.subr.mxu0 0.0
    %3432 = vmatpush2.msra.mxu0 0.0
    %3433 = vmatprep.subr.mxu0 0.0
    %3434 = vmatpush2.msra.mxu0 0.0
    %3435 = vmatprep.subr.mxu0 0.0
    %3436 = vmatpush2.msra.mxu0 0.0
    %3437 = vmatprep.subr.mxu0 0.0
    %3438 = vmatpush2.msra.mxu0 0.0
    %3439 = vmatprep.subr.mxu0 0.0
    %3440 = vmatpush2.msra.mxu0 0.0
    %3441 = vmatprep.subr.mxu0 0.0
    %3442 = vmatpush2.msra.mxu0 0.0
    %3443 = vmatprep.subr.mxu0 0.0
    %3444 = vmatpush2.msra.mxu0 0.0
    %3445 = vmatprep.subr.mxu0 0.0
    %3446 = vmatpush2.msra.mxu0 0.0
    %3447 = vmatprep.subr.mxu0 0.0
    %3448 = vmatpush2.msra.mxu0 0.0
    %3449 = vmatprep.subr.mxu0 0.0
    %3450 = vmatpush2.msra.mxu0 0.0
    %3451 = vmatprep.subr.mxu0 0.0
    %3452 = vmatpush2.msra.mxu0 0.0
    %3453 = vmatprep.subr.mxu0 0.0
    %3454 = vmatpush2.msra.mxu0 0.0
    %3455 = vmatprep.subr.mxu0 0.0
    %3456 = vmatpush2.msra.mxu0 0.0
    %3457 = vmatprep.subr.mxu0 0.0
    %3458 = vmatpush2.msra.mxu0 0.0
    %3459 = vmatprep.mubr.f32.mxu0 0.0
    %3460 = vmatmul.mubr.f32.gmra.mxu0 %v3393
    %v3461 = vpop.f32.mrf.mxu0
    %v3462 = vadd.f32 0.0, %v3461
    %v3463 = vpop.f32.mrf.mxu0
    %3464 = vdwg.mxu0
    %v3465 = vadd.f32 %v3462, 1.0
    %v3466 = vrcp.pop %v3465
    %v3467 = vmul.f32 %v3462, %v3466
    %v3468 = vadd.f32 %v3462, 1e-08
    %v3469 = vrsqrt.pop %v3468
    %v3470 = vmul.f32 %v3468, %v3469
    %vm3471 = vcmp.eq.f32.partialorder %v3468, inf
    %v3472 = vsel %vm3471, %v3468, %v3470
    %vm3473 = vcmp.eq.f32.partialorder %v3468, 0.0
    %v3474 = vand.u32 %v3468, 2147483648
    %v3475 = vsel %vm3473, %v3474, %v3472
    %v3476 = vrcp.pop %v3475
    %v3477 = vmul.f32 %v3467, %v3476
    %v3478 = vmul.f32 %v3388, %v3477
    %v3480 = vsel %vm91, %v3478, 0
    %3482 = vmatprep.subr.mxu0 0.0
    %3483 = vmatpush1.msra.mxu0 0.0
    %3484 = vmatprep.subr.mxu0 0.0
    %3485 = vmatpush1.msra.mxu0 0.0
    %3486 = vmatprep.subr.mxu0 0.0
    %3487 = vmatpush1.msra.mxu0 0.0
    %3488 = vmatprep.subr.mxu0 0.0
    %3489 = vmatpush1.msra.mxu0 0.0
    %3490 = vmatprep.subr.mxu0 0.0
    %3491 = vmatpush1.msra.mxu0 0.0
    %3492 = vmatprep.subr.mxu0 0.0
    %3493 = vmatpush1.msra.mxu0 0.0
    %3494 = vmatprep.subr.mxu0 0.0
    %3495 = vmatpush1.msra.mxu0 0.0
    %3496 = vmatprep.subr.mxu0 0.0
    %3497 = vmatpush1.msra.mxu0 0.0
    %3498 = vmatprep.subr.mxu0 0.0
    %3499 = vmatpush1.msra.mxu0 0.0
    %3500 = vmatprep.subr.mxu0 0.0
    %3501 = vmatpush1.msra.mxu0 0.0
    %3502 = vmatprep.subr.mxu0 0.0
    %3503 = vmatpush1.msra.mxu0 0.0
    %3504 = vmatprep.subr.mxu0 0.0
    %3505 = vmatpush1.msra.mxu0 0.0
    %3506 = vmatprep.subr.mxu0 0.0
    %3507 = vmatpush1.msra.mxu0 0.0
    %3508 = vmatprep.subr.mxu0 0.0
    %3509 = vmatpush1.msra.mxu0 0.0
    %3510 = vmatprep.subr.mxu0 0.0
    %3511 = vmatpush1.msra.mxu0 0.0
    %3512 = vmatprep.subr.mxu0 0.0
    %3513 = vmatpush1.msra.mxu0 %v3480
    %3514 = vmatprep.subr.mxu0 0.0
    %3515 = vmatpush2.msra.mxu0 0.0
    %3516 = vmatprep.subr.mxu0 0.0
    %3517 = vmatpush2.msra.mxu0 0.0
    %3518 = vmatprep.subr.mxu0 0.0
    %3519 = vmatpush2.msra.mxu0 0.0
    %3520 = vmatprep.subr.mxu0 0.0
    %3521 = vmatpush2.msra.mxu0 0.0
    %3522 = vmatprep.subr.mxu0 0.0
    %3523 = vmatpush2.msra.mxu0 0.0
    %3524 = vmatprep.subr.mxu0 0.0
    %3525 = vmatpush2.msra.mxu0 0.0
    %3526 = vmatprep.subr.mxu0 0.0
    %3527 = vmatpush2.msra.mxu0 0.0
    %3528 = vmatprep.subr.mxu0 0.0
    %3529 = vmatpush2.msra.mxu0 0.0
    %3530 = vmatprep.subr.mxu0 0.0
    %3531 = vmatpush2.msra.mxu0 0.0
    %3532 = vmatprep.subr.mxu0 0.0
    %3533 = vmatpush2.msra.mxu0 0.0
    %3534 = vmatprep.subr.mxu0 0.0
    %3535 = vmatpush2.msra.mxu0 0.0
    %3536 = vmatprep.subr.mxu0 0.0
    %3537 = vmatpush2.msra.mxu0 0.0
    %3538 = vmatprep.subr.mxu0 0.0
    %3539 = vmatpush2.msra.mxu0 0.0
    %3540 = vmatprep.subr.mxu0 0.0
    %3541 = vmatpush2.msra.mxu0 0.0
    %3542 = vmatprep.subr.mxu0 0.0
    %3543 = vmatpush2.msra.mxu0 0.0
    %3544 = vmatprep.subr.mxu0 0.0
    %3545 = vmatpush2.msra.mxu0 0.0
    %3546 = vmatprep.mubr.f32.mxu0 0.0
    %3547 = vmatmul.mubr.f32.gmra.mxu0 %v2492
    %v3548 = vpop.f32.mrf.mxu0
    %v3549 = vadd.f32 0.0, %v3548
    %v3550 = vpop.f32.mrf.mxu0
    %3551 = vmatprep.mubr.f32.mxu0 0.0
    %3552 = vmatmul.mubr.f32.gmra.mxu0 %v2495
    %v3553 = vpop.f32.mrf.mxu0
    %v3554 = vadd.f32 0.0, %v3553
    %v3555 = vpop.f32.mrf.mxu0
    %3556 = vmatprep.mubr.f32.mxu0 0.0
    %3557 = vmatmul.mubr.f32.gmra.mxu0 %v2498
    %v3558 = vpop.f32.mrf.mxu0
    %v3559 = vadd.f32 0.0, %v3558
    %v3560 = vpop.f32.mrf.mxu0
    %3561 = vmatprep.mubr.f32.mxu0 0.0
    %3562 = vmatmul.mubr.f32.gmra.mxu0 %v2501
    %v3563 = vpop.f32.mrf.mxu0
    %v3564 = vadd.f32 0.0, %v3563
    %v3565 = vpop.f32.mrf.mxu0
    %3566 = vmatprep.mubr.f32.mxu0 0.0
    %3567 = vmatmul.mubr.f32.gmra.mxu0 %v2504
    %v3568 = vpop.f32.mrf.mxu0
    %v3569 = vadd.f32 0.0, %v3568
    %v3570 = vpop.f32.mrf.mxu0
    %3571 = vmatprep.mubr.f32.mxu0 0.0
    %3572 = vmatmul.mubr.f32.gmra.mxu0 %v2507
    %v3573 = vpop.f32.mrf.mxu0
    %v3574 = vadd.f32 0.0, %v3573
    %v3575 = vpop.f32.mrf.mxu0
    %3576 = vmatprep.mubr.f32.mxu0 0.0
    %3577 = vmatmul.mubr.f32.gmra.mxu0 %v2510
    %v3578 = vpop.f32.mrf.mxu0
    %v3579 = vadd.f32 0.0, %v3578
    %v3580 = vpop.f32.mrf.mxu0
    %3581 = vmatprep.mubr.f32.mxu0 0.0
    %3582 = vmatmul.mubr.f32.gmra.mxu0 %v2513
    %v3583 = vpop.f32.mrf.mxu0
    %v3584 = vadd.f32 0.0, %v3583
    %v3585 = vpop.f32.mrf.mxu0
    %3586 = vdwg.mxu0
    %v3587 = vmul.f32 %v2765, %v3549
    %v3588 = vmul.f32 %v2770, %v3554
    %v3589 = vmul.f32 %v2775, %v3559
    %v3590 = vmul.f32 %v2780, %v3564
    %v3591 = vmul.f32 %v2785, %v3569
    %v3592 = vmul.f32 %v2790, %v3574
    %v3593 = vmul.f32 %v2795, %v3579
    %v3594 = vmul.f32 %v2800, %v3584
    %v3596 = vsel %vm457, %v3587, 0
    %v3599 = vsel %vm457, %v3588, 0
    %v3602 = vsel %vm457, %v3589, 0
    %v3605 = vsel %vm457, %v3590, 0
    %v3608 = vsel %vm457, %v3591, 0
    %v3611 = vsel %vm457, %v3592, 0
    %v3614 = vsel %vm457, %v3593, 0
    %v3617 = vsel %vm457, %v3594, 0
    %3619 = vmatprep.subr.mxu0 0.0
    %3620 = vmatpush1.msra.mxu0 0.0
    %3621 = vmatprep.subr.mxu0 0.0
    %3622 = vmatpush1.msra.mxu0 0.0
    %3623 = vmatprep.subr.mxu0 0.0
    %3624 = vmatpush1.msra.mxu0 0.0
    %3625 = vmatprep.subr.mxu0 0.0
    %3626 = vmatpush1.msra.mxu0 0.0
    %3627 = vmatprep.subr.mxu0 0.0
    %3628 = vmatpush1.msra.mxu0 %v2489
    %3629 = vmatprep.subr.mxu0 0.0
    %3630 = vmatpush1.msra.mxu0 %v2488
    %3631 = vmatprep.subr.mxu0 0.0
    %3632 = vmatpush1.msra.mxu0 %v2487
    %3633 = vmatprep.subr.mxu0 0.0
    %3634 = vmatpush1.msra.mxu0 %v2486
    %3635 = vmatprep.subr.mxu0 0.0
    %3636 = vmatpush1.msra.mxu0 %v2485
    %3637 = vmatprep.subr.mxu0 0.0
    %3638 = vmatpush1.msra.mxu0 %v2484
    %3639 = vmatprep.subr.mxu0 0.0
    %3640 = vmatpush1.msra.mxu0 %v2483
    %3641 = vmatprep.subr.mxu0 0.0
    %3642 = vmatpush1.msra.mxu0 %v2482
    %3643 = vmatprep.subr.mxu0 0.0
    %3644 = vmatpush1.msra.mxu0 %v2481
    %3645 = vmatprep.subr.mxu0 0.0
    %3646 = vmatpush1.msra.mxu0 %v2480
    %3647 = vmatprep.subr.mxu0 0.0
    %3648 = vmatpush1.msra.mxu0 %v2479
    %3649 = vmatprep.subr.mxu0 0.0
    %3650 = vmatpush1.msra.mxu0 %v2478
    %3651 = vmatprep.subr.mxu0 0.0
    %3652 = vmatpush2.msra.mxu0 0.0
    %3653 = vmatprep.subr.mxu0 0.0
    %3654 = vmatpush2.msra.mxu0 0.0
    %3655 = vmatprep.subr.mxu0 0.0
    %3656 = vmatpush2.msra.mxu0 0.0
    %3657 = vmatprep.subr.mxu0 0.0
    %3658 = vmatpush2.msra.mxu0 0.0
    %3659 = vmatprep.subr.mxu0 0.0
    %3660 = vmatpush2.msra.mxu0 0.0
    %3661 = vmatprep.subr.mxu0 0.0
    %3662 = vmatpush2.msra.mxu0 0.0
    %3663 = vmatprep.subr.mxu0 0.0
    %3664 = vmatpush2.msra.mxu0 0.0
    %3665 = vmatprep.subr.mxu0 0.0
    %3666 = vmatpush2.msra.mxu0 0.0
    %3667 = vmatprep.subr.mxu0 0.0
    %3668 = vmatpush2.msra.mxu0 0.0
    %3669 = vmatprep.subr.mxu0 0.0
    %3670 = vmatpush2.msra.mxu0 0.0
    %3671 = vmatprep.subr.mxu0 0.0
    %3672 = vmatpush2.msra.mxu0 0.0
    %3673 = vmatprep.subr.mxu0 0.0
    %3674 = vmatpush2.msra.mxu0 0.0
    %3675 = vmatprep.subr.mxu0 0.0
    %3676 = vmatpush2.msra.mxu0 0.0
    %3677 = vmatprep.subr.mxu0 0.0
    %3678 = vmatpush2.msra.mxu0 0.0
    %3679 = vmatprep.subr.mxu0 0.0
    %3680 = vmatpush2.msra.mxu0 0.0
    %3681 = vmatprep.subr.mxu0 0.0
    %3682 = vmatpush2.msra.mxu0 0.0
    %3683 = vmatprep.mubr.f32.mxu0 0.0
    %3684 = vmatmul.mubr.f32.gmra.mxu0 %v3596
    %v3685 = vpop.f32.mrf.mxu0
    %v3686 = vadd.f32 0.0, %v3685
    %v3687 = vpop.f32.mrf.mxu0
    %3688 = vmatprep.mubr.f32.mxu0 0.0
    %3689 = vmatmul.mubr.f32.gmra.mxu0 %v3599
    %v3690 = vpop.f32.mrf.mxu0
    %v3691 = vadd.f32 0.0, %v3690
    %v3692 = vpop.f32.mrf.mxu0
    %3693 = vmatprep.mubr.f32.mxu0 0.0
    %3694 = vmatmul.mubr.f32.gmra.mxu0 %v3602
    %v3695 = vpop.f32.mrf.mxu0
    %v3696 = vadd.f32 0.0, %v3695
    %v3697 = vpop.f32.mrf.mxu0
    %3698 = vmatprep.mubr.f32.mxu0 0.0
    %3699 = vmatmul.mubr.f32.gmra.mxu0 %v3605
    %v3700 = vpop.f32.mrf.mxu0
    %v3701 = vadd.f32 0.0, %v3700
    %v3702 = vpop.f32.mrf.mxu0
    %3703 = vmatprep.mubr.f32.mxu0 0.0
    %3704 = vmatmul.mubr.f32.gmra.mxu0 %v3608
    %v3705 = vpop.f32.mrf.mxu0
    %v3706 = vadd.f32 0.0, %v3705
    %v3707 = vpop.f32.mrf.mxu0
    %3708 = vmatprep.mubr.f32.mxu0 0.0
    %3709 = vmatmul.mubr.f32.gmra.mxu0 %v3611
    %v3710 = vpop.f32.mrf.mxu0
    %v3711 = vadd.f32 0.0, %v3710
    %v3712 = vpop.f32.mrf.mxu0
    %3713 = vmatprep.mubr.f32.mxu0 0.0
    %3714 = vmatmul.mubr.f32.gmra.mxu0 %v3614
    %v3715 = vpop.f32.mrf.mxu0
    %v3716 = vadd.f32 0.0, %v3715
    %v3717 = vpop.f32.mrf.mxu0
    %3718 = vmatprep.mubr.f32.mxu0 0.0
    %3719 = vmatmul.mubr.f32.gmra.mxu0 %v3617
    %v3720 = vpop.f32.mrf.mxu0
    %v3721 = vadd.f32 0.0, %v3720
    %v3722 = vpop.f32.mrf.mxu0
    %3723 = vdwg.mxu0
    %v3724 = vadd.f32 %v3179, %v3686
    %v3725 = vadd.f32 %v3184, %v3691
    %v3726 = vadd.f32 %v3189, %v3696
    %v3727 = vadd.f32 %v3194, %v3701
    %v3728 = vadd.f32 %v3199, %v3706
    %v3729 = vadd.f32 %v3204, %v3711
    %v3730 = vadd.f32 %v3209, %v3716
    %v3731 = vadd.f32 %v3214, %v3721
    %v3732 = vsel %vm457, %v3724, -inf
    %3733 = vmax.xlane.f32.xlu0 %v3732
    %v3734 = vpop.xlane.xlu0 %3733
    %v3735 = vsel %vm457, %v3725, -inf
    %3736 = vmax.xlane.f32.xlu0 %v3735
    %v3737 = vpop.xlane.xlu0 %3736
    %v3738 = vsel %vm457, %v3726, -inf
    %3739 = vmax.xlane.f32.xlu0 %v3738
    %v3740 = vpop.xlane.xlu0 %3739
    %v3741 = vsel %vm457, %v3727, -inf
    %3742 = vmax.xlane.f32.xlu0 %v3741
    %v3743 = vpop.xlane.xlu0 %3742
    %v3744 = vsel %vm457, %v3728, -inf
    %3745 = vmax.xlane.f32.xlu0 %v3744
    %v3746 = vpop.xlane.xlu0 %3745
    %v3747 = vsel %vm457, %v3729, -inf
    %3748 = vmax.xlane.f32.xlu0 %v3747
    %v3749 = vpop.xlane.xlu0 %3748
    %v3750 = vsel %vm457, %v3730, -inf
    %3751 = vmax.xlane.f32.xlu0 %v3750
    %v3752 = vpop.xlane.xlu0 %3751
    %v3753 = vsel %vm457, %v3731, -inf
    %3754 = vmax.xlane.f32.xlu0 %v3753
    %v3755 = vpop.xlane.xlu0 %3754
    %v3756 = vsub.f32 %v3724, %v3734
    %v3757 = vsub.f32 %v3725, %v3737
    %v3758 = vsub.f32 %v3726, %v3740
    %v3759 = vsub.f32 %v3727, %v3743
    %v3760 = vsub.f32 %v3728, %v3746
    %v3761 = vsub.f32 %v3729, %v3749
    %v3762 = vsub.f32 %v3730, %v3752
    %v3763 = vsub.f32 %v3731, %v3755
    %v3764 = vmul.f32 %v3756, 1.442695
    %v3765 = vpow.pop %v3764
    %v3766 = vmul.f32 %v3757, 1.442695
    %v3767 = vpow.pop %v3766
    %v3768 = vmul.f32 %v3758, 1.442695
    %v3769 = vpow.pop %v3768
    %v3770 = vmul.f32 %v3759, 1.442695
    %v3771 = vpow.pop %v3770
    %v3772 = vmul.f32 %v3760, 1.442695
    %v3773 = vpow.pop %v3772
    %v3774 = vmul.f32 %v3761, 1.442695
    %v3775 = vpow.pop %v3774
    %v3776 = vmul.f32 %v3762, 1.442695
    %v3777 = vpow.pop %v3776
    %v3778 = vmul.f32 %v3763, 1.442695
    %v3779 = vpow.pop %v3778
    %v3780 = vsel %vm457, %v3765, 0.0
    %3781 = vadd.xlane.f32.xlu0 %v3780
    %v3782 = vpop.xlane.xlu0 %3781
    %v3783 = vsel %vm457, %v3767, 0.0
    %3784 = vadd.xlane.f32.xlu0 %v3783
    %v3785 = vpop.xlane.xlu0 %3784
    %v3786 = vsel %vm457, %v3769, 0.0
    %3787 = vadd.xlane.f32.xlu0 %v3786
    %v3788 = vpop.xlane.xlu0 %3787
    %v3789 = vsel %vm457, %v3771, 0.0
    %3790 = vadd.xlane.f32.xlu0 %v3789
    %v3791 = vpop.xlane.xlu0 %3790
    %v3792 = vsel %vm457, %v3773, 0.0
    %3793 = vadd.xlane.f32.xlu0 %v3792
    %v3794 = vpop.xlane.xlu0 %3793
    %v3795 = vsel %vm457, %v3775, 0.0
    %3796 = vadd.xlane.f32.xlu0 %v3795
    %v3797 = vpop.xlane.xlu0 %3796
    %v3798 = vsel %vm457, %v3777, 0.0
    %3799 = vadd.xlane.f32.xlu0 %v3798
    %v3800 = vpop.xlane.xlu0 %3799
    %v3801 = vsel %vm457, %v3779, 0.0
    %3802 = vadd.xlane.f32.xlu0 %v3801
    %v3803 = vpop.xlane.xlu0 %3802
    %v3804 = vrcp.pop %v3782
    %v3805 = vmul.f32 16.0, %v3804
    %v3806 = vrcp.pop %v3785
    %v3807 = vmul.f32 16.0, %v3806
    %v3808 = vrcp.pop %v3788
    %v3809 = vmul.f32 16.0, %v3808
    %v3810 = vrcp.pop %v3791
    %v3811 = vmul.f32 16.0, %v3810
    %v3812 = vrcp.pop %v3794
    %v3813 = vmul.f32 16.0, %v3812
    %v3814 = vrcp.pop %v3797
    %v3815 = vmul.f32 16.0, %v3814
    %v3816 = vrcp.pop %v3800
    %v3817 = vmul.f32 16.0, %v3816
    %v3818 = vrcp.pop %v3803
    %v3819 = vmul.f32 16.0, %v3818
    %v3820 = vmul.f32 %v3765, %v3805
    %v3821 = vmul.f32 %v3767, %v3807
    %v3822 = vmul.f32 %v3769, %v3809
    %v3823 = vmul.f32 %v3771, %v3811
    %v3824 = vmul.f32 %v3773, %v3813
    %v3825 = vmul.f32 %v3775, %v3815
    %v3826 = vmul.f32 %v3777, %v3817
    %v3827 = vmul.f32 %v3779, %v3819
    %v3828 = vmul.f32 %v3820, %v2765
    %v3829 = vmul.f32 %v3821, %v2770
    %v3830 = vmul.f32 %v3822, %v2775
    %v3831 = vmul.f32 %v3823, %v2780
    %v3832 = vmul.f32 %v3824, %v2785
    %v3833 = vmul.f32 %v3825, %v2790
    %v3834 = vmul.f32 %v3826, %v2795
    %v3835 = vmul.f32 %v3827, %v2800
    %3836 = vmatprep.subr.mxu0 0.0
    %3837 = vmatpush1.msra.mxu0 0.0
    %3838 = vmatprep.subr.mxu0 0.0
    %3839 = vmatpush1.msra.mxu0 0.0
    %3840 = vmatprep.subr.mxu0 0.0
    %3841 = vmatpush1.msra.mxu0 0.0
    %3842 = vmatprep.subr.mxu0 0.0
    %3843 = vmatpush1.msra.mxu0 0.0
    %3844 = vmatprep.subr.mxu0 0.0
    %3845 = vmatpush1.msra.mxu0 0.0
    %3846 = vmatprep.subr.mxu0 0.0
    %3847 = vmatpush1.msra.mxu0 0.0
    %3848 = vmatprep.subr.mxu0 0.0
    %3849 = vmatpush1.msra.mxu0 0.0
    %3850 = vmatprep.subr.mxu0 0.0
    %3851 = vmatpush1.msra.mxu0 0.0
    %3852 = vmatprep.subr.mxu0 0.0
    %3853 = vmatpush1.msra.mxu0 %v3835
    %3854 = vmatprep.subr.mxu0 0.0
    %3855 = vmatpush1.msra.mxu0 %v3834
    %3856 = vmatprep.subr.mxu0 0.0
    %3857 = vmatpush1.msra.mxu0 %v3833
    %3858 = vmatprep.subr.mxu0 0.0
    %3859 = vmatpush1.msra.mxu0 %v3832
    %3860 = vmatprep.subr.mxu0 0.0
    %3861 = vmatpush1.msra.mxu0 %v3831
    %3862 = vmatprep.subr.mxu0 0.0
    %3863 = vmatpush1.msra.mxu0 %v3830
    %3864 = vmatprep.subr.mxu0 0.0
    %3865 = vmatpush1.msra.mxu0 %v3829
    %3866 = vmatprep.subr.mxu0 0.0
    %3867 = vmatpush1.msra.mxu0 %v3828
    %3868 = vmatprep.subr.mxu0 0.0
    %3869 = vmatpush2.msra.mxu0 0.0
    %3870 = vmatprep.subr.mxu0 0.0
    %3871 = vmatpush2.msra.mxu0 0.0
    %3872 = vmatprep.subr.mxu0 0.0
    %3873 = vmatpush2.msra.mxu0 0.0
    %3874 = vmatprep.subr.mxu0 0.0
    %3875 = vmatpush2.msra.mxu0 0.0
    %3876 = vmatprep.subr.mxu0 0.0
    %3877 = vmatpush2.msra.mxu0 0.0
    %3878 = vmatprep.subr.mxu0 0.0
    %3879 = vmatpush2.msra.mxu0 0.0
    %3880 = vmatprep.subr.mxu0 0.0
    %3881 = vmatpush2.msra.mxu0 0.0
    %3882 = vmatprep.subr.mxu0 0.0
    %3883 = vmatpush2.msra.mxu0 0.0
    %3884 = vmatprep.subr.mxu0 0.0
    %3885 = vmatpush2.msra.mxu0 0.0
    %3886 = vmatprep.subr.mxu0 0.0
    %3887 = vmatpush2.msra.mxu0 0.0
    %3888 = vmatprep.subr.mxu0 0.0
    %3889 = vmatpush2.msra.mxu0 0.0
    %3890 = vmatprep.subr.mxu0 0.0
    %3891 = vmatpush2.msra.mxu0 0.0
    %3892 = vmatprep.subr.mxu0 0.0
    %3893 = vmatpush2.msra.mxu0 0.0
    %3894 = vmatprep.subr.mxu0 0.0
    %3895 = vmatpush2.msra.mxu0 0.0
    %3896 = vmatprep.subr.mxu0 0.0
    %3897 = vmatpush2.msra.mxu0 0.0
    %3898 = vmatprep.subr.mxu0 0.0
    %3899 = vmatpush2.msra.mxu0 0.0
    %3900 = vmatprep.mubr.f32.mxu0 0.0
    %3901 = vmatmul.mubr.f32.gmra.mxu0 %v2812
    %v3902 = vpop.f32.mrf.mxu0
    %v3903 = vadd.f32 0.0, %v3902
    %v3904 = vpop.f32.mrf.mxu0
    %3905 = vdwg.mxu0
    %v3906 = vmul.f32 %v3903, %v3903
    %v3908 = vsel %vm457, %v3906, 0
    %3910 = vmatprep.subr.mxu0 0.0
    %3911 = vmatpush1.msra.mxu0 0.0
    %3912 = vmatprep.subr.mxu0 0.0
    %3913 = vmatpush1.msra.mxu0 0.0
    %3914 = vmatprep.subr.mxu0 0.0
    %3915 = vmatpush1.msra.mxu0 0.0
    %3916 = vmatprep.subr.mxu0 0.0
    %3917 = vmatpush1.msra.mxu0 0.0
    %3918 = vmatprep.subr.mxu0 0.0
    %3919 = vmatpush1.msra.mxu0 %v2489
    %3920 = vmatprep.subr.mxu0 0.0
    %3921 = vmatpush1.msra.mxu0 %v2488
    %3922 = vmatprep.subr.mxu0 0.0
    %3923 = vmatpush1.msra.mxu0 %v2487
    %3924 = vmatprep.subr.mxu0 0.0
    %3925 = vmatpush1.msra.mxu0 %v2486
    %3926 = vmatprep.subr.mxu0 0.0
    %3927 = vmatpush1.msra.mxu0 %v2485
    %3928 = vmatprep.subr.mxu0 0.0
    %3929 = vmatpush1.msra.mxu0 %v2484
    %3930 = vmatprep.subr.mxu0 0.0
    %3931 = vmatpush1.msra.mxu0 %v2483
    %3932 = vmatprep.subr.mxu0 0.0
    %3933 = vmatpush1.msra.mxu0 %v2482
    %3934 = vmatprep.subr.mxu0 0.0
    %3935 = vmatpush1.msra.mxu0 %v2481
    %3936 = vmatprep.subr.mxu0 0.0
    %3937 = vmatpush1.msra.mxu0 %v2480
    %3938 = vmatprep.subr.mxu0 0.0
    %3939 = vmatpush1.msra.mxu0 %v2479
    %3940 = vmatprep.subr.mxu0 0.0
    %3941 = vmatpush1.msra.mxu0 %v2478
    %3942 = vmatprep.subr.mxu0 0.0
    %3943 = vmatpush2.msra.mxu0 0.0
    %3944 = vmatprep.subr.mxu0 0.0
    %3945 = vmatpush2.msra.mxu0 0.0
    %3946 = vmatprep.subr.mxu0 0.0
    %3947 = vmatpush2.msra.mxu0 0.0
    %3948 = vmatprep.subr.mxu0 0.0
    %3949 = vmatpush2.msra.mxu0 0.0
    %3950 = vmatprep.subr.mxu0 0.0
    %3951 = vmatpush2.msra.mxu0 0.0
    %3952 = vmatprep.subr.mxu0 0.0
    %3953 = vmatpush2.msra.mxu0 0.0
    %3954 = vmatprep.subr.mxu0 0.0
    %3955 = vmatpush2.msra.mxu0 0.0
    %3956 = vmatprep.subr.mxu0 0.0
    %3957 = vmatpush2.msra.mxu0 0.0
    %3958 = vmatprep.subr.mxu0 0.0
    %3959 = vmatpush2.msra.mxu0 0.0
    %3960 = vmatprep.subr.mxu0 0.0
    %3961 = vmatpush2.msra.mxu0 0.0
    %3962 = vmatprep.subr.mxu0 0.0
    %3963 = vmatpush2.msra.mxu0 0.0
    %3964 = vmatprep.subr.mxu0 0.0
    %3965 = vmatpush2.msra.mxu0 0.0
    %3966 = vmatprep.subr.mxu0 0.0
    %3967 = vmatpush2.msra.mxu0 0.0
    %3968 = vmatprep.subr.mxu0 0.0
    %3969 = vmatpush2.msra.mxu0 0.0
    %3970 = vmatprep.subr.mxu0 0.0
    %3971 = vmatpush2.msra.mxu0 0.0
    %3972 = vmatprep.subr.mxu0 0.0
    %3973 = vmatpush2.msra.mxu0 0.0
    %3974 = vmatprep.mubr.f32.mxu0 0.0
    %3975 = vmatmul.mubr.f32.gmra.mxu0 %v3908
    %v3976 = vpop.f32.mrf.mxu0
    %v3977 = vadd.f32 0.0, %v3976
    %v3978 = vpop.f32.mrf.mxu0
    %3979 = vdwg.mxu0
    %v3980 = vadd.f32 %v3977, 1.0
    %v3981 = vrcp.pop %v3980
    %v3982 = vmul.f32 %v3977, %v3981
    %v3983 = vadd.f32 %v3977, 1e-08
    %v3984 = vrsqrt.pop %v3983
    %v3985 = vmul.f32 %v3983, %v3984
    %vm3986 = vcmp.eq.f32.partialorder %v3983, inf
    %v3987 = vsel %vm3986, %v3983, %v3985
    %vm3988 = vcmp.eq.f32.partialorder %v3983, 0.0
    %v3989 = vand.u32 %v3983, 2147483648
    %v3990 = vsel %vm3988, %v3989, %v3987
    %v3991 = vrcp.pop %v3990
    %v3992 = vmul.f32 %v3982, %v3991
    %v3993 = vmul.f32 %v3903, %v3992
    %v3994 = vmul.f32 %v3993, %v3993
    %v3995 = vld [vmem:[%s13] sm:$0xff]
    %v3996 = vld [vmem:[%s13 + $0x8] sm:$0xff]
    %v3997 = vld [vmem:[%s13 + $0x10] sm:$0xff]
    %v3998 = vld [vmem:[%s13 + $0x18] sm:$0xff]
    %v3999 = vld [vmem:[%s13 + $0x20] sm:$0xff]
    %v4000 = vld [vmem:[%s13 + $0x28] sm:$0xff]
    %v4001 = vld [vmem:[%s13 + $0x30] sm:$0xff]
    %v4002 = vld [vmem:[%s13 + $0x38] sm:$0xff]
    %v4003 = vld [vmem:[%s13 + $0x40] sm:$0xff]
    %v4004 = vld [vmem:[%s13 + $0x48] sm:$0xff]
    %v4005 = vld [vmem:[%s13 + $0x50] sm:$0xff]
    %v4006 = vld [vmem:[%s13 + $0x58] sm:$0xff]
    %v4008 = vsel %vm457, %v3994, 0
    %4010 = vmatprep.subr.mxu0 0.0
    %4011 = vmatpush1.msra.mxu0 0.0
    %4012 = vmatprep.subr.mxu0 0.0
    %4013 = vmatpush1.msra.mxu0 0.0
    %4014 = vmatprep.subr.mxu0 0.0
    %4015 = vmatpush1.msra.mxu0 0.0
    %4016 = vmatprep.subr.mxu0 0.0
    %4017 = vmatpush1.msra.mxu0 0.0
    %4018 = vmatprep.subr.mxu0 0.0
    %4019 = vmatpush1.msra.mxu0 %v4006
    %4020 = vmatprep.subr.mxu0 0.0
    %4021 = vmatpush1.msra.mxu0 %v4005
    %4022 = vmatprep.subr.mxu0 0.0
    %4023 = vmatpush1.msra.mxu0 %v4004
    %4024 = vmatprep.subr.mxu0 0.0
    %4025 = vmatpush1.msra.mxu0 %v4003
    %4026 = vmatprep.subr.mxu0 0.0
    %4027 = vmatpush1.msra.mxu0 %v4002
    %4028 = vmatprep.subr.mxu0 0.0
    %4029 = vmatpush1.msra.mxu0 %v4001
    %4030 = vmatprep.subr.mxu0 0.0
    %4031 = vmatpush1.msra.mxu0 %v4000
    %4032 = vmatprep.subr.mxu0 0.0
    %4033 = vmatpush1.msra.mxu0 %v3999
    %4034 = vmatprep.subr.mxu0 0.0
    %4035 = vmatpush1.msra.mxu0 %v3998
    %4036 = vmatprep.subr.mxu0 0.0
    %4037 = vmatpush1.msra.mxu0 %v3997
    %4038 = vmatprep.subr.mxu0 0.0
    %4039 = vmatpush1.msra.mxu0 %v3996
    %4040 = vmatprep.subr.mxu0 0.0
    %4041 = vmatpush1.msra.mxu0 %v3995
    %4042 = vmatprep.subr.mxu0 0.0
    %4043 = vmatpush2.msra.mxu0 0.0
    %4044 = vmatprep.subr.mxu0 0.0
    %4045 = vmatpush2.msra.mxu0 0.0
    %4046 = vmatprep.subr.mxu0 0.0
    %4047 = vmatpush2.msra.mxu0 0.0
    %4048 = vmatprep.subr.mxu0 0.0
    %4049 = vmatpush2.msra.mxu0 0.0
    %4050 = vmatprep.subr.mxu0 0.0
    %4051 = vmatpush2.msra.mxu0 0.0
    %4052 = vmatprep.subr.mxu0 0.0
    %4053 = vmatpush2.msra.mxu0 0.0
    %4054 = vmatprep.subr.mxu0 0.0
    %4055 = vmatpush2.msra.mxu0 0.0
    %4056 = vmatprep.subr.mxu0 0.0
    %4057 = vmatpush2.msra.mxu0 0.0
    %4058 = vmatprep.subr.mxu0 0.0
    %4059 = vmatpush2.msra.mxu0 0.0
    %4060 = vmatprep.subr.mxu0 0.0
    %4061 = vmatpush2.msra.mxu0 0.0
    %4062 = vmatprep.subr.mxu0 0.0
    %4063 = vmatpush2.msra.mxu0 0.0
    %4064 = vmatprep.subr.mxu0 0.0
    %4065 = vmatpush2.msra.mxu0 0.0
    %4066 = vmatprep.subr.mxu0 0.0
    %4067 = vmatpush2.msra.mxu0 0.0
    %4068 = vmatprep.subr.mxu0 0.0
    %4069 = vmatpush2.msra.mxu0 0.0
    %4070 = vmatprep.subr.mxu0 0.0
    %4071 = vmatpush2.msra.mxu0 0.0
    %4072 = vmatprep.subr.mxu0 0.0
    %4073 = vmatpush2.msra.mxu0 0.0
    %4074 = vmatprep.mubr.f32.mxu0 0.0
    %4075 = vmatmul.mubr.f32.gmra.mxu0 %v4008
    %v4076 = vpop.f32.mrf.mxu0
    %v4077 = vadd.f32 0.0, %v4076
    %v4078 = vpop.f32.mrf.mxu0
    %4079 = vdwg.mxu0
    %v4080 = vrsqrt.pop %v4077
    %v4081 = vmul.f32 %v4077, %v4080
    %vm4082 = vcmp.eq.f32.partialorder %v4077, inf
    %v4083 = vsel %vm4082, %v4077, %v4081
    %vm4084 = vcmp.eq.f32.partialorder %v4077, 0.0
    %v4085 = vand.u32 %v4077, 2147483648
    %v4086 = vsel %vm4084, %v4085, %v4083
    %v4087 = vsub.f32 0.0, %v4086
    %v4088 = vmul.f32 %v4087, 1.442695
    %v4089 = vpow.pop %v4088
    %v4090 = vadd.f32 %v4089, 1.0
    %v4091 = vrcp.pop %v4090
    %v4092 = vmul.f32 1.0, %v4091
    %vm4093 = vcmask 41984
    %4094 = vst.msk [vmem:[#allocation4] sm:$0x3] %vm4093, %v4092
    // Predicated region
    $region58: #{pallas_forward.1} parent=1 // pred_check
      _
    $region59: #{pallas_forward.1} parent=1 // pred_check_branch
      %4096 = sbr.rel (0) target = $region61
    $region60: #{pallas_forward.1} parent=1 // pred_region
      %s4098 = ssub.s32 32, 32
      %4099 = vsyncadd [#allocation5], %s4098
      %s4101 = sshll.u32 [#allocation4], 4
      %s4102 = int_to_ptr.vmem [resolvable:$true] %s4101
      %4104 = dma.vmem_to_hbm [thread:$0]  %s4102, 32, %s14, [#allocation5]
    $region61: #{pallas_forward.1} parent=1 // pred_fallthru
      _
    // Predicated region
    $region62: #{pallas_forward.1} parent=1 // pred_check
      _
    $region63: #{pallas_forward.1} parent=1 // pred_check_branch
      %4106 = sbr.rel (0) target = $region65
    $region64: #{pallas_forward.1} parent=1 // pred_region
      %4107 = dma.done [#allocation5], 32
    $region65: #{pallas_forward.1} parent=1 // pred_fallthru
      _
    %4108 = vsyncpa [#allocation5], 1

</llo_original>
